<compile_context>
chip_gen: v5e
topology: v5e:2x2
jax: 0.10.0
libtpu: 0.0.40
codegen_flags: <defaults>
</compile_context>

<pallas_src>
import functools

import numpy as np
import jax
import jax.numpy as jnp
from jax.experimental import pallas as pl
from jax.experimental.pallas import tpu as pltpu


def _layernorm(v, w, b, eps=1e-5):
    mu = jnp.mean(v, axis=-1, keepdims=True)
    var = jnp.mean((v - mu) ** 2, axis=-1, keepdims=True)
    return (v - mu) * jax.lax.rsqrt(var + eps) * w + b


def self_attention_kernel(x_ref, ln1w_ref, ln1b_ref, wqkv_ref, bqkv_ref,
                          wo_ref, bo_ref, ln2w_ref, ln2b_ref,
                          w1_ref, b1_ref, w2_ref, b2_ref, o_ref,
                          *, num_heads, seq_len, block_b, use_bf16):
    mm_dtype = jnp.bfloat16 if use_bf16 else jnp.float32

    x = x_ref[...]                                # (block_b*N, C) f32 token rows
    rows, C = x.shape
    N = seq_len
    dh = C // num_heads

    # Weights read once per grid step; in the bf16 path they arrive pre-cast from the
    # wrapper, so no per-matmul / per-head VPU casts are emitted in the kernel.
    wqkv = wqkv_ref[...]
    wo = wo_ref[...]
    w1 = w1_ref[...]
    w2 = w2_ref[...]

    def mm(a, w):
        # MXU matmul: operands in mm_dtype, accumulation always f32.
        return jnp.dot(a.astype(mm_dtype), w, preferred_element_type=jnp.float32)

    # --- pre-attention LayerNorm (f32 statistics) ---
    x_ln = _layernorm(x, ln1w_ref[...], ln1b_ref[...])

    # --- fused QKV: one (rows, C) @ (C, 3C) push; 1/sqrt(dh) is already folded into
    #     the Q columns / bias, so no per-step scale multiply is needed. ---
    qkv = mm(x_ln, wqkv) + bqkv_ref[...]          # (rows, 3C), f32

    # Cast Q/K/V to the MXU dtype once (hoisted out of the head loop) and expose the
    # batch dimension so the attention matmuls batch over it inside single einsums.
    q = qkv[:, :C].astype(mm_dtype).reshape(block_b, N, C)
    k = qkv[:, C:2 * C].astype(mm_dtype).reshape(block_b, N, C)
    v = qkv[:, 2 * C:].astype(mm_dtype).reshape(block_b, N, C)

    # --- multi-head attention: static loop over the 4 heads only; each iteration is
    #     a pair of batched-over-block_b MXU einsums plus an f32 softmax. ---
    ctx_heads = []
    for h in range(num_heads):
        hs = slice(h * dh, (h + 1) * dh)
        s = jnp.einsum('bqd,bkd->bqk', q[..., hs], k[..., hs],
                       preferred_element_type=jnp.float32)       # (block_b, N, N)
        s = s - jnp.max(s, axis=-1, keepdims=True)
        p = jnp.exp(s)                                            # f32 exp on EUP
        inv_l = pl.reciprocal(jnp.sum(p, axis=-1, keepdims=True), approx=True)
        ctx = jnp.einsum('bqk,bkd->bqd', p.astype(mm_dtype), v[..., hs],
                         preferred_element_type=jnp.float32) * inv_l
        ctx_heads.append(ctx.reshape(rows, dh))

    # Lane-concatenate the per-head contexts into one (rows, C) tile so the output
    # projection is a single full-contraction MXU push (XLU shifts instead of
    # num_heads quarter-filled MXU pushes drained through the MRF + f32 VPU adds).
    ctx_all = jnp.concatenate(ctx_heads, axis=-1)                 # (rows, C), f32
    attn = mm(ctx_all, wo) + bo_ref[...]

    # --- residual 1 ---
    av = attn + x

    # --- feed-forward: LN -> Linear -> exact GELU -> Linear, + residual 2 ---
    hdn = _layernorm(av, ln2w_ref[...], ln2b_ref[...])
    hdn = mm(hdn, w1) + b1_ref[...]
    hdn = 0.5 * hdn * (1.0 + jax.lax.erf(hdn * 0.7071067811865476))
    hdn = mm(hdn, w2) + b2_ref[...]

    # C is 128 or 256 in every SelfAttention instance of this Unet (a multiple of the
    # 128-lane vreg width), so this store is an unmasked full-width vst: the
    # lane-dense-output requirement is met without any repacking.
    o_ref[...] = hdn + av


def _pick_block_b(B, N, target_rows=512):
    # Fatten each grid step to ~target_rows MXU rows (VMEM footprint stays small on
    # all generations, including v7x's 64 MiB), but keep >= 2 grid steps when the
    # batch is even so v7x's dual TensorCores both get work; on single-TC v5e/v6e the
    # extra step only costs one ~0.35us step bound.
    divisors = [d for d in range(1, B + 1) if B % d == 0]
    fitting = [d for d in divisors if d * N <= target_rows] or [1]
    block_b = max(fitting)
    if block_b == B and B > 1 and B % 2 == 0:
        block_b = B // 2
    return block_b


def self_attention(x, kparams, channels, size, num_heads=4, block_b=None):
    """SelfAttention forward. `kparams` must come from prepare_params()."""
    B = x.shape[0]
    C = channels
    N = size * size
    assert C % num_heads == 0
    if block_b is None:
        block_b = _pick_block_b(B, N)
    assert B % block_b == 0, "block_b must divide the batch"
    use_bf16 = (kparams['wqkv'].dtype == jnp.bfloat16)

    # NCHW -> token-major rows (B*N, C); batch folds into the matmul M dimension.
    x_rows = x.reshape(B, C, N).transpose(0, 2, 1).reshape(B * N, C).astype(jnp.float32)

    param_order = ['ln1_w', 'ln1_b', 'wqkv', 'bqkv', 'wo', 'bo',
                   'ln2_w', 'ln2_b', 'w1', 'b1', 'w2', 'b2']
    param_vals = [kparams[name] for name in param_order]
    # Constant (0, 0) index maps: the Pallas pipeline only re-issues a DMA when a
    # block index changes between grid steps, so the 12 grid-invariant weight blocks
    # are fetched into VMEM once and stay resident across the whole grid.
    param_specs = [pl.BlockSpec(p.shape, lambda i: (0, 0)) for p in param_vals]

    rows_per_step = block_b * N
    out = pl.pallas_call(
        functools.partial(self_attention_kernel, num_heads=num_heads,
                          seq_len=N, block_b=block_b, use_bf16=use_bf16),
        out_shape=jax.ShapeDtypeStruct((B * N, C), jnp.float32),
        grid=(B // block_b,),
        in_specs=[pl.BlockSpec((rows_per_step, C), lambda i: (i, 0))] + param_specs,
        out_specs=pl.BlockSpec((rows_per_step, C), lambda i: (i, 0)),
        compiler_params=pltpu.CompilerParams(dimension_semantics=("parallel",)),
    )(x_rows, *param_vals)

    # (B*N, C) -> NCHW
    return out.reshape(B, N, C).transpose(0, 2, 1).reshape(B, C, size, size)


def init_params(key, C):
    # PyTorch-layout parameters of nn.MultiheadAttention / LayerNorm / Linear.
    ks = jax.random.split(key, 12)
    std = 0.05
    return {
        'in_proj_w': std * jax.random.normal(ks[0], (3 * C, C), jnp.float32),
        'in_proj_b': std * jax.random.normal(ks[1], (3 * C,), jnp.float32),
        'out_proj_w': std * jax.random.normal(ks[2], (C, C), jnp.float32),
        'out_proj_b': std * jax.random.normal(ks[3], (C,), jnp.float32),
        'lin1_w': std * jax.random.normal(ks[4], (C, C), jnp.float32),
        'lin1_b': std * jax.random.normal(ks[5], (C,), jnp.float32),
        'lin2_w': std * jax.random.normal(ks[6], (C, C), jnp.float32),
        'lin2_b': std * jax.random.normal(ks[7], (C,), jnp.float32),
        'ln1_w': 1.0 + 0.1 * jax.random.normal(ks[8], (C,), jnp.float32),
        'ln1_b': 0.1 * jax.random.normal(ks[9], (C,), jnp.float32),
        'ln2_w': 1.0 + 0.1 * jax.random.normal(ks[10], (C,), jnp.float32),
        'ln2_b': 0.1 * jax.random.normal(ks[11], (C,), jnp.float32),
    }


def prepare_params(tp, channels, num_heads=4, use_bf16=True):
    """One-time transform of PyTorch-layout params into kernel-ready params:
    transposed (x @ W), QKV fused, 1/sqrt(dh) folded into Q, weights optionally
    pre-cast to bf16 (biases / LayerNorm params stay f32)."""
    C = channels
    dh = C // num_heads
    scale = 1.0 / float(np.sqrt(dh))
    w_dtype = jnp.bfloat16 if use_bf16 else jnp.float32

    wqkv = jnp.asarray(tp['in_proj_w'], jnp.float32).T            # (C, 3C) = [Wq|Wk|Wv]
    bqkv = jnp.asarray(tp['in_proj_b'], jnp.float32)
    wqkv = wqkv.at[:, :C].multiply(scale)                          # fold attention scale
    bqkv = bqkv.at[:C].multiply(scale)

    r = lambda a: jnp.asarray(a, jnp.float32).reshape(1, -1)
    return {
        'ln1_w': r(tp['ln1_w']), 'ln1_b': r(tp['ln1_b']),
        'wqkv': wqkv.astype(w_dtype), 'bqkv': bqkv.reshape(1, -1),
        'wo': jnp.asarray(tp['out_proj_w'], jnp.float32).T.astype(w_dtype),
        'bo': r(tp['out_proj_b']),
        'ln2_w': r(tp['ln2_w']), 'ln2_b': r(tp['ln2_b']),
        'w1': jnp.asarray(tp['lin1_w'], jnp.float32).T.astype(w_dtype),
        'b1': r(tp['lin1_b']),
        'w2': jnp.asarray(tp['lin2_w'], jnp.float32).T.astype(w_dtype),
        'b2': r(tp['lin2_b']),
    }


def reference(x, tp, channels, size, num_heads=4):
    # Pure-JAX mirror of the PyTorch SelfAttention forward (PyTorch-layout params).
    B = x.shape[0]
    C = channels
    N = size * size
    dh = C // num_heads
    xs = x.reshape(B, C, N).transpose(0, 2, 1).astype(jnp.float32)

    def ln(v, w, b):
        mu = jnp.mean(v, axis=-1, keepdims=True)
        var = jnp.mean((v - mu) ** 2, axis=-1, keepdims=True)
        return (v - mu) * jax.lax.rsqrt(var + 1e-5) * w + b

    x_ln = ln(xs, tp['ln1_w'], tp['ln1_b'])
    qkv = x_ln @ tp['in_proj_w'].T + tp['in_proj_b']
    q, k, v = qkv[..., :C], qkv[..., C:2 * C], qkv[..., 2 * C:]
    qh = q.reshape(B, N, num_heads, dh).transpose(0, 2, 1, 3)
    kh = k.reshape(B, N, num_heads, dh).transpose(0, 2, 1, 3)
    vh = v.reshape(B, N, num_heads, dh).transpose(0, 2, 1, 3)
    s = jnp.einsum('bhqd,bhkd->bhqk', qh, kh) / jnp.sqrt(jnp.float32(dh))
    p = jax.nn.softmax(s, axis=-1)
    o = jnp.einsum('bhqk,bhkd->bhqd', p, vh).transpose(0, 2, 1, 3).reshape(B, N, C)
    attn = o @ tp['out_proj_w'].T + tp['out_proj_b']
    av = attn + xs
    h = ln(av, tp['ln2_w'], tp['ln2_b'])
    h = h @ tp['lin1_w'].T + tp['lin1_b']
    h = 0.5 * h * (1.0 + jax.lax.erf(h * 0.7071067811865476))
    h = h @ tp['lin2_w'].T + tp['lin2_b']
    out = h + av
    return out.transpose(0, 2, 1).reshape(B, C, size, size)


if __name__ == "__main__":
    # sa2 configuration of the Unet (channels=256, 4 heads, size=8 -> 64 tokens), B=2.
    B, C, S = 2, 256, 8
    key = jax.random.PRNGKey(0)
    kx, kp = jax.random.split(key)
    x = jax.random.normal(kx, (B, C, S, S), jnp.float32)
    torch_params = init_params(kp, C)

    ref = reference(x, torch_params, C, S)

    # f32 MXU-operand path (mirrors the PyTorch forward; the approx EUP reciprocal in
    # softmax contributes ~2^-12 relative error, hence the 2e-3 tolerance).
    params_f32 = prepare_params(torch_params, C, use_bf16=False)
    out_f32 = self_attention(x, params_f32, C, S)
    jax.block_until_ready(out_f32)
    np.testing.assert_allclose(np.asarray(out_f32), np.asarray(ref), rtol=2e-3, atol=2e-3)

    # bf16 MXU-operand path (preferred default on v6e/v7x; weights pre-cast once in
    # prepare_params, f32 accumulation and f32 LayerNorm / softmax / GELU statistics).
    params_bf16 = prepare_params(torch_params, C, use_bf16=True)
    out_bf16 = self_attention(x, params_bf16, C, S)
    jax.block_until_ready(out_bf16)
    np.testing.assert_allclose(np.asarray(out_bf16), np.asarray(ref), rtol=5e-2, atol=5e-2)

    print("KERNEL_OK")
</pallas_src>

<mosaic_0001>
module attributes {stable_mosaic.version = 11 : i64} {
  func.func @self_attention_kernel(%arg0: i32, %arg1: memref<64x256xf32, #tpu.memory_space<vmem>>, %arg2: memref<1x256xf32, #tpu.memory_space<vmem>>, %arg3: memref<1x256xf32, #tpu.memory_space<vmem>>, %arg4: memref<256x768xf32, #tpu.memory_space<vmem>>, %arg5: memref<1x768xf32, #tpu.memory_space<vmem>>, %arg6: memref<256x256xf32, #tpu.memory_space<vmem>>, %arg7: memref<1x256xf32, #tpu.memory_space<vmem>>, %arg8: memref<1x256xf32, #tpu.memory_space<vmem>>, %arg9: memref<1x256xf32, #tpu.memory_space<vmem>>, %arg10: memref<256x256xf32, #tpu.memory_space<vmem>>, %arg11: memref<1x256xf32, #tpu.memory_space<vmem>>, %arg12: memref<256x256xf32, #tpu.memory_space<vmem>>, %arg13: memref<1x256xf32, #tpu.memory_space<vmem>>, %arg14: memref<64x256xf32, #tpu.memory_space<vmem>>) attributes {dimension_semantics = [#tpu.dimension_semantics<parallel>], iteration_bounds = array<i64: 2>, scalar_prefetch = 0 : i64, scratch_operands = 0 : i64, tpu.core_type = #tpu.core_type<tc>, window_params = [{transform_indices = @transform_0, window_bounds = array<i64: 64, 256>}, {pipeline_mode = #tpu.pipeline_mode<synchronous>, transform_indices = @transform_1, window_bounds = array<i64: 1, 256>}, {pipeline_mode = #tpu.pipeline_mode<synchronous>, transform_indices = @transform_2, window_bounds = array<i64: 1, 256>}, {pipeline_mode = #tpu.pipeline_mode<synchronous>, transform_indices = @transform_3, window_bounds = array<i64: 256, 768>}, {pipeline_mode = #tpu.pipeline_mode<synchronous>, transform_indices = @transform_4, window_bounds = array<i64: 1, 768>}, {pipeline_mode = #tpu.pipeline_mode<synchronous>, transform_indices = @transform_5, window_bounds = array<i64: 256, 256>}, {pipeline_mode = #tpu.pipeline_mode<synchronous>, transform_indices = @transform_6, window_bounds = array<i64: 1, 256>}, {pipeline_mode = #tpu.pipeline_mode<synchronous>, transform_indices = @transform_7, window_bounds = array<i64: 1, 256>}, {pipeline_mode = #tpu.pipeline_mode<synchronous>, transform_indices = @transform_8, window_bounds = array<i64: 1, 256>}, {pipeline_mode = #tpu.pipeline_mode<synchronous>, transform_indices = @transform_9, window_bounds = array<i64: 256, 256>}, {pipeline_mode = #tpu.pipeline_mode<synchronous>, transform_indices = @transform_10, window_bounds = array<i64: 1, 256>}, {pipeline_mode = #tpu.pipeline_mode<synchronous>, transform_indices = @transform_11, window_bounds = array<i64: 256, 256>}, {pipeline_mode = #tpu.pipeline_mode<synchronous>, transform_indices = @transform_12, window_bounds = array<i64: 1, 256>}, {transform_indices = @transform_13, window_bounds = array<i64: 64, 256>}]} {
    %c0 = arith.constant 0 : index
    %c0_0 = arith.constant 0 : index
    %0 = vector.load %arg1[%c0, %c0_0] : memref<64x256xf32, #tpu.memory_space<vmem>>, vector<64x256xf32>
    %c0_1 = arith.constant 0 : index
    %c0_2 = arith.constant 0 : index
    %1 = vector.load %arg4[%c0_1, %c0_2] : memref<256x768xf32, #tpu.memory_space<vmem>>, vector<256x768xf32>
    %c0_3 = arith.constant 0 : index
    %c0_4 = arith.constant 0 : index
    %2 = vector.load %arg6[%c0_3, %c0_4] : memref<256x256xf32, #tpu.memory_space<vmem>>, vector<256x256xf32>
    %c0_5 = arith.constant 0 : index
    %c0_6 = arith.constant 0 : index
    %3 = vector.load %arg10[%c0_5, %c0_6] : memref<256x256xf32, #tpu.memory_space<vmem>>, vector<256x256xf32>
    %c0_7 = arith.constant 0 : index
    %c0_8 = arith.constant 0 : index
    %4 = vector.load %arg12[%c0_7, %c0_8] : memref<256x256xf32, #tpu.memory_space<vmem>>, vector<256x256xf32>
    %c0_9 = arith.constant 0 : index
    %c0_10 = arith.constant 0 : index
    %5 = vector.load %arg2[%c0_9, %c0_10] : memref<1x256xf32, #tpu.memory_space<vmem>>, vector<1x256xf32>
    %c0_11 = arith.constant 0 : index
    %c0_12 = arith.constant 0 : index
    %6 = vector.load %arg3[%c0_11, %c0_12] : memref<1x256xf32, #tpu.memory_space<vmem>>, vector<1x256xf32>
    %cst = arith.constant dense<0.000000e+00> : vector<64xf32>
    %7 = vector.multi_reduction <add>, %0, %cst [1] : vector<64x256xf32> to vector<64xf32>
    %8 = vector.shape_cast %7 : vector<64xf32> to vector<64x1xf32>
    %cst_13 = arith.constant 2.560000e+02 : f32
    %9 = vector.broadcast %cst_13 : f32 to vector<64x1xf32>
    %10 = arith.divf %8, %9 : vector<64x1xf32>
    %11 = vector.broadcast %10 : vector<64x1xf32> to vector<64x256xf32>
    %12 = arith.subf %0, %11 : vector<64x256xf32>
    %13 = arith.mulf %12, %12 : vector<64x256xf32>
    %cst_14 = arith.constant dense<0.000000e+00> : vector<64xf32>
    %14 = vector.multi_reduction <add>, %13, %cst_14 [1] : vector<64x256xf32> to vector<64xf32>
    %15 = vector.shape_cast %14 : vector<64xf32> to vector<64x1xf32>
    %cst_15 = arith.constant 2.560000e+02 : f32
    %16 = vector.broadcast %cst_15 : f32 to vector<64x1xf32>
    %17 = arith.divf %15, %16 : vector<64x1xf32>
    %18 = vector.broadcast %10 : vector<64x1xf32> to vector<64x256xf32>
    %19 = arith.subf %0, %18 : vector<64x256xf32>
    %cst_16 = arith.constant 9.99999974E-6 : f32
    %20 = vector.broadcast %cst_16 : f32 to vector<64x1xf32>
    %21 = arith.addf %17, %20 : vector<64x1xf32>
    %22 = math.rsqrt %21 : vector<64x1xf32>
    %23 = vector.broadcast %22 : vector<64x1xf32> to vector<64x256xf32>
    %24 = arith.mulf %19, %23 : vector<64x256xf32>
    %25 = vector.broadcast %5 : vector<1x256xf32> to vector<64x256xf32>
    %26 = arith.mulf %24, %25 : vector<64x256xf32>
    %27 = vector.broadcast %6 : vector<1x256xf32> to vector<64x256xf32>
    %28 = arith.addf %26, %27 : vector<64x256xf32>
    %cst_17 = arith.constant dense<0.000000e+00> : vector<64x768xf32>
    %29 = tpu.matmul %28, %1, %cst_17 {dimension_numbers = #tpu.dot_dimension_numbers<[1], [0], [0], [1], [0, 0, 1, 1], [], []>} : vector<64x256xf32>, vector<256x768xf32>, vector<64x768xf32> -> vector<64x768xf32>
    %c0_18 = arith.constant 0 : index
    %c0_19 = arith.constant 0 : index
    %30 = vector.load %arg5[%c0_18, %c0_19] : memref<1x768xf32, #tpu.memory_space<vmem>>, vector<1x768xf32>
    %31 = vector.broadcast %30 : vector<1x768xf32> to vector<64x768xf32>
    %32 = arith.addf %29, %31 : vector<64x768xf32>
    %33 = vector.extract_strided_slice %32 {offsets = [0, 0], sizes = [64, 256], strides = [1, 1]} : vector<64x768xf32> to vector<64x256xf32>
    %34 = vector.shape_cast %33 : vector<64x256xf32> to vector<1x64x256xf32>
    %35 = vector.extract_strided_slice %32 {offsets = [0, 256], sizes = [64, 256], strides = [1, 1]} : vector<64x768xf32> to vector<64x256xf32>
    %36 = vector.shape_cast %35 : vector<64x256xf32> to vector<1x64x256xf32>
    %37 = vector.extract_strided_slice %32 {offsets = [0, 512], sizes = [64, 256], strides = [1, 1]} : vector<64x768xf32> to vector<64x256xf32>
    %38 = vector.shape_cast %37 : vector<64x256xf32> to vector<1x64x256xf32>
    %39 = vector.extract_strided_slice %34 {offsets = [0, 0, 0], sizes = [1, 64, 64], strides = [1, 1, 1]} : vector<1x64x256xf32> to vector<1x64x64xf32>
    %40 = vector.extract_strided_slice %36 {offsets = [0, 0, 0], sizes = [1, 64, 64], strides = [1, 1, 1]} : vector<1x64x256xf32> to vector<1x64x64xf32>
    "tpu.trace_start"() <{level = 10 : i32, message = "bqd,bkd->bqk"}> : () -> ()
    %cst_20 = arith.constant dense<0.000000e+00> : vector<1x64x64xf32>
    %41 = tpu.matmul %39, %40, %cst_20 {dimension_numbers = #tpu.dot_dimension_numbers<[2], [2], [1], [1], [0, 0, 0, 1, 1, 1], [0], [0]>} : vector<1x64x64xf32>, vector<1x64x64xf32>, vector<1x64x64xf32> -> vector<1x64x64xf32>
    "tpu.trace_stop"() : () -> ()
    %cst_21 = arith.constant dense<0xFF800000> : vector<1x64xf32>
    %42 = vector.multi_reduction <maximumf>, %41, %cst_21 [2] : vector<1x64x64xf32> to vector<1x64xf32>
    %43 = vector.shape_cast %42 : vector<1x64xf32> to vector<1x64x1xf32>
    %44 = vector.broadcast %43 : vector<1x64x1xf32> to vector<1x64x64xf32>
    %45 = arith.subf %41, %44 : vector<1x64x64xf32>
    %46 = math.exp %45 : vector<1x64x64xf32>
    %cst_22 = arith.constant dense<0.000000e+00> : vector<1x64xf32>
    %47 = vector.multi_reduction <add>, %46, %cst_22 [2] : vector<1x64x64xf32> to vector<1x64xf32>
    %48 = vector.shape_cast %47 : vector<1x64xf32> to vector<1x64x1xf32>
    %49 = tpu.reciprocal %48 {approx = true} : vector<1x64x1xf32> -> vector<1x64x1xf32>
    %50 = vector.extract_strided_slice %38 {offsets = [0, 0, 0], sizes = [1, 64, 64], strides = [1, 1, 1]} : vector<1x64x256xf32> to vector<1x64x64xf32>
    "tpu.trace_start"() <{level = 10 : i32, message = "bqk,bkd->bqd"}> : () -> ()
    %cst_23 = arith.constant dense<0.000000e+00> : vector<1x64x64xf32>
    %51 = tpu.matmul %46, %50, %cst_23 {dimension_numbers = #tpu.dot_dimension_numbers<[2], [1], [1], [2], [0, 0, 0, 1, 1, 2], [0], [0]>} : vector<1x64x64xf32>, vector<1x64x64xf32>, vector<1x64x64xf32> -> vector<1x64x64xf32>
    "tpu.trace_stop"() : () -> ()
    %52 = vector.broadcast %49 : vector<1x64x1xf32> to vector<1x64x64xf32>
    %53 = arith.mulf %51, %52 : vector<1x64x64xf32>
    %54 = vector.shape_cast %53 : vector<1x64x64xf32> to vector<64x64xf32>
    %55 = vector.extract_strided_slice %34 {offsets = [0, 0, 64], sizes = [1, 64, 64], strides = [1, 1, 1]} : vector<1x64x256xf32> to vector<1x64x64xf32>
    %56 = vector.extract_strided_slice %36 {offsets = [0, 0, 64], sizes = [1, 64, 64], strides = [1, 1, 1]} : vector<1x64x256xf32> to vector<1x64x64xf32>
    "tpu.trace_start"() <{level = 10 : i32, message = "bqd,bkd->bqk"}> : () -> ()
    %cst_24 = arith.constant dense<0.000000e+00> : vector<1x64x64xf32>
    %57 = tpu.matmul %55, %56, %cst_24 {dimension_numbers = #tpu.dot_dimension_numbers<[2], [2], [1], [1], [0, 0, 0, 1, 1, 1], [0], [0]>} : vector<1x64x64xf32>, vector<1x64x64xf32>, vector<1x64x64xf32> -> vector<1x64x64xf32>
    "tpu.trace_stop"() : () -> ()
    %cst_25 = arith.constant dense<0xFF800000> : vector<1x64xf32>
    %58 = vector.multi_reduction <maximumf>, %57, %cst_25 [2] : vector<1x64x64xf32> to vector<1x64xf32>
    %59 = vector.shape_cast %58 : vector<1x64xf32> to vector<1x64x1xf32>
    %60 = vector.broadcast %59 : vector<1x64x1xf32> to vector<1x64x64xf32>
    %61 = arith.subf %57, %60 : vector<1x64x64xf32>
    %62 = math.exp %61 : vector<1x64x64xf32>
    %cst_26 = arith.constant dense<0.000000e+00> : vector<1x64xf32>
    %63 = vector.multi_reduction <add>, %62, %cst_26 [2] : vector<1x64x64xf32> to vector<1x64xf32>
    %64 = vector.shape_cast %63 : vector<1x64xf32> to vector<1x64x1xf32>
    %65 = tpu.reciprocal %64 {approx = true} : vector<1x64x1xf32> -> vector<1x64x1xf32>
    %66 = vector.extract_strided_slice %38 {offsets = [0, 0, 64], sizes = [1, 64, 64], strides = [1, 1, 1]} : vector<1x64x256xf32> to vector<1x64x64xf32>
    "tpu.trace_start"() <{level = 10 : i32, message = "bqk,bkd->bqd"}> : () -> ()
    %cst_27 = arith.constant dense<0.000000e+00> : vector<1x64x64xf32>
    %67 = tpu.matmul %62, %66, %cst_27 {dimension_numbers = #tpu.dot_dimension_numbers<[2], [1], [1], [2], [0, 0, 0, 1, 1, 2], [0], [0]>} : vector<1x64x64xf32>, vector<1x64x64xf32>, vector<1x64x64xf32> -> vector<1x64x64xf32>
    "tpu.trace_stop"() : () -> ()
    %68 = vector.broadcast %65 : vector<1x64x1xf32> to vector<1x64x64xf32>
    %69 = arith.mulf %67, %68 : vector<1x64x64xf32>
    %70 = vector.shape_cast %69 : vector<1x64x64xf32> to vector<64x64xf32>
    %71 = vector.extract_strided_slice %34 {offsets = [0, 0, 128], sizes = [1, 64, 64], strides = [1, 1, 1]} : vector<1x64x256xf32> to vector<1x64x64xf32>
    %72 = vector.extract_strided_slice %36 {offsets = [0, 0, 128], sizes = [1, 64, 64], strides = [1, 1, 1]} : vector<1x64x256xf32> to vector<1x64x64xf32>
    "tpu.trace_start"() <{level = 10 : i32, message = "bqd,bkd->bqk"}> : () -> ()
    %cst_28 = arith.constant dense<0.000000e+00> : vector<1x64x64xf32>
    %73 = tpu.matmul %71, %72, %cst_28 {dimension_numbers = #tpu.dot_dimension_numbers<[2], [2], [1], [1], [0, 0, 0, 1, 1, 1], [0], [0]>} : vector<1x64x64xf32>, vector<1x64x64xf32>, vector<1x64x64xf32> -> vector<1x64x64xf32>
    "tpu.trace_stop"() : () -> ()
    %cst_29 = arith.constant dense<0xFF800000> : vector<1x64xf32>
    %74 = vector.multi_reduction <maximumf>, %73, %cst_29 [2] : vector<1x64x64xf32> to vector<1x64xf32>
    %75 = vector.shape_cast %74 : vector<1x64xf32> to vector<1x64x1xf32>
    %76 = vector.broadcast %75 : vector<1x64x1xf32> to vector<1x64x64xf32>
    %77 = arith.subf %73, %76 : vector<1x64x64xf32>
    %78 = math.exp %77 : vector<1x64x64xf32>
    %cst_30 = arith.constant dense<0.000000e+00> : vector<1x64xf32>
    %79 = vector.multi_reduction <add>, %78, %cst_30 [2] : vector<1x64x64xf32> to vector<1x64xf32>
    %80 = vector.shape_cast %79 : vector<1x64xf32> to vector<1x64x1xf32>
    %81 = tpu.reciprocal %80 {approx = true} : vector<1x64x1xf32> -> vector<1x64x1xf32>
    %82 = vector.extract_strided_slice %38 {offsets = [0, 0, 128], sizes = [1, 64, 64], strides = [1, 1, 1]} : vector<1x64x256xf32> to vector<1x64x64xf32>
    "tpu.trace_start"() <{level = 10 : i32, message = "bqk,bkd->bqd"}> : () -> ()
    %cst_31 = arith.constant dense<0.000000e+00> : vector<1x64x64xf32>
    %83 = tpu.matmul %78, %82, %cst_31 {dimension_numbers = #tpu.dot_dimension_numbers<[2], [1], [1], [2], [0, 0, 0, 1, 1, 2], [0], [0]>} : vector<1x64x64xf32>, vector<1x64x64xf32>, vector<1x64x64xf32> -> vector<1x64x64xf32>
    "tpu.trace_stop"() : () -> ()
    %84 = vector.broadcast %81 : vector<1x64x1xf32> to vector<1x64x64xf32>
    %85 = arith.mulf %83, %84 : vector<1x64x64xf32>
    %86 = vector.shape_cast %85 : vector<1x64x64xf32> to vector<64x64xf32>
    %87 = vector.extract_strided_slice %34 {offsets = [0, 0, 192], sizes = [1, 64, 64], strides = [1, 1, 1]} : vector<1x64x256xf32> to vector<1x64x64xf32>
    %88 = vector.extract_strided_slice %36 {offsets = [0, 0, 192], sizes = [1, 64, 64], strides = [1, 1, 1]} : vector<1x64x256xf32> to vector<1x64x64xf32>
    "tpu.trace_start"() <{level = 10 : i32, message = "bqd,bkd->bqk"}> : () -> ()
    %cst_32 = arith.constant dense<0.000000e+00> : vector<1x64x64xf32>
    %89 = tpu.matmul %87, %88, %cst_32 {dimension_numbers = #tpu.dot_dimension_numbers<[2], [2], [1], [1], [0, 0, 0, 1, 1, 1], [0], [0]>} : vector<1x64x64xf32>, vector<1x64x64xf32>, vector<1x64x64xf32> -> vector<1x64x64xf32>
    "tpu.trace_stop"() : () -> ()
    %cst_33 = arith.constant dense<0xFF800000> : vector<1x64xf32>
    %90 = vector.multi_reduction <maximumf>, %89, %cst_33 [2] : vector<1x64x64xf32> to vector<1x64xf32>
    %91 = vector.shape_cast %90 : vector<1x64xf32> to vector<1x64x1xf32>
    %92 = vector.broadcast %91 : vector<1x64x1xf32> to vector<1x64x64xf32>
    %93 = arith.subf %89, %92 : vector<1x64x64xf32>
    %94 = math.exp %93 : vector<1x64x64xf32>
    %cst_34 = arith.constant dense<0.000000e+00> : vector<1x64xf32>
    %95 = vector.multi_reduction <add>, %94, %cst_34 [2] : vector<1x64x64xf32> to vector<1x64xf32>
    %96 = vector.shape_cast %95 : vector<1x64xf32> to vector<1x64x1xf32>
    %97 = tpu.reciprocal %96 {approx = true} : vector<1x64x1xf32> -> vector<1x64x1xf32>
    %98 = vector.extract_strided_slice %38 {offsets = [0, 0, 192], sizes = [1, 64, 64], strides = [1, 1, 1]} : vector<1x64x256xf32> to vector<1x64x64xf32>
    "tpu.trace_start"() <{level = 10 : i32, message = "bqk,bkd->bqd"}> : () -> ()
    %cst_35 = arith.constant dense<0.000000e+00> : vector<1x64x64xf32>
    %99 = tpu.matmul %94, %98, %cst_35 {dimension_numbers = #tpu.dot_dimension_numbers<[2], [1], [1], [2], [0, 0, 0, 1, 1, 2], [0], [0]>} : vector<1x64x64xf32>, vector<1x64x64xf32>, vector<1x64x64xf32> -> vector<1x64x64xf32>
    "tpu.trace_stop"() : () -> ()
    %100 = vector.broadcast %97 : vector<1x64x1xf32> to vector<1x64x64xf32>
    %101 = arith.mulf %99, %100 : vector<1x64x64xf32>
    %102 = vector.shape_cast %101 : vector<1x64x64xf32> to vector<64x64xf32>
    %103 = tpu.concatenate %54, %70, %86, %102 in 1 : vector<64x64xf32>, vector<64x64xf32>, vector<64x64xf32>, vector<64x64xf32> -> vector<64x256xf32>
    %cst_36 = arith.constant dense<0.000000e+00> : vector<64x256xf32>
    %104 = tpu.matmul %103, %2, %cst_36 {dimension_numbers = #tpu.dot_dimension_numbers<[1], [0], [0], [1], [0, 0, 1, 1], [], []>} : vector<64x256xf32>, vector<256x256xf32>, vector<64x256xf32> -> vector<64x256xf32>
    %c0_37 = arith.constant 0 : index
    %c0_38 = arith.constant 0 : index
    %105 = vector.load %arg7[%c0_37, %c0_38] : memref<1x256xf32, #tpu.memory_space<vmem>>, vector<1x256xf32>
    %106 = vector.broadcast %105 : vector<1x256xf32> to vector<64x256xf32>
    %107 = arith.addf %104, %106 : vector<64x256xf32>
    %108 = arith.addf %107, %0 : vector<64x256xf32>
    %c0_39 = arith.constant 0 : index
    %c0_40 = arith.constant 0 : index
    %109 = vector.load %arg8[%c0_39, %c0_40] : memref<1x256xf32, #tpu.memory_space<vmem>>, vector<1x256xf32>
    %c0_41 = arith.constant 0 : index
    %c0_42 = arith.constant 0 : index
    %110 = vector.load %arg9[%c0_41, %c0_42] : memref<1x256xf32, #tpu.memory_space<vmem>>, vector<1x256xf32>
    %cst_43 = arith.constant dense<0.000000e+00> : vector<64xf32>
    %111 = vector.multi_reduction <add>, %108, %cst_43 [1] : vector<64x256xf32> to vector<64xf32>
    %112 = vector.shape_cast %111 : vector<64xf32> to vector<64x1xf32>
    %cst_44 = arith.constant 2.560000e+02 : f32
    %113 = vector.broadcast %cst_44 : f32 to vector<64x1xf32>
    %114 = arith.divf %112, %113 : vector<64x1xf32>
    %115 = vector.broadcast %114 : vector<64x1xf32> to vector<64x256xf32>
    %116 = arith.subf %108, %115 : vector<64x256xf32>
    %117 = arith.mulf %116, %116 : vector<64x256xf32>
    %cst_45 = arith.constant dense<0.000000e+00> : vector<64xf32>
    %118 = vector.multi_reduction <add>, %117, %cst_45 [1] : vector<64x256xf32> to vector<64xf32>
    %119 = vector.shape_cast %118 : vector<64xf32> to vector<64x1xf32>
    %cst_46 = arith.constant 2.560000e+02 : f32
    %120 = vector.broadcast %cst_46 : f32 to vector<64x1xf32>
    %121 = arith.divf %119, %120 : vector<64x1xf32>
    %122 = vector.broadcast %114 : vector<64x1xf32> to vector<64x256xf32>
    %123 = arith.subf %108, %122 : vector<64x256xf32>
    %cst_47 = arith.constant 9.99999974E-6 : f32
    %124 = vector.broadcast %cst_47 : f32 to vector<64x1xf32>
    %125 = arith.addf %121, %124 : vector<64x1xf32>
    %126 = math.rsqrt %125 : vector<64x1xf32>
    %127 = vector.broadcast %126 : vector<64x1xf32> to vector<64x256xf32>
    %128 = arith.mulf %123, %127 : vector<64x256xf32>
    %129 = vector.broadcast %109 : vector<1x256xf32> to vector<64x256xf32>
    %130 = arith.mulf %128, %129 : vector<64x256xf32>
    %131 = vector.broadcast %110 : vector<1x256xf32> to vector<64x256xf32>
    %132 = arith.addf %130, %131 : vector<64x256xf32>
    %cst_48 = arith.constant dense<0.000000e+00> : vector<64x256xf32>
    %133 = tpu.matmul %132, %3, %cst_48 {dimension_numbers = #tpu.dot_dimension_numbers<[1], [0], [0], [1], [0, 0, 1, 1], [], []>} : vector<64x256xf32>, vector<256x256xf32>, vector<64x256xf32> -> vector<64x256xf32>
    %c0_49 = arith.constant 0 : index
    %c0_50 = arith.constant 0 : index
    %134 = vector.load %arg11[%c0_49, %c0_50] : memref<1x256xf32, #tpu.memory_space<vmem>>, vector<1x256xf32>
    %135 = vector.broadcast %134 : vector<1x256xf32> to vector<64x256xf32>
    %136 = arith.addf %133, %135 : vector<64x256xf32>
    %cst_51 = arith.constant 5.000000e-01 : f32
    %137 = vector.broadcast %cst_51 : f32 to vector<64x256xf32>
    %138 = arith.mulf %137, %136 : vector<64x256xf32>
    %cst_52 = arith.constant 0.707106769 : f32
    %139 = vector.broadcast %cst_52 : f32 to vector<64x256xf32>
    %140 = arith.mulf %136, %139 : vector<64x256xf32>
    %141 = math.erf %140 : vector<64x256xf32>
    %cst_53 = arith.constant 1.000000e+00 : f32
    %142 = vector.broadcast %cst_53 : f32 to vector<64x256xf32>
    %143 = arith.addf %142, %141 : vector<64x256xf32>
    %144 = arith.mulf %138, %143 : vector<64x256xf32>
    %cst_54 = arith.constant dense<0.000000e+00> : vector<64x256xf32>
    %145 = tpu.matmul %144, %4, %cst_54 {dimension_numbers = #tpu.dot_dimension_numbers<[1], [0], [0], [1], [0, 0, 1, 1], [], []>} : vector<64x256xf32>, vector<256x256xf32>, vector<64x256xf32> -> vector<64x256xf32>
    %c0_55 = arith.constant 0 : index
    %c0_56 = arith.constant 0 : index
    %146 = vector.load %arg13[%c0_55, %c0_56] : memref<1x256xf32, #tpu.memory_space<vmem>>, vector<1x256xf32>
    %147 = vector.broadcast %146 : vector<1x256xf32> to vector<64x256xf32>
    %148 = arith.addf %145, %147 : vector<64x256xf32>
    %149 = arith.addf %148, %108 : vector<64x256xf32>
    %c0_57 = arith.constant 0 : index
    %c0_58 = arith.constant 0 : index
    %150 = vector.load %arg14[%c0_57, %c0_58] : memref<64x256xf32, #tpu.memory_space<vmem>>, vector<64x256xf32>
    tpu.vector_store %arg14[%c0_57, %c0_58], %149 {strides = array<i32>} : memref<64x256xf32, #tpu.memory_space<vmem>>, vector<64x256xf32>,
    return
  }
  func.func @transform_0(%arg0: i32) -> (i32, i32) {
    %c0_i32 = arith.constant 0 : i32
    %c0_i32_0 = arith.constant 0 : i32
    return %arg0, %c0_i32 : i32, i32
  }
  func.func @transform_1(%arg0: i32) -> (i32, i32) {
    %c0_i32 = arith.constant 0 : i32
    %c0_i32_0 = arith.constant 0 : i32
    %c0_i32_1 = arith.constant 0 : i32
    return %c0_i32, %c0_i32_0 : i32, i32
  }
  func.func @transform_2(%arg0: i32) -> (i32, i32) {
    %c0_i32 = arith.constant 0 : i32
    %c0_i32_0 = arith.constant 0 : i32
    %c0_i32_1 = arith.constant 0 : i32
    return %c0_i32, %c0_i32_0 : i32, i32
  }
  func.func @transform_3(%arg0: i32) -> (i32, i32) {
    %c0_i32 = arith.constant 0 : i32
    %c0_i32_0 = arith.constant 0 : i32
    %c0_i32_1 = arith.constant 0 : i32
    return %c0_i32, %c0_i32_0 : i32, i32
  }
  func.func @transform_4(%arg0: i32) -> (i32, i32) {
    %c0_i32 = arith.constant 0 : i32
    %c0_i32_0 = arith.constant 0 : i32
    %c0_i32_1 = arith.constant 0 : i32
    return %c0_i32, %c0_i32_0 : i32, i32
  }
  func.func @transform_5(%arg0: i32) -> (i32, i32) {
    %c0_i32 = arith.constant 0 : i32
    %c0_i32_0 = arith.constant 0 : i32
    %c0_i32_1 = arith.constant 0 : i32
    return %c0_i32, %c0_i32_0 : i32, i32
  }
  func.func @transform_6(%arg0: i32) -> (i32, i32) {
    %c0_i32 = arith.constant 0 : i32
    %c0_i32_0 = arith.constant 0 : i32
    %c0_i32_1 = arith.constant 0 : i32
    return %c0_i32, %c0_i32_0 : i32, i32
  }
  func.func @transform_7(%arg0: i32) -> (i32, i32) {
    %c0_i32 = arith.constant 0 : i32
    %c0_i32_0 = arith.constant 0 : i32
    %c0_i32_1 = arith.constant 0 : i32
    return %c0_i32, %c0_i32_0 : i32, i32
  }
  func.func @transform_8(%arg0: i32) -> (i32, i32) {
    %c0_i32 = arith.constant 0 : i32
    %c0_i32_0 = arith.constant 0 : i32
    %c0_i32_1 = arith.constant 0 : i32
    return %c0_i32, %c0_i32_0 : i32, i32
  }
  func.func @transform_9(%arg0: i32) -> (i32, i32) {
    %c0_i32 = arith.constant 0 : i32
    %c0_i32_0 = arith.constant 0 : i32
    %c0_i32_1 = arith.constant 0 : i32
    return %c0_i32, %c0_i32_0 : i32, i32
  }
  func.func @transform_10(%arg0: i32) -> (i32, i32) {
    %c0_i32 = arith.constant 0 : i32
    %c0_i32_0 = arith.constant 0 : i32
    %c0_i32_1 = arith.constant 0 : i32
    return %c0_i32, %c0_i32_0 : i32, i32
  }
  func.func @transform_11(%arg0: i32) -> (i32, i32) {
    %c0_i32 = arith.constant 0 : i32
    %c0_i32_0 = arith.constant 0 : i32
    %c0_i32_1 = arith.constant 0 : i32
    return %c0_i32, %c0_i32_0 : i32, i32
  }
  func.func @transform_12(%arg0: i32) -> (i32, i32) {
    %c0_i32 = arith.constant 0 : i32
    %c0_i32_0 = arith.constant 0 : i32
    %c0_i32_1 = arith.constant 0 : i32
    return %c0_i32, %c0_i32_0 : i32, i32
  }
  func.func @transform_13(%arg0: i32) -> (i32, i32) {
    %c0_i32 = arith.constant 0 : i32
    %c0_i32_0 = arith.constant 0 : i32
    return %arg0, %c0_i32 : i32, i32
  }
}

</mosaic_0001>

<llo_original>
// kernel: tpu_custom_call.1
$region0: #{tpu_custom_call.1}
  #allocation0 [shape = 'u32[]', space=smem, size = 0x4, offset = 0x4, fixed_abs, tag = 'smem constant byte address 0x4 - core index']
  #allocation1 [shape = 'u32[72,128]{1,0:T(1,128)}', space=vmem, size = 0x9000, scoped, tag = 'internal scratch']
  %s0 = inlined_call_operand.hbm [shape: f32[128,256], index: 0, kind: input, shape index: {}]
  %s1 = inlined_call_operand.hbm [shape: f32[1,256], index: 1, kind: input, shape index: {}]
  %s2 = inlined_call_operand.hbm [shape: f32[1,256], index: 2, kind: input, shape index: {}]
  %s3 = inlined_call_operand.hbm [shape: f32[256,768], index: 3, kind: input, shape index: {}]
  %s4 = inlined_call_operand.hbm [shape: f32[1,768], index: 4, kind: input, shape index: {}]
  %s5 = inlined_call_operand.hbm [shape: f32[256,256], index: 5, kind: input, shape index: {}]
  %s6 = inlined_call_operand.vmem [shape: f32[1,256], index: 6, kind: input, shape index: {}]
  %s7 = inlined_call_operand.vmem [shape: f32[1,256], index: 7, kind: input, shape index: {}]
  %s8 = inlined_call_operand.vmem [shape: f32[1,256], index: 8, kind: input, shape index: {}]
  %s9 = inlined_call_operand.hbm [shape: f32[256,256], index: 9, kind: input, shape index: {}]
  %s10 = inlined_call_operand.vmem [shape: f32[1,256], index: 10, kind: input, shape index: {}]
  %s11 = inlined_call_operand.hbm [shape: f32[256,256], index: 11, kind: input, shape index: {}]
  %s12 = inlined_call_operand.vmem [shape: f32[1,256], index: 12, kind: input, shape index: {}]
  %s13 = inlined_call_operand.hbm [shape: f32[128,256], index: 13, kind: output, shape index: {}]
  %s14 = sld [smem:[#allocation0]]
  $region117: #{tpu_custom_call.1} parent=0
    _
  %s16 = ssub.s32 1, %s14
  %s17 = scalar_select 0, %s16, %s14
  $region1: #{tpu_custom_call.1} parent=0
    #allocation2 [shape = 'u8[131072]{0}', space=vmem, size = 0x20000, scoped, tag = 'input window, operand 0']
    #allocation3 [shape = 's32[2]{0}', space=sflag, size = 0x8, scoped, tag = 'scoped memory for tpu_custom_call.1']
    #allocation4 [shape = 's32[2]{0}', space=sflag, size = 0x8, scoped, tag = 'scoped memory for tpu_custom_call.1']
    #allocation5 [shape = 'u8[1024]{0}', space=vmem, size = 0x400, scoped, tag = 'input window, operand 1, single buffered']
    #allocation6 [shape = 's32[1]{0}', space=sflag, size = 0x4, scoped, tag = 'scoped memory for tpu_custom_call.1']
    #allocation7 [shape = 'u8[1024]{0}', space=vmem, size = 0x400, scoped, tag = 'input window, operand 2, single buffered']
    #allocation8 [shape = 'u8[786432]{0}', space=vmem, size = 0xc0000, scoped, tag = 'input window, operand 3, single buffered']
    #allocation9 [shape = 's32[1]{0}', space=sflag, size = 0x4, scoped, tag = 'scoped memory for tpu_custom_call.1']
    #allocation10 [shape = 'u8[3072]{0}', space=vmem, size = 0xc00, scoped, tag = 'input window, operand 4, single buffered']
    #allocation11 [shape = 'u8[262144]{0}', space=vmem, size = 0x40000, scoped, tag = 'input window, operand 5, single buffered']
    #allocation12 [shape = 's32[1]{0}', space=sflag, size = 0x4, scoped, tag = 'scoped memory for tpu_custom_call.1']
    #allocation13 [shape = 'u8[262144]{0}', space=vmem, size = 0x40000, scoped, tag = 'input window, operand 9, single buffered']
    #allocation14 [shape = 'u8[262144]{0}', space=vmem, size = 0x40000, scoped, tag = 'input window, operand 11, single buffered']
    #allocation15 [shape = 's32[1]{0}', space=sflag, size = 0x4, scoped, tag = 'scoped memory for tpu_custom_call.1']
    #allocation16 [shape = 'u8[131072]{0}', space=vmem, size = 0x20000, scoped, tag = 'output window, operand 0']
    %18 = vsyncpa [#allocation3], 0
    %s19 = scalar_lea.sflag [#allocation3], 1
    %20 = vsyncpa %s19, 0
    %21 = vsyncpa [#allocation6], 0
    %22 = vsyncpa [#allocation9], 0
    %23 = vsyncpa [#allocation12], 0
    %24 = vsyncpa [#allocation15], 0
    %25 = vsyncpa [#allocation4], 0
    %s26 = scalar_lea.sflag [#allocation4], 1
    %27 = vsyncpa %s26, 0
    loop: start=0, step=1, limit=4
    $region2: #{tpu_custom_call.1} parent=1 // loop_pre_header
      _
    $region3: #{tpu_custom_call.1} parent=1 // loop_header
      %s29 = sphi 0, %s33
      %p30 = scmp.ge.s32.totalorder %s29, 4
      %s39 = sphi 0, %s41
      %s42 = sphi 0, %s39
      %s43 = sphi 0, %s42
      %s59 = sphi 0, %s43
      %s63 = sphi 0, %s63
      %s65 = sphi 0, %s63
      %s66 = sphi 0, %s65
      %s80 = sphi 0, %s66
      %s84 = sphi 0, %s84
      %s86 = sphi 0, %s84
      %s87 = sphi 0, %s86
      %s101 = sphi 0, %s87
      %s105 = sphi 0, %s105
      %s107 = sphi 0, %s105
      %s108 = sphi 0, %s107
      %s122 = sphi 0, %s108
      %s126 = sphi 0, %s126
      %s128 = sphi 0, %s126
      %s129 = sphi 0, %s128
      %s143 = sphi 0, %s129
      %s147 = sphi 0, %s147
      %s149 = sphi 0, %s147
      %s150 = sphi 0, %s149
      %s164 = sphi 0, %s150
      %s168 = sphi 0, %s168
      %s170 = sphi 0, %s168
      %s171 = sphi 0, %s170
      %s185 = sphi 0, %s171
      %s189 = sphi 0, %s189
      %s191 = sphi 0, %s189
      %s192 = sphi 0, %s191
      %s206 = sphi 0, %s192
      %s210 = sphi 0, %s210
      %s212 = sphi 0, %s210
      %s213 = sphi 0, %s212
      %s227 = sphi 0, %s213
      %s231 = sphi 0, %s231
      %s233 = sphi 0, %s231
      %s234 = sphi 0, %s233
      %s248 = sphi 0, %s234
      %s252 = sphi 0, %s252
      %s254 = sphi 0, %s252
      %s255 = sphi 0, %s254
      %s269 = sphi 0, %s255
      %s273 = sphi 0, %s273
      %s275 = sphi 0, %s273
      %s276 = sphi 0, %s275
      %s290 = sphi 0, %s276
      %s294 = sphi 0, %s294
      %s296 = sphi 0, %s294
      %s297 = sphi 0, %s296
      %s311 = sphi 0, %s297
      %s317 = sphi 0, %s319
      %s320 = sphi 0, %s317
      %s321 = sphi 0, %s320
      %s337 = sphi 0, %s321
    $region4: #{tpu_custom_call.1} parent=1 // loop_header_branch
      %32 = sbr.rel (%p30) target = $region8
    $region5: #{tpu_custom_call.1} parent=1 // loop_body
      %s34 = ssub.s32 %s29, 1
      %s35 = ssub.s32 %s29, 2
      %s36 = sadd.s32 %s29, 1
      %s37 = ssub.s32 %s29, %s36
      %p38 = scmp.eq.s32.totalorder %s37, 0
      %s40 = sadd.s32 %s39, 1
      %s41 = scalar_select %p38, %s39, %s40
      %p44 = pneg %p38
      %p45 = scmp.eq.s32.totalorder %s29, 1
      %p46 = por %p44, %p45
      %p47 = scmp.ne.s32.totalorder %s39, %s42
      %p48 = scmp.eq.s32.totalorder %s29, 0
      %p49 = por %p47, %p48
      %p50 = scmp.ne.s32.totalorder %s39, %s42
      %p51 = scmp.eq.s32.totalorder %s34, 1
      %p52 = por %p50, %p51
      %p53 = scmp.ne.s32.totalorder %s42, %s43
      %p54 = scmp.eq.s32.totalorder %s34, 0
      %p55 = por %p53, %p54
      %p56 = scmp.ne.s32.totalorder %s42, %s43
      %p57 = scmp.eq.s32.totalorder %s35, 1
      %p58 = por %p56, %p57
      %p60 = scmp.ne.s32.totalorder %s43, %s59
      %p61 = scmp.eq.s32.totalorder %s35, 0
      %p62 = por %p60, %p61
      %s64 = sadd.s32 %s63, 1
      %p67 = scmp.eq.s32.totalorder %s29, 1
      %p68 = scmp.ne.s32.totalorder %s63, %s65
      %p69 = scmp.eq.s32.totalorder %s29, 0
      %p70 = por %p68, %p69
      %p71 = scmp.ne.s32.totalorder %s63, %s65
      %p72 = scmp.eq.s32.totalorder %s34, 1
      %p73 = por %p71, %p72
      %p74 = scmp.ne.s32.totalorder %s65, %s66
      %p75 = scmp.eq.s32.totalorder %s34, 0
      %p76 = por %p74, %p75
      %p77 = scmp.ne.s32.totalorder %s65, %s66
      %p78 = scmp.eq.s32.totalorder %s35, 1
      %p79 = por %p77, %p78
      %p81 = scmp.ne.s32.totalorder %s66, %s80
      %p82 = scmp.eq.s32.totalorder %s35, 0
      %p83 = por %p81, %p82
      %s85 = sadd.s32 %s84, 1
      %p88 = scmp.eq.s32.totalorder %s29, 1
      %p89 = scmp.ne.s32.totalorder %s84, %s86
      %p90 = scmp.eq.s32.totalorder %s29, 0
      %p91 = por %p89, %p90
      %p92 = scmp.ne.s32.totalorder %s84, %s86
      %p93 = scmp.eq.s32.totalorder %s34, 1
      %p94 = por %p92, %p93
      %p95 = scmp.ne.s32.totalorder %s86, %s87
      %p96 = scmp.eq.s32.totalorder %s34, 0
      %p97 = por %p95, %p96
      %p98 = scmp.ne.s32.totalorder %s86, %s87
      %p99 = scmp.eq.s32.totalorder %s35, 1
      %p100 = por %p98, %p99
      %p102 = scmp.ne.s32.totalorder %s87, %s101
      %p103 = scmp.eq.s32.totalorder %s35, 0
      %p104 = por %p102, %p103
      %s106 = sadd.s32 %s105, 1
      %p109 = scmp.eq.s32.totalorder %s29, 1
      %p110 = scmp.ne.s32.totalorder %s105, %s107
      %p111 = scmp.eq.s32.totalorder %s29, 0
      %p112 = por %p110, %p111
      %p113 = scmp.ne.s32.totalorder %s105, %s107
      %p114 = scmp.eq.s32.totalorder %s34, 1
      %p115 = por %p113, %p114
      %p116 = scmp.ne.s32.totalorder %s107, %s108
      %p117 = scmp.eq.s32.totalorder %s34, 0
      %p118 = por %p116, %p117
      %p119 = scmp.ne.s32.totalorder %s107, %s108
      %p120 = scmp.eq.s32.totalorder %s35, 1
      %p121 = por %p119, %p120
      %p123 = scmp.ne.s32.totalorder %s108, %s122
      %p124 = scmp.eq.s32.totalorder %s35, 0
      %p125 = por %p123, %p124
      %s127 = sadd.s32 %s126, 1
      %p130 = scmp.eq.s32.totalorder %s29, 1
      %p131 = scmp.ne.s32.totalorder %s126, %s128
      %p132 = scmp.eq.s32.totalorder %s29, 0
      %p133 = por %p131, %p132
      %p134 = scmp.ne.s32.totalorder %s126, %s128
      %p135 = scmp.eq.s32.totalorder %s34, 1
      %p136 = por %p134, %p135
      %p137 = scmp.ne.s32.totalorder %s128, %s129
      %p138 = scmp.eq.s32.totalorder %s34, 0
      %p139 = por %p137, %p138
      %p140 = scmp.ne.s32.totalorder %s128, %s129
      %p141 = scmp.eq.s32.totalorder %s35, 1
      %p142 = por %p140, %p141
      %p144 = scmp.ne.s32.totalorder %s129, %s143
      %p145 = scmp.eq.s32.totalorder %s35, 0
      %p146 = por %p144, %p145
      %s148 = sadd.s32 %s147, 1
      %p151 = scmp.eq.s32.totalorder %s29, 1
      %p152 = scmp.ne.s32.totalorder %s147, %s149
      %p153 = scmp.eq.s32.totalorder %s29, 0
      %p154 = por %p152, %p153
      %p155 = scmp.ne.s32.totalorder %s147, %s149
      %p156 = scmp.eq.s32.totalorder %s34, 1
      %p157 = por %p155, %p156
      %p158 = scmp.ne.s32.totalorder %s149, %s150
      %p159 = scmp.eq.s32.totalorder %s34, 0
      %p160 = por %p158, %p159
      %p161 = scmp.ne.s32.totalorder %s149, %s150
      %p162 = scmp.eq.s32.totalorder %s35, 1
      %p163 = por %p161, %p162
      %p165 = scmp.ne.s32.totalorder %s150, %s164
      %p166 = scmp.eq.s32.totalorder %s35, 0
      %p167 = por %p165, %p166
      %s169 = sadd.s32 %s168, 1
      %p172 = scmp.eq.s32.totalorder %s29, 1
      %p173 = scmp.ne.s32.totalorder %s168, %s170
      %p174 = scmp.eq.s32.totalorder %s29, 0
      %p175 = por %p173, %p174
      %p176 = scmp.ne.s32.totalorder %s168, %s170
      %p177 = scmp.eq.s32.totalorder %s34, 1
      %p178 = por %p176, %p177
      %p179 = scmp.ne.s32.totalorder %s170, %s171
      %p180 = scmp.eq.s32.totalorder %s34, 0
      %p181 = por %p179, %p180
      %p182 = scmp.ne.s32.totalorder %s170, %s171
      %p183 = scmp.eq.s32.totalorder %s35, 1
      %p184 = por %p182, %p183
      %p186 = scmp.ne.s32.totalorder %s171, %s185
      %p187 = scmp.eq.s32.totalorder %s35, 0
      %p188 = por %p186, %p187
      %s190 = sadd.s32 %s189, 1
      %p193 = scmp.eq.s32.totalorder %s29, 1
      %p194 = scmp.ne.s32.totalorder %s189, %s191
      %p195 = scmp.eq.s32.totalorder %s29, 0
      %p196 = por %p194, %p195
      %p197 = scmp.ne.s32.totalorder %s189, %s191
      %p198 = scmp.eq.s32.totalorder %s34, 1
      %p199 = por %p197, %p198
      %p200 = scmp.ne.s32.totalorder %s191, %s192
      %p201 = scmp.eq.s32.totalorder %s34, 0
      %p202 = por %p200, %p201
      %p203 = scmp.ne.s32.totalorder %s191, %s192
      %p204 = scmp.eq.s32.totalorder %s35, 1
      %p205 = por %p203, %p204
      %p207 = scmp.ne.s32.totalorder %s192, %s206
      %p208 = scmp.eq.s32.totalorder %s35, 0
      %p209 = por %p207, %p208
      %s211 = sadd.s32 %s210, 1
      %p214 = scmp.eq.s32.totalorder %s29, 1
      %p215 = scmp.ne.s32.totalorder %s210, %s212
      %p216 = scmp.eq.s32.totalorder %s29, 0
      %p217 = por %p215, %p216
      %p218 = scmp.ne.s32.totalorder %s210, %s212
      %p219 = scmp.eq.s32.totalorder %s34, 1
      %p220 = por %p218, %p219
      %p221 = scmp.ne.s32.totalorder %s212, %s213
      %p222 = scmp.eq.s32.totalorder %s34, 0
      %p223 = por %p221, %p222
      %p224 = scmp.ne.s32.totalorder %s212, %s213
      %p225 = scmp.eq.s32.totalorder %s35, 1
      %p226 = por %p224, %p225
      %p228 = scmp.ne.s32.totalorder %s213, %s227
      %p229 = scmp.eq.s32.totalorder %s35, 0
      %p230 = por %p228, %p229
      %s232 = sadd.s32 %s231, 1
      %p235 = scmp.eq.s32.totalorder %s29, 1
      %p236 = scmp.ne.s32.totalorder %s231, %s233
      %p237 = scmp.eq.s32.totalorder %s29, 0
      %p238 = por %p236, %p237
      %p239 = scmp.ne.s32.totalorder %s231, %s233
      %p240 = scmp.eq.s32.totalorder %s34, 1
      %p241 = por %p239, %p240
      %p242 = scmp.ne.s32.totalorder %s233, %s234
      %p243 = scmp.eq.s32.totalorder %s34, 0
      %p244 = por %p242, %p243
      %p245 = scmp.ne.s32.totalorder %s233, %s234
      %p246 = scmp.eq.s32.totalorder %s35, 1
      %p247 = por %p245, %p246
      %p249 = scmp.ne.s32.totalorder %s234, %s248
      %p250 = scmp.eq.s32.totalorder %s35, 0
      %p251 = por %p249, %p250
      %s253 = sadd.s32 %s252, 1
      %p256 = scmp.eq.s32.totalorder %s29, 1
      %p257 = scmp.ne.s32.totalorder %s252, %s254
      %p258 = scmp.eq.s32.totalorder %s29, 0
      %p259 = por %p257, %p258
      %p260 = scmp.ne.s32.totalorder %s252, %s254
      %p261 = scmp.eq.s32.totalorder %s34, 1
      %p262 = por %p260, %p261
      %p263 = scmp.ne.s32.totalorder %s254, %s255
      %p264 = scmp.eq.s32.totalorder %s34, 0
      %p265 = por %p263, %p264
      %p266 = scmp.ne.s32.totalorder %s254, %s255
      %p267 = scmp.eq.s32.totalorder %s35, 1
      %p268 = por %p266, %p267
      %p270 = scmp.ne.s32.totalorder %s255, %s269
      %p271 = scmp.eq.s32.totalorder %s35, 0
      %p272 = por %p270, %p271
      %s274 = sadd.s32 %s273, 1
      %p277 = scmp.eq.s32.totalorder %s29, 1
      %p278 = scmp.ne.s32.totalorder %s273, %s275
      %p279 = scmp.eq.s32.totalorder %s29, 0
      %p280 = por %p278, %p279
      %p281 = scmp.ne.s32.totalorder %s273, %s275
      %p282 = scmp.eq.s32.totalorder %s34, 1
      %p283 = por %p281, %p282
      %p284 = scmp.ne.s32.totalorder %s275, %s276
      %p285 = scmp.eq.s32.totalorder %s34, 0
      %p286 = por %p284, %p285
      %p287 = scmp.ne.s32.totalorder %s275, %s276
      %p288 = scmp.eq.s32.totalorder %s35, 1
      %p289 = por %p287, %p288
      %p291 = scmp.ne.s32.totalorder %s276, %s290
      %p292 = scmp.eq.s32.totalorder %s35, 0
      %p293 = por %p291, %p292
      %s295 = sadd.s32 %s294, 1
      %p298 = scmp.eq.s32.totalorder %s29, 1
      %p299 = scmp.ne.s32.totalorder %s294, %s296
      %p300 = scmp.eq.s32.totalorder %s29, 0
      %p301 = por %p299, %p300
      %p302 = scmp.ne.s32.totalorder %s294, %s296
      %p303 = scmp.eq.s32.totalorder %s34, 1
      %p304 = por %p302, %p303
      %p305 = scmp.ne.s32.totalorder %s296, %s297
      %p306 = scmp.eq.s32.totalorder %s34, 0
      %p307 = por %p305, %p306
      %p308 = scmp.ne.s32.totalorder %s296, %s297
      %p309 = scmp.eq.s32.totalorder %s35, 1
      %p310 = por %p308, %p309
      %p312 = scmp.ne.s32.totalorder %s297, %s311
      %p313 = scmp.eq.s32.totalorder %s35, 0
      %p314 = por %p312, %p313
      %s315 = ssub.s32 %s29, %s36
      %p316 = scmp.eq.s32.totalorder %s315, 0
      %s318 = sadd.s32 %s317, 1
      %s319 = scalar_select %p316, %s317, %s318
      %p322 = pneg %p316
      %p323 = scmp.eq.s32.totalorder %s29, 1
      %p324 = por %p322, %p323
      %p325 = scmp.ne.s32.totalorder %s317, %s320
      %p326 = scmp.eq.s32.totalorder %s29, 0
      %p327 = por %p325, %p326
      %p328 = scmp.ne.s32.totalorder %s317, %s320
      %p329 = scmp.eq.s32.totalorder %s34, 1
      %p330 = por %p328, %p329
      %p331 = scmp.ne.s32.totalorder %s320, %s321
      %p332 = scmp.eq.s32.totalorder %s34, 0
      %p333 = por %p331, %p332
      %p334 = scmp.ne.s32.totalorder %s320, %s321
      %p335 = scmp.eq.s32.totalorder %s35, 1
      %p336 = por %p334, %p335
      %p338 = scmp.ne.s32.totalorder %s321, %s337
      %p339 = scmp.eq.s32.totalorder %s35, 0
      %p340 = por %p338, %p339
      %p341 = scmp.le.s32.totalorder 1, %s29
      %p342 = scmp.lt.s32.totalorder %s29, 3
      %p343 = pnand %p341, %p342
      %p344 = pneg %p343
      // Predicated region
      $region9: #{tpu_custom_call.1} parent=5 // pred_check
        _
      $region10: #{tpu_custom_call.1} parent=5 // pred_check_branch
        %346 = sbr.rel (%p343) target = $region12
      $region11: #{tpu_custom_call.1} parent=5 // pred_region
        %s347 = ssub.s32 %s29, 1
        // Predicated region
        $region13: #{tpu_custom_call.1} parent=11 // pred_check
          %p348 = pneg %p76
        $region14: #{tpu_custom_call.1} parent=11 // pred_check_branch
          %350 = sbr.rel (%p348) target = $region16
        $region15: #{tpu_custom_call.1} parent=11 // pred_region
          %352 = vsyncadd [#allocation6], 0
          %s354 = sshll.u32 %s1, 4
          %s355 = int_to_ptr.hbm [resolvable:$true] %s354
          %s356 = sshll.u32 [#allocation5], 4
          %s357 = int_to_ptr.vmem [resolvable:$true] %s356
          %359 = dma.hbm_to_vmem [thread:$0]  %s355, 32, %s357, [#allocation6]
        $region16: #{tpu_custom_call.1} parent=11 // pred_fallthru
          _
        // Predicated region
        $region17: #{tpu_custom_call.1} parent=11 // pred_check
          %p360 = pneg %p97
        $region18: #{tpu_custom_call.1} parent=11 // pred_check_branch
          %362 = sbr.rel (%p360) target = $region20
        $region19: #{tpu_custom_call.1} parent=11 // pred_region
          %364 = vsyncadd [#allocation6], 0
          %s366 = sshll.u32 %s2, 4
          %s367 = int_to_ptr.hbm [resolvable:$true] %s366
          %s368 = sshll.u32 [#allocation7], 4
          %s369 = int_to_ptr.vmem [resolvable:$true] %s368
          %371 = dma.hbm_to_vmem [thread:$0]  %s367, 32, %s369, [#allocation6]
        $region20: #{tpu_custom_call.1} parent=11 // pred_fallthru
          _
        // Predicated region
        $region21: #{tpu_custom_call.1} parent=11 // pred_check
          %p372 = pneg %p118
        $region22: #{tpu_custom_call.1} parent=11 // pred_check_branch
          %374 = sbr.rel (%p372) target = $region24
        $region23: #{tpu_custom_call.1} parent=11 // pred_region
          %376 = vsyncadd [#allocation9], 0
          %s377 = sshll.u32 %s3, 4
          %s378 = int_to_ptr.hbm [resolvable:$true] %s377
          %s379 = sshll.u32 [#allocation8], 4
          %s380 = int_to_ptr.vmem [resolvable:$true] %s379
          %385 = dma.hbm_to_vmem [thread:$0]  %s378, 24576, %s380, [#allocation9], 768, 768, 48
        $region24: #{tpu_custom_call.1} parent=11 // pred_fallthru
          _
        // Predicated region
        $region25: #{tpu_custom_call.1} parent=11 // pred_check
          %p386 = pneg %p139
        $region26: #{tpu_custom_call.1} parent=11 // pred_check_branch
          %388 = sbr.rel (%p386) target = $region28
        $region27: #{tpu_custom_call.1} parent=11 // pred_region
          %390 = vsyncadd [#allocation9], 0
          %s392 = sshll.u32 %s4, 4
          %s393 = int_to_ptr.hbm [resolvable:$true] %s392
          %s394 = sshll.u32 [#allocation10], 4
          %s395 = int_to_ptr.vmem [resolvable:$true] %s394
          %397 = dma.hbm_to_vmem [thread:$0]  %s393, 96, %s395, [#allocation9]
        $region28: #{tpu_custom_call.1} parent=11 // pred_fallthru
          _
        // Predicated region
        $region29: #{tpu_custom_call.1} parent=11 // pred_check
          %p398 = pneg %p160
        $region30: #{tpu_custom_call.1} parent=11 // pred_check_branch
          %400 = sbr.rel (%p398) target = $region32
        $region31: #{tpu_custom_call.1} parent=11 // pred_region
          %402 = vsyncadd [#allocation12], 0
          %s403 = sshll.u32 %s5, 4
          %s404 = int_to_ptr.hbm [resolvable:$true] %s403
          %s405 = sshll.u32 [#allocation11], 4
          %s406 = int_to_ptr.vmem [resolvable:$true] %s405
          %411 = dma.hbm_to_vmem [thread:$0]  %s404, 8192, %s406, [#allocation12], 256, 256, 16
        $region32: #{tpu_custom_call.1} parent=11 // pred_fallthru
          _
        // Predicated region
        $region33: #{tpu_custom_call.1} parent=11 // pred_check
          %p412 = pneg %p181
        $region34: #{tpu_custom_call.1} parent=11 // pred_check_branch
          %414 = sbr.rel (%p412) target = $region36
        $region35: #{tpu_custom_call.1} parent=11 // pred_region
          _
        $region36: #{tpu_custom_call.1} parent=11 // pred_fallthru
          _
        // Predicated region
        $region37: #{tpu_custom_call.1} parent=11 // pred_check
          %p415 = pneg %p202
        $region38: #{tpu_custom_call.1} parent=11 // pred_check_branch
          %417 = sbr.rel (%p415) target = $region40
        $region39: #{tpu_custom_call.1} parent=11 // pred_region
          _
        $region40: #{tpu_custom_call.1} parent=11 // pred_fallthru
          _
        // Predicated region
        $region41: #{tpu_custom_call.1} parent=11 // pred_check
          %p418 = pneg %p223
        $region42: #{tpu_custom_call.1} parent=11 // pred_check_branch
          %420 = sbr.rel (%p418) target = $region44
        $region43: #{tpu_custom_call.1} parent=11 // pred_region
          _
        $region44: #{tpu_custom_call.1} parent=11 // pred_fallthru
          _
        // Predicated region
        $region45: #{tpu_custom_call.1} parent=11 // pred_check
          %p421 = pneg %p244
        $region46: #{tpu_custom_call.1} parent=11 // pred_check_branch
          %423 = sbr.rel (%p421) target = $region48
        $region47: #{tpu_custom_call.1} parent=11 // pred_region
          %425 = vsyncadd [#allocation12], 0
          %s426 = sshll.u32 %s9, 4
          %s427 = int_to_ptr.hbm [resolvable:$true] %s426
          %s428 = sshll.u32 [#allocation13], 4
          %s429 = int_to_ptr.vmem [resolvable:$true] %s428
          %434 = dma.hbm_to_vmem [thread:$0]  %s427, 8192, %s429, [#allocation12], 256, 256, 16
        $region48: #{tpu_custom_call.1} parent=11 // pred_fallthru
          _
        // Predicated region
        $region49: #{tpu_custom_call.1} parent=11 // pred_check
          %p435 = pneg %p265
        $region50: #{tpu_custom_call.1} parent=11 // pred_check_branch
          %437 = sbr.rel (%p435) target = $region52
        $region51: #{tpu_custom_call.1} parent=11 // pred_region
          _
        $region52: #{tpu_custom_call.1} parent=11 // pred_fallthru
          _
        // Predicated region
        $region53: #{tpu_custom_call.1} parent=11 // pred_check
          %p438 = pneg %p286
        $region54: #{tpu_custom_call.1} parent=11 // pred_check_branch
          %440 = sbr.rel (%p438) target = $region56
        $region55: #{tpu_custom_call.1} parent=11 // pred_region
          %442 = vsyncadd [#allocation15], 0
          %s443 = sshll.u32 %s11, 4
          %s444 = int_to_ptr.hbm [resolvable:$true] %s443
          %s445 = sshll.u32 [#allocation14], 4
          %s446 = int_to_ptr.vmem [resolvable:$true] %s445
          %451 = dma.hbm_to_vmem [thread:$0]  %s444, 8192, %s446, [#allocation15], 256, 256, 16
        $region56: #{tpu_custom_call.1} parent=11 // pred_fallthru
          _
        // Predicated region
        $region57: #{tpu_custom_call.1} parent=11 // pred_check
          %p452 = pneg %p307
        $region58: #{tpu_custom_call.1} parent=11 // pred_check_branch
          %454 = sbr.rel (%p452) target = $region60
        $region59: #{tpu_custom_call.1} parent=11 // pred_region
          _
        $region60: #{tpu_custom_call.1} parent=11 // pred_fallthru
          _
      $region12: #{tpu_custom_call.1} parent=5 // pred_fallthru
        _
      %p455 = scmp.lt.s32.totalorder %s29, 2
      // Predicated region
      $region61: #{tpu_custom_call.1} parent=5 // pred_check
        %p456 = pneg %p455
      $region62: #{tpu_custom_call.1} parent=5 // pred_check_branch
        %458 = sbr.rel (%p456) target = $region64
      $region63: #{tpu_custom_call.1} parent=5 // pred_region
        // Predicated region
        $region65: #{tpu_custom_call.1} parent=63 // pred_check
          %p459 = pneg %p49
        $region66: #{tpu_custom_call.1} parent=63 // pred_check_branch
          %461 = sbr.rel (%p459) target = $region68
        $region67: #{tpu_custom_call.1} parent=63 // pred_region
          %s462 = sand.u32 %s39, 1
          %s463 = scalar_lea.sflag [#allocation3], %s462
          %s464 = sand.u32 %s39, 1
          %s465 = smul.addr %s464, 128
          %s466 = scalar_lea.vmem [#allocation2], %s465
          %s467 = smul.u32 8, %s29
          %469 = vsyncadd %s463, 0
          %s470 = smul.addr %s467, 2
          %s471 = smul.addr %s470, 8
          %s472 = scalar_lea.hbm %s0, %s471
          %s473 = sshll.u32 %s472, 4
          %s474 = int_to_ptr.hbm [resolvable:$true] %s473
          %s475 = sshll.u32 %s466, 4
          %s476 = int_to_ptr.vmem [resolvable:$true] %s475
          %481 = dma.hbm_to_vmem [thread:$0]  %s474, 2048, %s476, %s463, 256, 256, 16
        $region68: #{tpu_custom_call.1} parent=63 // pred_fallthru
          _
      $region64: #{tpu_custom_call.1} parent=5 // pred_fallthru
        _
      %p482 = scmp.le.s32.totalorder 1, %s29
      %p483 = scmp.lt.s32.totalorder %s29, 3
      %p484 = pnand %p482, %p483
      %p485 = pneg %p484
      // Predicated region
      $region69: #{tpu_custom_call.1} parent=5 // pred_check
        _
      $region70: #{tpu_custom_call.1} parent=5 // pred_check_branch
        %487 = sbr.rel (%p484) target = $region72
      $region71: #{tpu_custom_call.1} parent=5 // pred_region
        %s488 = ssub.s32 %s29, 1
        %s489 = sand.u32 %s42, 1
        %s490 = scalar_lea.sflag [#allocation3], %s489
        %s491 = sand.u32 %s42, 1
        %s492 = smul.addr %s491, 128
        %s493 = scalar_lea.vmem [#allocation2], %s492
        // Predicated region
        $region73: #{tpu_custom_call.1} parent=71 // pred_check
          %p494 = pneg %p55
        $region74: #{tpu_custom_call.1} parent=71 // pred_check_branch
          %496 = sbr.rel (%p494) target = $region76
        $region75: #{tpu_custom_call.1} parent=71 // pred_region
          %498 = dma.done %s490, 2048
        $region76: #{tpu_custom_call.1} parent=71 // pred_fallthru
          _
        // Predicated region
        $region77: #{tpu_custom_call.1} parent=71 // pred_check
          %p499 = pneg %p76
        $region78: #{tpu_custom_call.1} parent=71 // pred_check_branch
          %501 = sbr.rel (%p499) target = $region80
        $region79: #{tpu_custom_call.1} parent=71 // pred_region
          %503 = dma.done [#allocation6], 32
        $region80: #{tpu_custom_call.1} parent=71 // pred_fallthru
          _
        // Predicated region
        $region81: #{tpu_custom_call.1} parent=71 // pred_check
          %p504 = pneg %p97
        $region82: #{tpu_custom_call.1} parent=71 // pred_check_branch
          %506 = sbr.rel (%p504) target = $region84
        $region83: #{tpu_custom_call.1} parent=71 // pred_region
          %508 = dma.done [#allocation6], 32
        $region84: #{tpu_custom_call.1} parent=71 // pred_fallthru
          _
        // Predicated region
        $region85: #{tpu_custom_call.1} parent=71 // pred_check
          %p509 = pneg %p118
        $region86: #{tpu_custom_call.1} parent=71 // pred_check_branch
          %511 = sbr.rel (%p509) target = $region88
        $region87: #{tpu_custom_call.1} parent=71 // pred_region
          %513 = dma.done [#allocation9], 24576
        $region88: #{tpu_custom_call.1} parent=71 // pred_fallthru
          _
        // Predicated region
        $region89: #{tpu_custom_call.1} parent=71 // pred_check
          %p514 = pneg %p139
        $region90: #{tpu_custom_call.1} parent=71 // pred_check_branch
          %516 = sbr.rel (%p514) target = $region92
        $region91: #{tpu_custom_call.1} parent=71 // pred_region
          %518 = dma.done [#allocation9], 96
        $region92: #{tpu_custom_call.1} parent=71 // pred_fallthru
          _
        // Predicated region
        $region93: #{tpu_custom_call.1} parent=71 // pred_check
          %p519 = pneg %p160
        $region94: #{tpu_custom_call.1} parent=71 // pred_check_branch
          %521 = sbr.rel (%p519) target = $region96
        $region95: #{tpu_custom_call.1} parent=71 // pred_region
          %523 = dma.done [#allocation12], 8192
        $region96: #{tpu_custom_call.1} parent=71 // pred_fallthru
          _
        // Predicated region
        $region97: #{tpu_custom_call.1} parent=71 // pred_check
          %p524 = pneg %p244
        $region98: #{tpu_custom_call.1} parent=71 // pred_check_branch
          %526 = sbr.rel (%p524) target = $region100
        $region99: #{tpu_custom_call.1} parent=71 // pred_region
          %528 = dma.done [#allocation12], 8192
        $region100: #{tpu_custom_call.1} parent=71 // pred_fallthru
          _
        // Predicated region
        $region101: #{tpu_custom_call.1} parent=71 // pred_check
          %p529 = pneg %p286
        $region102: #{tpu_custom_call.1} parent=71 // pred_check_branch
          %531 = sbr.rel (%p529) target = $region104
        $region103: #{tpu_custom_call.1} parent=71 // pred_region
          %533 = dma.done [#allocation15], 8192
        $region104: #{tpu_custom_call.1} parent=71 // pred_fallthru
          _
        %s534 = sand.u32 %s42, 1
        %s535 = scalar_lea.sflag [#allocation3], %s534
        %s536 = sand.u32 %s42, 1
        %s537 = smul.addr %s536, 128
        %s538 = scalar_lea.vmem [#allocation2], %s537
        %p539 = pneg %p55
        %p540 = pneg %p52
        %p541 = pneg %p76
        %p542 = pneg %p73
        %p543 = pneg %p97
        %p544 = pneg %p94
        %p545 = pneg %p118
        %p546 = pneg %p115
        %p547 = pneg %p139
        %p548 = pneg %p136
        %p549 = pneg %p160
        %p550 = pneg %p157
        %p551 = pneg %p181
        %p552 = pneg %p178
        %p553 = pneg %p202
        %p554 = pneg %p199
        %p555 = pneg %p223
        %p556 = pneg %p220
        %p557 = pneg %p244
        %p558 = pneg %p241
        %p559 = pneg %p265
        %p560 = pneg %p262
        %p561 = pneg %p286
        %p562 = pneg %p283
        %p563 = pneg %p307
        %p564 = pneg %p304
        %p565 = pneg %p333
        %p566 = pneg %p330
        %s567 = sand.u32 %s320, 1
        %s568 = scalar_lea.sflag [#allocation4], %s567
        %s569 = sand.u32 %s320, 1
        %s570 = smul.addr %s569, 128
        %s571 = scalar_lea.vmem [#allocation16], %s570
        %s572 = smul.u32 8, %s34
        %s573 = smul.u32 8, %s34
        %v574 = vld [vmem:[%s493] sm:$0xff]
        %v575 = vld [vmem:[%s493 + $0x8] sm:$0xff]
        %v576 = vld [vmem:[%s493 + $0x10] sm:$0xff]
        %v577 = vld [vmem:[%s493 + $0x18] sm:$0xff]
        %v578 = vld [vmem:[%s493 + $0x20] sm:$0xff]
        %v579 = vld [vmem:[%s493 + $0x28] sm:$0xff]
        %v580 = vld [vmem:[%s493 + $0x30] sm:$0xff]
        %v581 = vld [vmem:[%s493 + $0x38] sm:$0xff]
        %v582 = vld [vmem:[%s493 + $0x40] sm:$0xff]
        %v583 = vld [vmem:[%s493 + $0x48] sm:$0xff]
        %v584 = vld [vmem:[%s493 + $0x50] sm:$0xff]
        %v585 = vld [vmem:[%s493 + $0x58] sm:$0xff]
        %v586 = vld [vmem:[%s493 + $0x60] sm:$0xff]
        %v587 = vld [vmem:[%s493 + $0x68] sm:$0xff]
        %v588 = vld [vmem:[%s493 + $0x70] sm:$0xff]
        %v589 = vld [vmem:[%s493 + $0x78] sm:$0xff]
        %v590 = vld [vmem:[#allocation8] sm:$0xff]
        %v591 = vld [vmem:[#allocation8 + $0x8] sm:$0xff]
        %v592 = vld [vmem:[#allocation8 + $0x10] sm:$0xff]
        %v593 = vld [vmem:[#allocation8 + $0x18] sm:$0xff]
        %v594 = vld [vmem:[#allocation8 + $0x20] sm:$0xff]
        %v595 = vld [vmem:[#allocation8 + $0x28] sm:$0xff]
        %v596 = vld [vmem:[#allocation8 + $0x30] sm:$0xff]
        %v597 = vld [vmem:[#allocation8 + $0x38] sm:$0xff]
        %v598 = vld [vmem:[#allocation8 + $0x40] sm:$0xff]
        %v599 = vld [vmem:[#allocation8 + $0x48] sm:$0xff]
        %v600 = vld [vmem:[#allocation8 + $0x50] sm:$0xff]
        %v601 = vld [vmem:[#allocation8 + $0x58] sm:$0xff]
        %v602 = vld [vmem:[#allocation8 + $0x60] sm:$0xff]
        %v603 = vld [vmem:[#allocation8 + $0x68] sm:$0xff]
        %v604 = vld [vmem:[#allocation8 + $0x70] sm:$0xff]
        %v605 = vld [vmem:[#allocation8 + $0x78] sm:$0xff]
        %v606 = vld [vmem:[#allocation8 + $0x80] sm:$0xff]
        %v607 = vld [vmem:[#allocation8 + $0x88] sm:$0xff]
        %v608 = vld [vmem:[#allocation8 + $0x90] sm:$0xff]
        %v609 = vld [vmem:[#allocation8 + $0x98] sm:$0xff]
        %v610 = vld [vmem:[#allocation8 + $0xa0] sm:$0xff]
        %v611 = vld [vmem:[#allocation8 + $0xa8] sm:$0xff]
        %v612 = vld [vmem:[#allocation8 + $0xb0] sm:$0xff]
        %v613 = vld [vmem:[#allocation8 + $0xb8] sm:$0xff]
        %v614 = vld [vmem:[#allocation8 + $0xc0] sm:$0xff]
        %v615 = vld [vmem:[#allocation8 + $0xc8] sm:$0xff]
        %v616 = vld [vmem:[#allocation8 + $0xd0] sm:$0xff]
        %v617 = vld [vmem:[#allocation8 + $0xd8] sm:$0xff]
        %v618 = vld [vmem:[#allocation8 + $0xe0] sm:$0xff]
        %v619 = vld [vmem:[#allocation8 + $0xe8] sm:$0xff]
        %v620 = vld [vmem:[#allocation8 + $0xf0] sm:$0xff]
        %v621 = vld [vmem:[#allocation8 + $0xf8] sm:$0xff]
        %v622 = vld [vmem:[#allocation8 + $0x100] sm:$0xff]
        %v623 = vld [vmem:[#allocation8 + $0x108] sm:$0xff]
        %v624 = vld [vmem:[#allocation8 + $0x110] sm:$0xff]
        %v625 = vld [vmem:[#allocation8 + $0x118] sm:$0xff]
        %v626 = vld [vmem:[#allocation8 + $0x120] sm:$0xff]
        %v627 = vld [vmem:[#allocation8 + $0x128] sm:$0xff]
        %v628 = vld [vmem:[#allocation8 + $0x130] sm:$0xff]
        %v629 = vld [vmem:[#allocation8 + $0x138] sm:$0xff]
        %v630 = vld [vmem:[#allocation8 + $0x140] sm:$0xff]
        %v631 = vld [vmem:[#allocation8 + $0x148] sm:$0xff]
        %v632 = vld [vmem:[#allocation8 + $0x150] sm:$0xff]
        %v633 = vld [vmem:[#allocation8 + $0x158] sm:$0xff]
        %v634 = vld [vmem:[#allocation8 + $0x160] sm:$0xff]
        %v635 = vld [vmem:[#allocation8 + $0x168] sm:$0xff]
        %v636 = vld [vmem:[#allocation8 + $0x170] sm:$0xff]
        %v637 = vld [vmem:[#allocation8 + $0x178] sm:$0xff]
        %v638 = vld [vmem:[#allocation8 + $0x180] sm:$0xff]
        %v639 = vld [vmem:[#allocation8 + $0x188] sm:$0xff]
        %v640 = vld [vmem:[#allocation8 + $0x190] sm:$0xff]
        %v641 = vld [vmem:[#allocation8 + $0x198] sm:$0xff]
        %v642 = vld [vmem:[#allocation8 + $0x1a0] sm:$0xff]
        %v643 = vld [vmem:[#allocation8 + $0x1a8] sm:$0xff]
        %v644 = vld [vmem:[#allocation8 + $0x1b0] sm:$0xff]
        %v645 = vld [vmem:[#allocation8 + $0x1b8] sm:$0xff]
        %v646 = vld [vmem:[#allocation8 + $0x1c0] sm:$0xff]
        %v647 = vld [vmem:[#allocation8 + $0x1c8] sm:$0xff]
        %v648 = vld [vmem:[#allocation8 + $0x1d0] sm:$0xff]
        %v649 = vld [vmem:[#allocation8 + $0x1d8] sm:$0xff]
        %v650 = vld [vmem:[#allocation8 + $0x1e0] sm:$0xff]
        %v651 = vld [vmem:[#allocation8 + $0x1e8] sm:$0xff]
        %v652 = vld [vmem:[#allocation8 + $0x1f0] sm:$0xff]
        %v653 = vld [vmem:[#allocation8 + $0x1f8] sm:$0xff]
        %v654 = vld [vmem:[#allocation8 + $0x200] sm:$0xff]
        %v655 = vld [vmem:[#allocation8 + $0x208] sm:$0xff]
        %v656 = vld [vmem:[#allocation8 + $0x210] sm:$0xff]
        %v657 = vld [vmem:[#allocation8 + $0x218] sm:$0xff]
        %v658 = vld [vmem:[#allocation8 + $0x220] sm:$0xff]
        %v659 = vld [vmem:[#allocation8 + $0x228] sm:$0xff]
        %v660 = vld [vmem:[#allocation8 + $0x230] sm:$0xff]
        %v661 = vld [vmem:[#allocation8 + $0x238] sm:$0xff]
        %v662 = vld [vmem:[#allocation8 + $0x240] sm:$0xff]
        %v663 = vld [vmem:[#allocation8 + $0x248] sm:$0xff]
        %v664 = vld [vmem:[#allocation8 + $0x250] sm:$0xff]
        %v665 = vld [vmem:[#allocation8 + $0x258] sm:$0xff]
        %v666 = vld [vmem:[#allocation8 + $0x260] sm:$0xff]
        %v667 = vld [vmem:[#allocation8 + $0x268] sm:$0xff]
        %v668 = vld [vmem:[#allocation8 + $0x270] sm:$0xff]
        %v669 = vld [vmem:[#allocation8 + $0x278] sm:$0xff]
        %v670 = vld [vmem:[#allocation8 + $0x280] sm:$0xff]
        %v671 = vld [vmem:[#allocation8 + $0x288] sm:$0xff]
        %v672 = vld [vmem:[#allocation8 + $0x290] sm:$0xff]
        %v673 = vld [vmem:[#allocation8 + $0x298] sm:$0xff]
        %v674 = vld [vmem:[#allocation8 + $0x2a0] sm:$0xff]
        %v675 = vld [vmem:[#allocation8 + $0x2a8] sm:$0xff]
        %v676 = vld [vmem:[#allocation8 + $0x2b0] sm:$0xff]
        %v677 = vld [vmem:[#allocation8 + $0x2b8] sm:$0xff]
        %v678 = vld [vmem:[#allocation8 + $0x2c0] sm:$0xff]
        %v679 = vld [vmem:[#allocation8 + $0x2c8] sm:$0xff]
        %v680 = vld [vmem:[#allocation8 + $0x2d0] sm:$0xff]
        %v681 = vld [vmem:[#allocation8 + $0x2d8] sm:$0xff]
        %v682 = vld [vmem:[#allocation8 + $0x2e0] sm:$0xff]
        %v683 = vld [vmem:[#allocation8 + $0x2e8] sm:$0xff]
        %v684 = vld [vmem:[#allocation8 + $0x2f0] sm:$0xff]
        %v685 = vld [vmem:[#allocation8 + $0x2f8] sm:$0xff]
        %v686 = vld [vmem:[#allocation8 + $0x300] sm:$0xff]
        %v687 = vld [vmem:[#allocation8 + $0x308] sm:$0xff]
        %v688 = vld [vmem:[#allocation8 + $0x310] sm:$0xff]
        %v689 = vld [vmem:[#allocation8 + $0x318] sm:$0xff]
        %v690 = vld [vmem:[#allocation8 + $0x320] sm:$0xff]
        %v691 = vld [vmem:[#allocation8 + $0x328] sm:$0xff]
        %v692 = vld [vmem:[#allocation8 + $0x330] sm:$0xff]
        %v693 = vld [vmem:[#allocation8 + $0x338] sm:$0xff]
        %v694 = vld [vmem:[#allocation8 + $0x340] sm:$0xff]
        %v695 = vld [vmem:[#allocation8 + $0x348] sm:$0xff]
        %v696 = vld [vmem:[#allocation8 + $0x350] sm:$0xff]
        %v697 = vld [vmem:[#allocation8 + $0x358] sm:$0xff]
        %v698 = vld [vmem:[#allocation8 + $0x360] sm:$0xff]
        %v699 = vld [vmem:[#allocation8 + $0x368] sm:$0xff]
        %v700 = vld [vmem:[#allocation8 + $0x370] sm:$0xff]
        %v701 = vld [vmem:[#allocation8 + $0x378] sm:$0xff]
        %v702 = vld [vmem:[#allocation8 + $0x380] sm:$0xff]
        %v703 = vld [vmem:[#allocation8 + $0x388] sm:$0xff]
        %v704 = vld [vmem:[#allocation8 + $0x390] sm:$0xff]
        %v705 = vld [vmem:[#allocation8 + $0x398] sm:$0xff]
        %v706 = vld [vmem:[#allocation8 + $0x3a0] sm:$0xff]
        %v707 = vld [vmem:[#allocation8 + $0x3a8] sm:$0xff]
        %v708 = vld [vmem:[#allocation8 + $0x3b0] sm:$0xff]
        %v709 = vld [vmem:[#allocation8 + $0x3b8] sm:$0xff]
        %v710 = vld [vmem:[#allocation8 + $0x3c0] sm:$0xff]
        %v711 = vld [vmem:[#allocation8 + $0x3c8] sm:$0xff]
        %v712 = vld [vmem:[#allocation8 + $0x3d0] sm:$0xff]
        %v713 = vld [vmem:[#allocation8 + $0x3d8] sm:$0xff]
        %v714 = vld [vmem:[#allocation8 + $0x3e0] sm:$0xff]
        %v715 = vld [vmem:[#allocation8 + $0x3e8] sm:$0xff]
        %v716 = vld [vmem:[#allocation8 + $0x3f0] sm:$0xff]
        %v717 = vld [vmem:[#allocation8 + $0x3f8] sm:$0xff]
        %v718 = vld [vmem:[#allocation8 + $0x400] sm:$0xff]
        %v719 = vld [vmem:[#allocation8 + $0x408] sm:$0xff]
        %v720 = vld [vmem:[#allocation8 + $0x410] sm:$0xff]
        %v721 = vld [vmem:[#allocation8 + $0x418] sm:$0xff]
        %v722 = vld [vmem:[#allocation8 + $0x420] sm:$0xff]
        %v723 = vld [vmem:[#allocation8 + $0x428] sm:$0xff]
        %v724 = vld [vmem:[#allocation8 + $0x430] sm:$0xff]
        %v725 = vld [vmem:[#allocation8 + $0x438] sm:$0xff]
        %v726 = vld [vmem:[#allocation8 + $0x440] sm:$0xff]
        %v727 = vld [vmem:[#allocation8 + $0x448] sm:$0xff]
        %v728 = vld [vmem:[#allocation8 + $0x450] sm:$0xff]
        %v729 = vld [vmem:[#allocation8 + $0x458] sm:$0xff]
        %v730 = vld [vmem:[#allocation8 + $0x460] sm:$0xff]
        %v731 = vld [vmem:[#allocation8 + $0x468] sm:$0xff]
        %v732 = vld [vmem:[#allocation8 + $0x470] sm:$0xff]
        %v733 = vld [vmem:[#allocation8 + $0x478] sm:$0xff]
        %v734 = vld [vmem:[#allocation8 + $0x480] sm:$0xff]
        %v735 = vld [vmem:[#allocation8 + $0x488] sm:$0xff]
        %v736 = vld [vmem:[#allocation8 + $0x490] sm:$0xff]
        %v737 = vld [vmem:[#allocation8 + $0x498] sm:$0xff]
        %v738 = vld [vmem:[#allocation8 + $0x4a0] sm:$0xff]
        %v739 = vld [vmem:[#allocation8 + $0x4a8] sm:$0xff]
        %v740 = vld [vmem:[#allocation8 + $0x4b0] sm:$0xff]
        %v741 = vld [vmem:[#allocation8 + $0x4b8] sm:$0xff]
        %v742 = vld [vmem:[#allocation8 + $0x4c0] sm:$0xff]
        %v743 = vld [vmem:[#allocation8 + $0x4c8] sm:$0xff]
        %v744 = vld [vmem:[#allocation8 + $0x4d0] sm:$0xff]
        %v745 = vld [vmem:[#allocation8 + $0x4d8] sm:$0xff]
        %v746 = vld [vmem:[#allocation8 + $0x4e0] sm:$0xff]
        %v747 = vld [vmem:[#allocation8 + $0x4e8] sm:$0xff]
        %v748 = vld [vmem:[#allocation8 + $0x4f0] sm:$0xff]
        %v749 = vld [vmem:[#allocation8 + $0x4f8] sm:$0xff]
        %v750 = vld [vmem:[#allocation8 + $0x500] sm:$0xff]
        %v751 = vld [vmem:[#allocation8 + $0x508] sm:$0xff]
        %v752 = vld [vmem:[#allocation8 + $0x510] sm:$0xff]
        %v753 = vld [vmem:[#allocation8 + $0x518] sm:$0xff]
        %v754 = vld [vmem:[#allocation8 + $0x520] sm:$0xff]
        %v755 = vld [vmem:[#allocation8 + $0x528] sm:$0xff]
        %v756 = vld [vmem:[#allocation8 + $0x530] sm:$0xff]
        %v757 = vld [vmem:[#allocation8 + $0x538] sm:$0xff]
        %v758 = vld [vmem:[#allocation8 + $0x540] sm:$0xff]
        %v759 = vld [vmem:[#allocation8 + $0x548] sm:$0xff]
        %v760 = vld [vmem:[#allocation8 + $0x550] sm:$0xff]
        %v761 = vld [vmem:[#allocation8 + $0x558] sm:$0xff]
        %v762 = vld [vmem:[#allocation8 + $0x560] sm:$0xff]
        %v763 = vld [vmem:[#allocation8 + $0x568] sm:$0xff]
        %v764 = vld [vmem:[#allocation8 + $0x570] sm:$0xff]
        %v765 = vld [vmem:[#allocation8 + $0x578] sm:$0xff]
        %v766 = vld [vmem:[#allocation8 + $0x580] sm:$0xff]
        %v767 = vld [vmem:[#allocation8 + $0x588] sm:$0xff]
        %v768 = vld [vmem:[#allocation8 + $0x590] sm:$0xff]
        %v769 = vld [vmem:[#allocation8 + $0x598] sm:$0xff]
        %v770 = vld [vmem:[#allocation8 + $0x5a0] sm:$0xff]
        %v771 = vld [vmem:[#allocation8 + $0x5a8] sm:$0xff]
        %v772 = vld [vmem:[#allocation8 + $0x5b0] sm:$0xff]
        %v773 = vld [vmem:[#allocation8 + $0x5b8] sm:$0xff]
        %v774 = vld [vmem:[#allocation8 + $0x5c0] sm:$0xff]
        %v775 = vld [vmem:[#allocation8 + $0x5c8] sm:$0xff]
        %v776 = vld [vmem:[#allocation8 + $0x5d0] sm:$0xff]
        %v777 = vld [vmem:[#allocation8 + $0x5d8] sm:$0xff]
        %v778 = vld [vmem:[#allocation8 + $0x5e0] sm:$0xff]
        %v779 = vld [vmem:[#allocation8 + $0x5e8] sm:$0xff]
        %v780 = vld [vmem:[#allocation8 + $0x5f0] sm:$0xff]
        %v781 = vld [vmem:[#allocation8 + $0x5f8] sm:$0xff]
        %v782 = vld [vmem:[#allocation11] sm:$0xff]
        %v783 = vld [vmem:[#allocation11 + $0x8] sm:$0xff]
        %v784 = vld [vmem:[#allocation11 + $0x10] sm:$0xff]
        %v785 = vld [vmem:[#allocation11 + $0x18] sm:$0xff]
        %v786 = vld [vmem:[#allocation11 + $0x20] sm:$0xff]
        %v787 = vld [vmem:[#allocation11 + $0x28] sm:$0xff]
        %v788 = vld [vmem:[#allocation11 + $0x30] sm:$0xff]
        %v789 = vld [vmem:[#allocation11 + $0x38] sm:$0xff]
        %v790 = vld [vmem:[#allocation11 + $0x40] sm:$0xff]
        %v791 = vld [vmem:[#allocation11 + $0x48] sm:$0xff]
        %v792 = vld [vmem:[#allocation11 + $0x50] sm:$0xff]
        %v793 = vld [vmem:[#allocation11 + $0x58] sm:$0xff]
        %v794 = vld [vmem:[#allocation11 + $0x60] sm:$0xff]
        %v795 = vld [vmem:[#allocation11 + $0x68] sm:$0xff]
        %v796 = vld [vmem:[#allocation11 + $0x70] sm:$0xff]
        %v797 = vld [vmem:[#allocation11 + $0x78] sm:$0xff]
        %v798 = vld [vmem:[#allocation11 + $0x80] sm:$0xff]
        %v799 = vld [vmem:[#allocation11 + $0x88] sm:$0xff]
        %v800 = vld [vmem:[#allocation11 + $0x90] sm:$0xff]
        %v801 = vld [vmem:[#allocation11 + $0x98] sm:$0xff]
        %v802 = vld [vmem:[#allocation11 + $0xa0] sm:$0xff]
        %v803 = vld [vmem:[#allocation11 + $0xa8] sm:$0xff]
        %v804 = vld [vmem:[#allocation11 + $0xb0] sm:$0xff]
        %v805 = vld [vmem:[#allocation11 + $0xb8] sm:$0xff]
        %v806 = vld [vmem:[#allocation11 + $0xc0] sm:$0xff]
        %v807 = vld [vmem:[#allocation11 + $0xc8] sm:$0xff]
        %v808 = vld [vmem:[#allocation11 + $0xd0] sm:$0xff]
        %v809 = vld [vmem:[#allocation11 + $0xd8] sm:$0xff]
        %v810 = vld [vmem:[#allocation11 + $0xe0] sm:$0xff]
        %v811 = vld [vmem:[#allocation11 + $0xe8] sm:$0xff]
        %v812 = vld [vmem:[#allocation11 + $0xf0] sm:$0xff]
        %v813 = vld [vmem:[#allocation11 + $0xf8] sm:$0xff]
        %v814 = vld [vmem:[#allocation11 + $0x100] sm:$0xff]
        %v815 = vld [vmem:[#allocation11 + $0x108] sm:$0xff]
        %v816 = vld [vmem:[#allocation11 + $0x110] sm:$0xff]
        %v817 = vld [vmem:[#allocation11 + $0x118] sm:$0xff]
        %v818 = vld [vmem:[#allocation11 + $0x120] sm:$0xff]
        %v819 = vld [vmem:[#allocation11 + $0x128] sm:$0xff]
        %v820 = vld [vmem:[#allocation11 + $0x130] sm:$0xff]
        %v821 = vld [vmem:[#allocation11 + $0x138] sm:$0xff]
        %v822 = vld [vmem:[#allocation11 + $0x140] sm:$0xff]
        %v823 = vld [vmem:[#allocation11 + $0x148] sm:$0xff]
        %v824 = vld [vmem:[#allocation11 + $0x150] sm:$0xff]
        %v825 = vld [vmem:[#allocation11 + $0x158] sm:$0xff]
        %v826 = vld [vmem:[#allocation11 + $0x160] sm:$0xff]
        %v827 = vld [vmem:[#allocation11 + $0x168] sm:$0xff]
        %v828 = vld [vmem:[#allocation11 + $0x170] sm:$0xff]
        %v829 = vld [vmem:[#allocation11 + $0x178] sm:$0xff]
        %v830 = vld [vmem:[#allocation11 + $0x180] sm:$0xff]
        %v831 = vld [vmem:[#allocation11 + $0x188] sm:$0xff]
        %v832 = vld [vmem:[#allocation11 + $0x190] sm:$0xff]
        %v833 = vld [vmem:[#allocation11 + $0x198] sm:$0xff]
        %v834 = vld [vmem:[#allocation11 + $0x1a0] sm:$0xff]
        %v835 = vld [vmem:[#allocation11 + $0x1a8] sm:$0xff]
        %v836 = vld [vmem:[#allocation11 + $0x1b0] sm:$0xff]
        %v837 = vld [vmem:[#allocation11 + $0x1b8] sm:$0xff]
        %v838 = vld [vmem:[#allocation11 + $0x1c0] sm:$0xff]
        %v839 = vld [vmem:[#allocation11 + $0x1c8] sm:$0xff]
        %v840 = vld [vmem:[#allocation11 + $0x1d0] sm:$0xff]
        %v841 = vld [vmem:[#allocation11 + $0x1d8] sm:$0xff]
        %v842 = vld [vmem:[#allocation11 + $0x1e0] sm:$0xff]
        %v843 = vld [vmem:[#allocation11 + $0x1e8] sm:$0xff]
        %v844 = vld [vmem:[#allocation11 + $0x1f0] sm:$0xff]
        %v845 = vld [vmem:[#allocation11 + $0x1f8] sm:$0xff]
        %v846 = vld [vmem:[#allocation13] sm:$0xff]
        %v847 = vld [vmem:[#allocation13 + $0x8] sm:$0xff]
        %v848 = vld [vmem:[#allocation13 + $0x10] sm:$0xff]
        %v849 = vld [vmem:[#allocation13 + $0x18] sm:$0xff]
        %v850 = vld [vmem:[#allocation13 + $0x20] sm:$0xff]
        %v851 = vld [vmem:[#allocation13 + $0x28] sm:$0xff]
        %v852 = vld [vmem:[#allocation13 + $0x30] sm:$0xff]
        %v853 = vld [vmem:[#allocation13 + $0x38] sm:$0xff]
        %v854 = vld [vmem:[#allocation13 + $0x40] sm:$0xff]
        %v855 = vld [vmem:[#allocation13 + $0x48] sm:$0xff]
        %v856 = vld [vmem:[#allocation13 + $0x50] sm:$0xff]
        %v857 = vld [vmem:[#allocation13 + $0x58] sm:$0xff]
        %v858 = vld [vmem:[#allocation13 + $0x60] sm:$0xff]
        %v859 = vld [vmem:[#allocation13 + $0x68] sm:$0xff]
        %v860 = vld [vmem:[#allocation13 + $0x70] sm:$0xff]
        %v861 = vld [vmem:[#allocation13 + $0x78] sm:$0xff]
        %v862 = vld [vmem:[#allocation13 + $0x80] sm:$0xff]
        %v863 = vld [vmem:[#allocation13 + $0x88] sm:$0xff]
        %v864 = vld [vmem:[#allocation13 + $0x90] sm:$0xff]
        %v865 = vld [vmem:[#allocation13 + $0x98] sm:$0xff]
        %v866 = vld [vmem:[#allocation13 + $0xa0] sm:$0xff]
        %v867 = vld [vmem:[#allocation13 + $0xa8] sm:$0xff]
        %v868 = vld [vmem:[#allocation13 + $0xb0] sm:$0xff]
        %v869 = vld [vmem:[#allocation13 + $0xb8] sm:$0xff]
        %v870 = vld [vmem:[#allocation13 + $0xc0] sm:$0xff]
        %v871 = vld [vmem:[#allocation13 + $0xc8] sm:$0xff]
        %v872 = vld [vmem:[#allocation13 + $0xd0] sm:$0xff]
        %v873 = vld [vmem:[#allocation13 + $0xd8] sm:$0xff]
        %v874 = vld [vmem:[#allocation13 + $0xe0] sm:$0xff]
        %v875 = vld [vmem:[#allocation13 + $0xe8] sm:$0xff]
        %v876 = vld [vmem:[#allocation13 + $0xf0] sm:$0xff]
        %v877 = vld [vmem:[#allocation13 + $0xf8] sm:$0xff]
        %v878 = vld [vmem:[#allocation13 + $0x100] sm:$0xff]
        %v879 = vld [vmem:[#allocation13 + $0x108] sm:$0xff]
        %v880 = vld [vmem:[#allocation13 + $0x110] sm:$0xff]
        %v881 = vld [vmem:[#allocation13 + $0x118] sm:$0xff]
        %v882 = vld [vmem:[#allocation13 + $0x120] sm:$0xff]
        %v883 = vld [vmem:[#allocation13 + $0x128] sm:$0xff]
        %v884 = vld [vmem:[#allocation13 + $0x130] sm:$0xff]
        %v885 = vld [vmem:[#allocation13 + $0x138] sm:$0xff]
        %v886 = vld [vmem:[#allocation13 + $0x140] sm:$0xff]
        %v887 = vld [vmem:[#allocation13 + $0x148] sm:$0xff]
        %v888 = vld [vmem:[#allocation13 + $0x150] sm:$0xff]
        %v889 = vld [vmem:[#allocation13 + $0x158] sm:$0xff]
        %v890 = vld [vmem:[#allocation13 + $0x160] sm:$0xff]
        %v891 = vld [vmem:[#allocation13 + $0x168] sm:$0xff]
        %v892 = vld [vmem:[#allocation13 + $0x170] sm:$0xff]
        %v893 = vld [vmem:[#allocation13 + $0x178] sm:$0xff]
        %v894 = vld [vmem:[#allocation13 + $0x180] sm:$0xff]
        %v895 = vld [vmem:[#allocation13 + $0x188] sm:$0xff]
        %v896 = vld [vmem:[#allocation13 + $0x190] sm:$0xff]
        %v897 = vld [vmem:[#allocation13 + $0x198] sm:$0xff]
        %v898 = vld [vmem:[#allocation13 + $0x1a0] sm:$0xff]
        %v899 = vld [vmem:[#allocation13 + $0x1a8] sm:$0xff]
        %v900 = vld [vmem:[#allocation13 + $0x1b0] sm:$0xff]
        %v901 = vld [vmem:[#allocation13 + $0x1b8] sm:$0xff]
        %v902 = vld [vmem:[#allocation13 + $0x1c0] sm:$0xff]
        %v903 = vld [vmem:[#allocation13 + $0x1c8] sm:$0xff]
        %v904 = vld [vmem:[#allocation13 + $0x1d0] sm:$0xff]
        %v905 = vld [vmem:[#allocation13 + $0x1d8] sm:$0xff]
        %v906 = vld [vmem:[#allocation13 + $0x1e0] sm:$0xff]
        %v907 = vld [vmem:[#allocation13 + $0x1e8] sm:$0xff]
        %v908 = vld [vmem:[#allocation13 + $0x1f0] sm:$0xff]
        %v909 = vld [vmem:[#allocation13 + $0x1f8] sm:$0xff]
        %v910 = vld [vmem:[#allocation14] sm:$0xff]
        %v911 = vld [vmem:[#allocation14 + $0x8] sm:$0xff]
        %v912 = vld [vmem:[#allocation14 + $0x10] sm:$0xff]
        %v913 = vld [vmem:[#allocation14 + $0x18] sm:$0xff]
        %v914 = vld [vmem:[#allocation14 + $0x20] sm:$0xff]
        %v915 = vld [vmem:[#allocation14 + $0x28] sm:$0xff]
        %v916 = vld [vmem:[#allocation14 + $0x30] sm:$0xff]
        %v917 = vld [vmem:[#allocation14 + $0x38] sm:$0xff]
        %v918 = vld [vmem:[#allocation14 + $0x40] sm:$0xff]
        %v919 = vld [vmem:[#allocation14 + $0x48] sm:$0xff]
        %v920 = vld [vmem:[#allocation14 + $0x50] sm:$0xff]
        %v921 = vld [vmem:[#allocation14 + $0x58] sm:$0xff]
        %v922 = vld [vmem:[#allocation14 + $0x60] sm:$0xff]
        %v923 = vld [vmem:[#allocation14 + $0x68] sm:$0xff]
        %v924 = vld [vmem:[#allocation14 + $0x70] sm:$0xff]
        %v925 = vld [vmem:[#allocation14 + $0x78] sm:$0xff]
        %v926 = vld [vmem:[#allocation14 + $0x80] sm:$0xff]
        %v927 = vld [vmem:[#allocation14 + $0x88] sm:$0xff]
        %v928 = vld [vmem:[#allocation14 + $0x90] sm:$0xff]
        %v929 = vld [vmem:[#allocation14 + $0x98] sm:$0xff]
        %v930 = vld [vmem:[#allocation14 + $0xa0] sm:$0xff]
        %v931 = vld [vmem:[#allocation14 + $0xa8] sm:$0xff]
        %v932 = vld [vmem:[#allocation14 + $0xb0] sm:$0xff]
        %v933 = vld [vmem:[#allocation14 + $0xb8] sm:$0xff]
        %v934 = vld [vmem:[#allocation14 + $0xc0] sm:$0xff]
        %v935 = vld [vmem:[#allocation14 + $0xc8] sm:$0xff]
        %v936 = vld [vmem:[#allocation14 + $0xd0] sm:$0xff]
        %v937 = vld [vmem:[#allocation14 + $0xd8] sm:$0xff]
        %v938 = vld [vmem:[#allocation14 + $0xe0] sm:$0xff]
        %v939 = vld [vmem:[#allocation14 + $0xe8] sm:$0xff]
        %v940 = vld [vmem:[#allocation14 + $0xf0] sm:$0xff]
        %v941 = vld [vmem:[#allocation14 + $0xf8] sm:$0xff]
        %v942 = vld [vmem:[#allocation14 + $0x100] sm:$0xff]
        %v943 = vld [vmem:[#allocation14 + $0x108] sm:$0xff]
        %v944 = vld [vmem:[#allocation14 + $0x110] sm:$0xff]
        %v945 = vld [vmem:[#allocation14 + $0x118] sm:$0xff]
        %v946 = vld [vmem:[#allocation14 + $0x120] sm:$0xff]
        %v947 = vld [vmem:[#allocation14 + $0x128] sm:$0xff]
        %v948 = vld [vmem:[#allocation14 + $0x130] sm:$0xff]
        %v949 = vld [vmem:[#allocation14 + $0x138] sm:$0xff]
        %v950 = vld [vmem:[#allocation14 + $0x140] sm:$0xff]
        %v951 = vld [vmem:[#allocation14 + $0x148] sm:$0xff]
        %v952 = vld [vmem:[#allocation14 + $0x150] sm:$0xff]
        %v953 = vld [vmem:[#allocation14 + $0x158] sm:$0xff]
        %v954 = vld [vmem:[#allocation14 + $0x160] sm:$0xff]
        %v955 = vld [vmem:[#allocation14 + $0x168] sm:$0xff]
        %v956 = vld [vmem:[#allocation14 + $0x170] sm:$0xff]
        %v957 = vld [vmem:[#allocation14 + $0x178] sm:$0xff]
        %v958 = vld [vmem:[#allocation14 + $0x180] sm:$0xff]
        %v959 = vld [vmem:[#allocation14 + $0x188] sm:$0xff]
        %v960 = vld [vmem:[#allocation14 + $0x190] sm:$0xff]
        %v961 = vld [vmem:[#allocation14 + $0x198] sm:$0xff]
        %v962 = vld [vmem:[#allocation14 + $0x1a0] sm:$0xff]
        %v963 = vld [vmem:[#allocation14 + $0x1a8] sm:$0xff]
        %v964 = vld [vmem:[#allocation14 + $0x1b0] sm:$0xff]
        %v965 = vld [vmem:[#allocation14 + $0x1b8] sm:$0xff]
        %v966 = vld [vmem:[#allocation14 + $0x1c0] sm:$0xff]
        %v967 = vld [vmem:[#allocation14 + $0x1c8] sm:$0xff]
        %v968 = vld [vmem:[#allocation14 + $0x1d0] sm:$0xff]
        %v969 = vld [vmem:[#allocation14 + $0x1d8] sm:$0xff]
        %v970 = vld [vmem:[#allocation14 + $0x1e0] sm:$0xff]
        %v971 = vld [vmem:[#allocation14 + $0x1e8] sm:$0xff]
        %v972 = vld [vmem:[#allocation14 + $0x1f0] sm:$0xff]
        %v973 = vld [vmem:[#allocation14 + $0x1f8] sm:$0xff]
        %v974 = vld [vmem:[#allocation5] sm:$0x3]
        %v975 = vld [vmem:[#allocation7] sm:$0x3]
        %v976 = vadd.f32 %v574, %v575
        %977 = vadd.xlane.f32.xlu0 %v976
        %v978 = vpop.xlane.xlu0 %977
        %v979 = vadd.f32 %v576, %v577
        %980 = vadd.xlane.f32.xlu0 %v979
        %v981 = vpop.xlane.xlu0 %980
        %v982 = vadd.f32 %v578, %v579
        %983 = vadd.xlane.f32.xlu0 %v982
        %v984 = vpop.xlane.xlu0 %983
        %v985 = vadd.f32 %v580, %v581
        %986 = vadd.xlane.f32.xlu0 %v985
        %v987 = vpop.xlane.xlu0 %986
        %v988 = vadd.f32 %v582, %v583
        %989 = vadd.xlane.f32.xlu0 %v988
        %v990 = vpop.xlane.xlu0 %989
        %v991 = vadd.f32 %v584, %v585
        %992 = vadd.xlane.f32.xlu0 %v991
        %v993 = vpop.xlane.xlu0 %992
        %v994 = vadd.f32 %v586, %v587
        %995 = vadd.xlane.f32.xlu0 %v994
        %v996 = vpop.xlane.xlu0 %995
        %v997 = vadd.f32 %v588, %v589
        %998 = vadd.xlane.f32.xlu0 %v997
        %v999 = vpop.xlane.xlu0 %998
        %v1000 = vrcp.pop 256.0
        %v1001 = vmul.f32 256.0, %v1000
        %v1002 = vsub.f32 1.0, %v1001
        %v1003 = vmul.f32 %v1000, %v1002
        %v1004 = vadd.f32 %v1000, %v1003
        %vm1005 = vweird.f32 %v1000
        %v1006 = vsel %vm1005, %v1000, %v1004
        %v1007 = vmul.f32 %v978, %v1006
        %v1008 = vmul.f32 %v981, %v1006
        %v1009 = vmul.f32 %v984, %v1006
        %v1010 = vmul.f32 %v987, %v1006
        %v1011 = vmul.f32 %v990, %v1006
        %v1012 = vmul.f32 %v993, %v1006
        %v1013 = vmul.f32 %v996, %v1006
        %v1014 = vmul.f32 %v999, %v1006
        %v1015 = vsub.f32 %v574, %v1007
        %v1016 = vsub.f32 %v575, %v1007
        %v1017 = vsub.f32 %v576, %v1008
        %v1018 = vsub.f32 %v577, %v1008
        %v1019 = vsub.f32 %v578, %v1009
        %v1020 = vsub.f32 %v579, %v1009
        %v1021 = vsub.f32 %v580, %v1010
        %v1022 = vsub.f32 %v581, %v1010
        %v1023 = vsub.f32 %v582, %v1011
        %v1024 = vsub.f32 %v583, %v1011
        %v1025 = vsub.f32 %v584, %v1012
        %v1026 = vsub.f32 %v585, %v1012
        %v1027 = vsub.f32 %v586, %v1013
        %v1028 = vsub.f32 %v587, %v1013
        %v1029 = vsub.f32 %v588, %v1014
        %v1030 = vsub.f32 %v589, %v1014
        %v1031 = vmul.f32 %v1015, %v1015
        %v1032 = vmul.f32 %v1016, %v1016
        %v1033 = vmul.f32 %v1017, %v1017
        %v1034 = vmul.f32 %v1018, %v1018
        %v1035 = vmul.f32 %v1019, %v1019
        %v1036 = vmul.f32 %v1020, %v1020
        %v1037 = vmul.f32 %v1021, %v1021
        %v1038 = vmul.f32 %v1022, %v1022
        %v1039 = vmul.f32 %v1023, %v1023
        %v1040 = vmul.f32 %v1024, %v1024
        %v1041 = vmul.f32 %v1025, %v1025
        %v1042 = vmul.f32 %v1026, %v1026
        %v1043 = vmul.f32 %v1027, %v1027
        %v1044 = vmul.f32 %v1028, %v1028
        %v1045 = vmul.f32 %v1029, %v1029
        %v1046 = vmul.f32 %v1030, %v1030
        %v1047 = vadd.f32 %v1031, %v1032
        %1048 = vadd.xlane.f32.xlu0 %v1047
        %v1049 = vpop.xlane.xlu0 %1048
        %v1050 = vadd.f32 %v1033, %v1034
        %1051 = vadd.xlane.f32.xlu0 %v1050
        %v1052 = vpop.xlane.xlu0 %1051
        %v1053 = vadd.f32 %v1035, %v1036
        %1054 = vadd.xlane.f32.xlu0 %v1053
        %v1055 = vpop.xlane.xlu0 %1054
        %v1056 = vadd.f32 %v1037, %v1038
        %1057 = vadd.xlane.f32.xlu0 %v1056
        %v1058 = vpop.xlane.xlu0 %1057
        %v1059 = vadd.f32 %v1039, %v1040
        %1060 = vadd.xlane.f32.xlu0 %v1059
        %v1061 = vpop.xlane.xlu0 %1060
        %v1062 = vadd.f32 %v1041, %v1042
        %1063 = vadd.xlane.f32.xlu0 %v1062
        %v1064 = vpop.xlane.xlu0 %1063
        %v1065 = vadd.f32 %v1043, %v1044
        %1066 = vadd.xlane.f32.xlu0 %v1065
        %v1067 = vpop.xlane.xlu0 %1066
        %v1068 = vadd.f32 %v1045, %v1046
        %1069 = vadd.xlane.f32.xlu0 %v1068
        %v1070 = vpop.xlane.xlu0 %1069
        %v1071 = vmul.f32 %v1049, %v1006
        %v1072 = vmul.f32 %v1052, %v1006
        %v1073 = vmul.f32 %v1055, %v1006
        %v1074 = vmul.f32 %v1058, %v1006
        %v1075 = vmul.f32 %v1061, %v1006
        %v1076 = vmul.f32 %v1064, %v1006
        %v1077 = vmul.f32 %v1067, %v1006
        %v1078 = vmul.f32 %v1070, %v1006
        %v1079 = vadd.f32 %v1071, 1e-05
        %v1080 = vadd.f32 %v1072, 1e-05
        %v1081 = vadd.f32 %v1073, 1e-05
        %v1082 = vadd.f32 %v1074, 1e-05
        %v1083 = vadd.f32 %v1075, 1e-05
        %v1084 = vadd.f32 %v1076, 1e-05
        %v1085 = vadd.f32 %v1077, 1e-05
        %v1086 = vadd.f32 %v1078, 1e-05
        %v1087 = vrsqrt.pop %v1079
        %v1088 = vmul.f32 %v1087, %v1079
        %v1089 = vmul.f32 %v1088, %v1087
        %v1090 = vmul.f32 0.5, %v1089
        %v1091 = vsub.f32 1.5, %v1090
        %v1092 = vmul.f32 %v1087, %v1091
        %vm1093 = vweird.f32 %v1079
        %vm1094 = vweird.f32 %v1087
        %vm1095 = vmor %vm1093, %vm1094
        %v1096 = vsel %vm1095, %v1087, %v1092
        %v1097 = vrsqrt.pop %v1080
        %v1098 = vmul.f32 %v1097, %v1080
        %v1099 = vmul.f32 %v1098, %v1097
        %v1100 = vmul.f32 0.5, %v1099
        %v1101 = vsub.f32 1.5, %v1100
        %v1102 = vmul.f32 %v1097, %v1101
        %vm1103 = vweird.f32 %v1080
        %vm1104 = vweird.f32 %v1097
        %vm1105 = vmor %vm1103, %vm1104
        %v1106 = vsel %vm1105, %v1097, %v1102
        %v1107 = vrsqrt.pop %v1081
        %v1108 = vmul.f32 %v1107, %v1081
        %v1109 = vmul.f32 %v1108, %v1107
        %v1110 = vmul.f32 0.5, %v1109
        %v1111 = vsub.f32 1.5, %v1110
        %v1112 = vmul.f32 %v1107, %v1111
        %vm1113 = vweird.f32 %v1081
        %vm1114 = vweird.f32 %v1107
        %vm1115 = vmor %vm1113, %vm1114
        %v1116 = vsel %vm1115, %v1107, %v1112
        %v1117 = vrsqrt.pop %v1082
        %v1118 = vmul.f32 %v1117, %v1082
        %v1119 = vmul.f32 %v1118, %v1117
        %v1120 = vmul.f32 0.5, %v1119
        %v1121 = vsub.f32 1.5, %v1120
        %v1122 = vmul.f32 %v1117, %v1121
        %vm1123 = vweird.f32 %v1082
        %vm1124 = vweird.f32 %v1117
        %vm1125 = vmor %vm1123, %vm1124
        %v1126 = vsel %vm1125, %v1117, %v1122
        %v1127 = vrsqrt.pop %v1083
        %v1128 = vmul.f32 %v1127, %v1083
        %v1129 = vmul.f32 %v1128, %v1127
        %v1130 = vmul.f32 0.5, %v1129
        %v1131 = vsub.f32 1.5, %v1130
        %v1132 = vmul.f32 %v1127, %v1131
        %vm1133 = vweird.f32 %v1083
        %vm1134 = vweird.f32 %v1127
        %vm1135 = vmor %vm1133, %vm1134
        %v1136 = vsel %vm1135, %v1127, %v1132
        %v1137 = vrsqrt.pop %v1084
        %v1138 = vmul.f32 %v1137, %v1084
        %v1139 = vmul.f32 %v1138, %v1137
        %v1140 = vmul.f32 0.5, %v1139
        %v1141 = vsub.f32 1.5, %v1140
        %v1142 = vmul.f32 %v1137, %v1141
        %vm1143 = vweird.f32 %v1084
        %vm1144 = vweird.f32 %v1137
        %vm1145 = vmor %vm1143, %vm1144
        %v1146 = vsel %vm1145, %v1137, %v1142
        %v1147 = vrsqrt.pop %v1085
        %v1148 = vmul.f32 %v1147, %v1085
        %v1149 = vmul.f32 %v1148, %v1147
        %v1150 = vmul.f32 0.5, %v1149
        %v1151 = vsub.f32 1.5, %v1150
        %v1152 = vmul.f32 %v1147, %v1151
        %vm1153 = vweird.f32 %v1085
        %vm1154 = vweird.f32 %v1147
        %vm1155 = vmor %vm1153, %vm1154
        %v1156 = vsel %vm1155, %v1147, %v1152
        %v1157 = vrsqrt.pop %v1086
        %v1158 = vmul.f32 %v1157, %v1086
        %v1159 = vmul.f32 %v1158, %v1157
        %v1160 = vmul.f32 0.5, %v1159
        %v1161 = vsub.f32 1.5, %v1160
        %v1162 = vmul.f32 %v1157, %v1161
        %vm1163 = vweird.f32 %v1086
        %vm1164 = vweird.f32 %v1157
        %vm1165 = vmor %vm1163, %vm1164
        %v1166 = vsel %vm1165, %v1157, %v1162
        %v1167 = vmul.f32 %v1015, %v1096
        %v1168 = vmul.f32 %v1016, %v1096
        %v1169 = vmul.f32 %v1017, %v1106
        %v1170 = vmul.f32 %v1018, %v1106
        %v1171 = vmul.f32 %v1019, %v1116
        %v1172 = vmul.f32 %v1020, %v1116
        %v1173 = vmul.f32 %v1021, %v1126
        %v1174 = vmul.f32 %v1022, %v1126
        %v1175 = vmul.f32 %v1023, %v1136
        %v1176 = vmul.f32 %v1024, %v1136
        %v1177 = vmul.f32 %v1025, %v1146
        %v1178 = vmul.f32 %v1026, %v1146
        %v1179 = vmul.f32 %v1027, %v1156
        %v1180 = vmul.f32 %v1028, %v1156
        %v1181 = vmul.f32 %v1029, %v1166
        %v1182 = vmul.f32 %v1030, %v1166
        %v1184 = vperm.slane %v974, 0
        %v1185 = vperm.slane %v974, 1
        %v1188 = vmul.f32 %v1167, %v1184
        %v1189 = vmul.f32 %v1168, %v1185
        %v1190 = vmul.f32 %v1169, %v1184
        %v1191 = vmul.f32 %v1170, %v1185
        %v1192 = vmul.f32 %v1171, %v1184
        %v1193 = vmul.f32 %v1172, %v1185
        %v1194 = vmul.f32 %v1173, %v1184
        %v1195 = vmul.f32 %v1174, %v1185
        %v1196 = vmul.f32 %v1175, %v1184
        %v1197 = vmul.f32 %v1176, %v1185
        %v1198 = vmul.f32 %v1177, %v1184
        %v1199 = vmul.f32 %v1178, %v1185
        %v1200 = vmul.f32 %v1179, %v1184
        %v1201 = vmul.f32 %v1180, %v1185
        %v1202 = vmul.f32 %v1181, %v1184
        %v1203 = vmul.f32 %v1182, %v1185
        %v1205 = vperm.slane %v975, 0
        %v1206 = vperm.slane %v975, 1
        %v1209 = vadd.f32 %v1188, %v1205
        %v1210 = vadd.f32 %v1189, %v1206
        %v1211 = vadd.f32 %v1190, %v1205
        %v1212 = vadd.f32 %v1191, %v1206
        %v1213 = vadd.f32 %v1192, %v1205
        %v1214 = vadd.f32 %v1193, %v1206
        %v1215 = vadd.f32 %v1194, %v1205
        %v1216 = vadd.f32 %v1195, %v1206
        %v1217 = vadd.f32 %v1196, %v1205
        %v1218 = vadd.f32 %v1197, %v1206
        %v1219 = vadd.f32 %v1198, %v1205
        %v1220 = vadd.f32 %v1199, %v1206
        %v1221 = vadd.f32 %v1200, %v1205
        %v1222 = vadd.f32 %v1201, %v1206
        %v1223 = vadd.f32 %v1202, %v1205
        %v1224 = vadd.f32 %v1203, %v1206
        %v1225 = vld [vmem:[#allocation10] sm:$0x3f]
        %v1227 = vperm.slane %v1225, 0
        %v1228 = vperm.slane %v1225, 1
        %v1229 = vperm.slane %v1225, 2
        %v1230 = vperm.slane %v1225, 3
        %v1231 = vperm.slane %v1225, 4
        %v1232 = vperm.slane %v1225, 5
        %1239 = vmatpush.msra.mxu0 %v680
        %1240 = vmatpush.msra.mxu0 %v674
        %1241 = vmatpush.msra.mxu0 %v668
        %1242 = vmatpush.msra.mxu0 %v662
        %1243 = vmatpush.msra.mxu0 %v656
        %1244 = vmatpush.msra.mxu0 %v650
        %1245 = vmatpush.msra.mxu0 %v644
        %1246 = vmatpush.msra.mxu0 %v638
        %1247 = vmatpush.msra.mxu0 %v632
        %1248 = vmatpush.msra.mxu0 %v626
        %1249 = vmatpush.msra.mxu0 %v620
        %1250 = vmatpush.msra.mxu0 %v614
        %1251 = vmatpush.msra.mxu0 %v608
        %1252 = vmatpush.msra.mxu0 %v602
        %1253 = vmatpush.msra.mxu0 %v596
        %1254 = vmatpush.msra.mxu0 %v590
        %1255 = vmatmul.f32.gmra.mxu0 %v1209
        %v1256 = vpop.f32.mrf.mxu0
        %v1257 = vadd.f32 %v1227, %v1256
        %1258 = vmatmul.f32.gmra.mxu0 %v1211
        %v1259 = vpop.f32.mrf.mxu0
        %v1260 = vadd.f32 %v1227, %v1259
        %1261 = vmatmul.f32.gmra.mxu0 %v1213
        %v1262 = vpop.f32.mrf.mxu0
        %v1263 = vadd.f32 %v1227, %v1262
        %1264 = vmatmul.f32.gmra.mxu0 %v1215
        %v1265 = vpop.f32.mrf.mxu0
        %v1266 = vadd.f32 %v1227, %v1265
        %1267 = vmatmul.f32.gmra.mxu0 %v1217
        %v1268 = vpop.f32.mrf.mxu0
        %v1269 = vadd.f32 %v1227, %v1268
        %1270 = vmatmul.f32.gmra.mxu0 %v1219
        %v1271 = vpop.f32.mrf.mxu0
        %v1272 = vadd.f32 %v1227, %v1271
        %1273 = vmatmul.f32.gmra.mxu0 %v1221
        %v1274 = vpop.f32.mrf.mxu0
        %v1275 = vadd.f32 %v1227, %v1274
        %1276 = vmatmul.f32.gmra.mxu0 %v1223
        %v1277 = vpop.f32.mrf.mxu0
        %v1278 = vadd.f32 %v1227, %v1277
        %1279 = vdwg.mxu0
        %1280 = vmatpush.msra.mxu0 %v776
        %1281 = vmatpush.msra.mxu0 %v770
        %1282 = vmatpush.msra.mxu0 %v764
        %1283 = vmatpush.msra.mxu0 %v758
        %1284 = vmatpush.msra.mxu0 %v752
        %1285 = vmatpush.msra.mxu0 %v746
        %1286 = vmatpush.msra.mxu0 %v740
        %1287 = vmatpush.msra.mxu0 %v734
        %1288 = vmatpush.msra.mxu0 %v728
        %1289 = vmatpush.msra.mxu0 %v722
        %1290 = vmatpush.msra.mxu0 %v716
        %1291 = vmatpush.msra.mxu0 %v710
        %1292 = vmatpush.msra.mxu0 %v704
        %1293 = vmatpush.msra.mxu0 %v698
        %1294 = vmatpush.msra.mxu0 %v692
        %1295 = vmatpush.msra.mxu0 %v686
        %1296 = vmatmul.f32.gmra.mxu0 %v1210
        %v1297 = vpop.f32.mrf.mxu0
        %v1298 = vadd.f32 %v1257, %v1297
        %1299 = vmatmul.f32.gmra.mxu0 %v1212
        %v1300 = vpop.f32.mrf.mxu0
        %v1301 = vadd.f32 %v1260, %v1300
        %1302 = vmatmul.f32.gmra.mxu0 %v1214
        %v1303 = vpop.f32.mrf.mxu0
        %v1304 = vadd.f32 %v1263, %v1303
        %1305 = vmatmul.f32.gmra.mxu0 %v1216
        %v1306 = vpop.f32.mrf.mxu0
        %v1307 = vadd.f32 %v1266, %v1306
        %1308 = vmatmul.f32.gmra.mxu0 %v1218
        %v1309 = vpop.f32.mrf.mxu0
        %v1310 = vadd.f32 %v1269, %v1309
        %1311 = vmatmul.f32.gmra.mxu0 %v1220
        %v1312 = vpop.f32.mrf.mxu0
        %v1313 = vadd.f32 %v1272, %v1312
        %1314 = vmatmul.f32.gmra.mxu0 %v1222
        %v1315 = vpop.f32.mrf.mxu0
        %v1316 = vadd.f32 %v1275, %v1315
        %1317 = vmatmul.f32.gmra.mxu0 %v1224
        %v1318 = vpop.f32.mrf.mxu0
        %v1319 = vadd.f32 %v1278, %v1318
        %1320 = vdwg.mxu0
        %1321 = vmatpush.msra.mxu0 %v681
        %1322 = vmatpush.msra.mxu0 %v675
        %1323 = vmatpush.msra.mxu0 %v669
        %1324 = vmatpush.msra.mxu0 %v663
        %1325 = vmatpush.msra.mxu0 %v657
        %1326 = vmatpush.msra.mxu0 %v651
        %1327 = vmatpush.msra.mxu0 %v645
        %1328 = vmatpush.msra.mxu0 %v639
        %1329 = vmatpush.msra.mxu0 %v633
        %1330 = vmatpush.msra.mxu0 %v627
        %1331 = vmatpush.msra.mxu0 %v621
        %1332 = vmatpush.msra.mxu0 %v615
        %1333 = vmatpush.msra.mxu0 %v609
        %1334 = vmatpush.msra.mxu0 %v603
        %1335 = vmatpush.msra.mxu0 %v597
        %1336 = vmatpush.msra.mxu0 %v591
        %1337 = vmatmul.f32.gmra.mxu0 %v1209
        %v1338 = vpop.f32.mrf.mxu0
        %v1339 = vadd.f32 %v1228, %v1338
        %1340 = vmatmul.f32.gmra.mxu0 %v1211
        %v1341 = vpop.f32.mrf.mxu0
        %v1342 = vadd.f32 %v1228, %v1341
        %1343 = vmatmul.f32.gmra.mxu0 %v1213
        %v1344 = vpop.f32.mrf.mxu0
        %v1345 = vadd.f32 %v1228, %v1344
        %1346 = vmatmul.f32.gmra.mxu0 %v1215
        %v1347 = vpop.f32.mrf.mxu0
        %v1348 = vadd.f32 %v1228, %v1347
        %1349 = vmatmul.f32.gmra.mxu0 %v1217
        %v1350 = vpop.f32.mrf.mxu0
        %v1351 = vadd.f32 %v1228, %v1350
        %1352 = vmatmul.f32.gmra.mxu0 %v1219
        %v1353 = vpop.f32.mrf.mxu0
        %v1354 = vadd.f32 %v1228, %v1353
        %1355 = vmatmul.f32.gmra.mxu0 %v1221
        %v1356 = vpop.f32.mrf.mxu0
        %v1357 = vadd.f32 %v1228, %v1356
        %1358 = vmatmul.f32.gmra.mxu0 %v1223
        %v1359 = vpop.f32.mrf.mxu0
        %v1360 = vadd.f32 %v1228, %v1359
        %1361 = vdwg.mxu0
        %1362 = vmatpush.msra.mxu0 %v777
        %1363 = vmatpush.msra.mxu0 %v771
        %1364 = vmatpush.msra.mxu0 %v765
        %1365 = vmatpush.msra.mxu0 %v759
        %1366 = vmatpush.msra.mxu0 %v753
        %1367 = vmatpush.msra.mxu0 %v747
        %1368 = vmatpush.msra.mxu0 %v741
        %1369 = vmatpush.msra.mxu0 %v735
        %1370 = vmatpush.msra.mxu0 %v729
        %1371 = vmatpush.msra.mxu0 %v723
        %1372 = vmatpush.msra.mxu0 %v717
        %1373 = vmatpush.msra.mxu0 %v711
        %1374 = vmatpush.msra.mxu0 %v705
        %1375 = vmatpush.msra.mxu0 %v699
        %1376 = vmatpush.msra.mxu0 %v693
        %1377 = vmatpush.msra.mxu0 %v687
        %1378 = vmatmul.f32.gmra.mxu0 %v1210
        %v1379 = vpop.f32.mrf.mxu0
        %v1380 = vadd.f32 %v1339, %v1379
        %1381 = vmatmul.f32.gmra.mxu0 %v1212
        %v1382 = vpop.f32.mrf.mxu0
        %v1383 = vadd.f32 %v1342, %v1382
        %1384 = vmatmul.f32.gmra.mxu0 %v1214
        %v1385 = vpop.f32.mrf.mxu0
        %v1386 = vadd.f32 %v1345, %v1385
        %1387 = vmatmul.f32.gmra.mxu0 %v1216
        %v1388 = vpop.f32.mrf.mxu0
        %v1389 = vadd.f32 %v1348, %v1388
        %1390 = vmatmul.f32.gmra.mxu0 %v1218
        %v1391 = vpop.f32.mrf.mxu0
        %v1392 = vadd.f32 %v1351, %v1391
        %1393 = vmatmul.f32.gmra.mxu0 %v1220
        %v1394 = vpop.f32.mrf.mxu0
        %v1395 = vadd.f32 %v1354, %v1394
        %1396 = vmatmul.f32.gmra.mxu0 %v1222
        %v1397 = vpop.f32.mrf.mxu0
        %v1398 = vadd.f32 %v1357, %v1397
        %1399 = vmatmul.f32.gmra.mxu0 %v1224
        %v1400 = vpop.f32.mrf.mxu0
        %v1401 = vadd.f32 %v1360, %v1400
        %1402 = vdwg.mxu0
        %1403 = vmatpush.msra.mxu0 %v682
        %1404 = vmatpush.msra.mxu0 %v676
        %1405 = vmatpush.msra.mxu0 %v670
        %1406 = vmatpush.msra.mxu0 %v664
        %1407 = vmatpush.msra.mxu0 %v658
        %1408 = vmatpush.msra.mxu0 %v652
        %1409 = vmatpush.msra.mxu0 %v646
        %1410 = vmatpush.msra.mxu0 %v640
        %1411 = vmatpush.msra.mxu0 %v634
        %1412 = vmatpush.msra.mxu0 %v628
        %1413 = vmatpush.msra.mxu0 %v622
        %1414 = vmatpush.msra.mxu0 %v616
        %1415 = vmatpush.msra.mxu0 %v610
        %1416 = vmatpush.msra.mxu0 %v604
        %1417 = vmatpush.msra.mxu0 %v598
        %1418 = vmatpush.msra.mxu0 %v592
        %1419 = vmatmul.f32.gmra.mxu0 %v1209
        %v1420 = vpop.f32.mrf.mxu0
        %v1421 = vadd.f32 %v1229, %v1420
        %1422 = vmatmul.f32.gmra.mxu0 %v1211
        %v1423 = vpop.f32.mrf.mxu0
        %v1424 = vadd.f32 %v1229, %v1423
        %1425 = vmatmul.f32.gmra.mxu0 %v1213
        %v1426 = vpop.f32.mrf.mxu0
        %v1427 = vadd.f32 %v1229, %v1426
        %1428 = vmatmul.f32.gmra.mxu0 %v1215
        %v1429 = vpop.f32.mrf.mxu0
        %v1430 = vadd.f32 %v1229, %v1429
        %1431 = vmatmul.f32.gmra.mxu0 %v1217
        %v1432 = vpop.f32.mrf.mxu0
        %v1433 = vadd.f32 %v1229, %v1432
        %1434 = vmatmul.f32.gmra.mxu0 %v1219
        %v1435 = vpop.f32.mrf.mxu0
        %v1436 = vadd.f32 %v1229, %v1435
        %1437 = vmatmul.f32.gmra.mxu0 %v1221
        %v1438 = vpop.f32.mrf.mxu0
        %v1439 = vadd.f32 %v1229, %v1438
        %1440 = vmatmul.f32.gmra.mxu0 %v1223
        %v1441 = vpop.f32.mrf.mxu0
        %v1442 = vadd.f32 %v1229, %v1441
        %1443 = vdwg.mxu0
        %1444 = vmatpush.msra.mxu0 %v778
        %1445 = vmatpush.msra.mxu0 %v772
        %1446 = vmatpush.msra.mxu0 %v766
        %1447 = vmatpush.msra.mxu0 %v760
        %1448 = vmatpush.msra.mxu0 %v754
        %1449 = vmatpush.msra.mxu0 %v748
        %1450 = vmatpush.msra.mxu0 %v742
        %1451 = vmatpush.msra.mxu0 %v736
        %1452 = vmatpush.msra.mxu0 %v730
        %1453 = vmatpush.msra.mxu0 %v724
        %1454 = vmatpush.msra.mxu0 %v718
        %1455 = vmatpush.msra.mxu0 %v712
        %1456 = vmatpush.msra.mxu0 %v706
        %1457 = vmatpush.msra.mxu0 %v700
        %1458 = vmatpush.msra.mxu0 %v694
        %1459 = vmatpush.msra.mxu0 %v688
        %1460 = vmatmul.f32.gmra.mxu0 %v1210
        %v1461 = vpop.f32.mrf.mxu0
        %v1462 = vadd.f32 %v1421, %v1461
        %1463 = vmatmul.f32.gmra.mxu0 %v1212
        %v1464 = vpop.f32.mrf.mxu0
        %v1465 = vadd.f32 %v1424, %v1464
        %1466 = vmatmul.f32.gmra.mxu0 %v1214
        %v1467 = vpop.f32.mrf.mxu0
        %v1468 = vadd.f32 %v1427, %v1467
        %1469 = vmatmul.f32.gmra.mxu0 %v1216
        %v1470 = vpop.f32.mrf.mxu0
        %v1471 = vadd.f32 %v1430, %v1470
        %1472 = vmatmul.f32.gmra.mxu0 %v1218
        %v1473 = vpop.f32.mrf.mxu0
        %v1474 = vadd.f32 %v1433, %v1473
        %1475 = vmatmul.f32.gmra.mxu0 %v1220
        %v1476 = vpop.f32.mrf.mxu0
        %v1477 = vadd.f32 %v1436, %v1476
        %1478 = vmatmul.f32.gmra.mxu0 %v1222
        %v1479 = vpop.f32.mrf.mxu0
        %v1480 = vadd.f32 %v1439, %v1479
        %1481 = vmatmul.f32.gmra.mxu0 %v1224
        %v1482 = vpop.f32.mrf.mxu0
        %v1483 = vadd.f32 %v1442, %v1482
        %1484 = vdwg.mxu0
        %1485 = vmatpush.msra.mxu0 %v683
        %1486 = vmatpush.msra.mxu0 %v677
        %1487 = vmatpush.msra.mxu0 %v671
        %1488 = vmatpush.msra.mxu0 %v665
        %1489 = vmatpush.msra.mxu0 %v659
        %1490 = vmatpush.msra.mxu0 %v653
        %1491 = vmatpush.msra.mxu0 %v647
        %1492 = vmatpush.msra.mxu0 %v641
        %1493 = vmatpush.msra.mxu0 %v635
        %1494 = vmatpush.msra.mxu0 %v629
        %1495 = vmatpush.msra.mxu0 %v623
        %1496 = vmatpush.msra.mxu0 %v617
        %1497 = vmatpush.msra.mxu0 %v611
        %1498 = vmatpush.msra.mxu0 %v605
        %1499 = vmatpush.msra.mxu0 %v599
        %1500 = vmatpush.msra.mxu0 %v593
        %1501 = vmatmul.f32.gmra.mxu0 %v1209
        %v1502 = vpop.f32.mrf.mxu0
        %v1503 = vadd.f32 %v1230, %v1502
        %1504 = vmatmul.f32.gmra.mxu0 %v1211
        %v1505 = vpop.f32.mrf.mxu0
        %v1506 = vadd.f32 %v1230, %v1505
        %1507 = vmatmul.f32.gmra.mxu0 %v1213
        %v1508 = vpop.f32.mrf.mxu0
        %v1509 = vadd.f32 %v1230, %v1508
        %1510 = vmatmul.f32.gmra.mxu0 %v1215
        %v1511 = vpop.f32.mrf.mxu0
        %v1512 = vadd.f32 %v1230, %v1511
        %1513 = vmatmul.f32.gmra.mxu0 %v1217
        %v1514 = vpop.f32.mrf.mxu0
        %v1515 = vadd.f32 %v1230, %v1514
        %1516 = vmatmul.f32.gmra.mxu0 %v1219
        %v1517 = vpop.f32.mrf.mxu0
        %v1518 = vadd.f32 %v1230, %v1517
        %1519 = vmatmul.f32.gmra.mxu0 %v1221
        %v1520 = vpop.f32.mrf.mxu0
        %v1521 = vadd.f32 %v1230, %v1520
        %1522 = vmatmul.f32.gmra.mxu0 %v1223
        %v1523 = vpop.f32.mrf.mxu0
        %v1524 = vadd.f32 %v1230, %v1523
        %1525 = vdwg.mxu0
        %1526 = vmatpush.msra.mxu0 %v779
        %1527 = vmatpush.msra.mxu0 %v773
        %1528 = vmatpush.msra.mxu0 %v767
        %1529 = vmatpush.msra.mxu0 %v761
        %1530 = vmatpush.msra.mxu0 %v755
        %1531 = vmatpush.msra.mxu0 %v749
        %1532 = vmatpush.msra.mxu0 %v743
        %1533 = vmatpush.msra.mxu0 %v737
        %1534 = vmatpush.msra.mxu0 %v731
        %1535 = vmatpush.msra.mxu0 %v725
        %1536 = vmatpush.msra.mxu0 %v719
        %1537 = vmatpush.msra.mxu0 %v713
        %1538 = vmatpush.msra.mxu0 %v707
        %1539 = vmatpush.msra.mxu0 %v701
        %1540 = vmatpush.msra.mxu0 %v695
        %1541 = vmatpush.msra.mxu0 %v689
        %1542 = vmatmul.f32.gmra.mxu0 %v1210
        %v1543 = vpop.f32.mrf.mxu0
        %v1544 = vadd.f32 %v1503, %v1543
        %1545 = vmatmul.f32.gmra.mxu0 %v1212
        %v1546 = vpop.f32.mrf.mxu0
        %v1547 = vadd.f32 %v1506, %v1546
        %1548 = vmatmul.f32.gmra.mxu0 %v1214
        %v1549 = vpop.f32.mrf.mxu0
        %v1550 = vadd.f32 %v1509, %v1549
        %1551 = vmatmul.f32.gmra.mxu0 %v1216
        %v1552 = vpop.f32.mrf.mxu0
        %v1553 = vadd.f32 %v1512, %v1552
        %1554 = vmatmul.f32.gmra.mxu0 %v1218
        %v1555 = vpop.f32.mrf.mxu0
        %v1556 = vadd.f32 %v1515, %v1555
        %1557 = vmatmul.f32.gmra.mxu0 %v1220
        %v1558 = vpop.f32.mrf.mxu0
        %v1559 = vadd.f32 %v1518, %v1558
        %1560 = vmatmul.f32.gmra.mxu0 %v1222
        %v1561 = vpop.f32.mrf.mxu0
        %v1562 = vadd.f32 %v1521, %v1561
        %1563 = vmatmul.f32.gmra.mxu0 %v1224
        %v1564 = vpop.f32.mrf.mxu0
        %v1565 = vadd.f32 %v1524, %v1564
        %1566 = vdwg.mxu0
        %1567 = vmatpush.msra.mxu0 %v684
        %1568 = vmatpush.msra.mxu0 %v678
        %1569 = vmatpush.msra.mxu0 %v672
        %1570 = vmatpush.msra.mxu0 %v666
        %1571 = vmatpush.msra.mxu0 %v660
        %1572 = vmatpush.msra.mxu0 %v654
        %1573 = vmatpush.msra.mxu0 %v648
        %1574 = vmatpush.msra.mxu0 %v642
        %1575 = vmatpush.msra.mxu0 %v636
        %1576 = vmatpush.msra.mxu0 %v630
        %1577 = vmatpush.msra.mxu0 %v624
        %1578 = vmatpush.msra.mxu0 %v618
        %1579 = vmatpush.msra.mxu0 %v612
        %1580 = vmatpush.msra.mxu0 %v606
        %1581 = vmatpush.msra.mxu0 %v600
        %1582 = vmatpush.msra.mxu0 %v594
        %1583 = vmatmul.f32.gmra.mxu0 %v1209
        %v1584 = vpop.f32.mrf.mxu0
        %v1585 = vadd.f32 %v1231, %v1584
        %1586 = vmatmul.f32.gmra.mxu0 %v1211
        %v1587 = vpop.f32.mrf.mxu0
        %v1588 = vadd.f32 %v1231, %v1587
        %1589 = vmatmul.f32.gmra.mxu0 %v1213
        %v1590 = vpop.f32.mrf.mxu0
        %v1591 = vadd.f32 %v1231, %v1590
        %1592 = vmatmul.f32.gmra.mxu0 %v1215
        %v1593 = vpop.f32.mrf.mxu0
        %v1594 = vadd.f32 %v1231, %v1593
        %1595 = vmatmul.f32.gmra.mxu0 %v1217
        %v1596 = vpop.f32.mrf.mxu0
        %v1597 = vadd.f32 %v1231, %v1596
        %1598 = vmatmul.f32.gmra.mxu0 %v1219
        %v1599 = vpop.f32.mrf.mxu0
        %v1600 = vadd.f32 %v1231, %v1599
        %1601 = vmatmul.f32.gmra.mxu0 %v1221
        %v1602 = vpop.f32.mrf.mxu0
        %v1603 = vadd.f32 %v1231, %v1602
        %1604 = vmatmul.f32.gmra.mxu0 %v1223
        %v1605 = vpop.f32.mrf.mxu0
        %v1606 = vadd.f32 %v1231, %v1605
        %1607 = vdwg.mxu0
        %1608 = vmatpush.msra.mxu0 %v780
        %1609 = vmatpush.msra.mxu0 %v774
        %1610 = vmatpush.msra.mxu0 %v768
        %1611 = vmatpush.msra.mxu0 %v762
        %1612 = vmatpush.msra.mxu0 %v756
        %1613 = vmatpush.msra.mxu0 %v750
        %1614 = vmatpush.msra.mxu0 %v744
        %1615 = vmatpush.msra.mxu0 %v738
        %1616 = vmatpush.msra.mxu0 %v732
        %1617 = vmatpush.msra.mxu0 %v726
        %1618 = vmatpush.msra.mxu0 %v720
        %1619 = vmatpush.msra.mxu0 %v714
        %1620 = vmatpush.msra.mxu0 %v708
        %1621 = vmatpush.msra.mxu0 %v702
        %1622 = vmatpush.msra.mxu0 %v696
        %1623 = vmatpush.msra.mxu0 %v690
        %1624 = vmatmul.f32.gmra.mxu0 %v1210
        %v1625 = vpop.f32.mrf.mxu0
        %v1626 = vadd.f32 %v1585, %v1625
        %1627 = vmatmul.f32.gmra.mxu0 %v1212
        %v1628 = vpop.f32.mrf.mxu0
        %v1629 = vadd.f32 %v1588, %v1628
        %1630 = vmatmul.f32.gmra.mxu0 %v1214
        %v1631 = vpop.f32.mrf.mxu0
        %v1632 = vadd.f32 %v1591, %v1631
        %1633 = vmatmul.f32.gmra.mxu0 %v1216
        %v1634 = vpop.f32.mrf.mxu0
        %v1635 = vadd.f32 %v1594, %v1634
        %1636 = vmatmul.f32.gmra.mxu0 %v1218
        %v1637 = vpop.f32.mrf.mxu0
        %v1638 = vadd.f32 %v1597, %v1637
        %1639 = vmatmul.f32.gmra.mxu0 %v1220
        %v1640 = vpop.f32.mrf.mxu0
        %v1641 = vadd.f32 %v1600, %v1640
        %1642 = vmatmul.f32.gmra.mxu0 %v1222
        %v1643 = vpop.f32.mrf.mxu0
        %v1644 = vadd.f32 %v1603, %v1643
        %1645 = vmatmul.f32.gmra.mxu0 %v1224
        %v1646 = vpop.f32.mrf.mxu0
        %v1647 = vadd.f32 %v1606, %v1646
        %1648 = vdwg.mxu0
        %1649 = vmatpush.msra.mxu0 %v685
        %1650 = vmatpush.msra.mxu0 %v679
        %1651 = vmatpush.msra.mxu0 %v673
        %1652 = vmatpush.msra.mxu0 %v667
        %1653 = vmatpush.msra.mxu0 %v661
        %1654 = vmatpush.msra.mxu0 %v655
        %1655 = vmatpush.msra.mxu0 %v649
        %1656 = vmatpush.msra.mxu0 %v643
        %1657 = vmatpush.msra.mxu0 %v637
        %1658 = vmatpush.msra.mxu0 %v631
        %1659 = vmatpush.msra.mxu0 %v625
        %1660 = vmatpush.msra.mxu0 %v619
        %1661 = vmatpush.msra.mxu0 %v613
        %1662 = vmatpush.msra.mxu0 %v607
        %1663 = vmatpush.msra.mxu0 %v601
        %1664 = vmatpush.msra.mxu0 %v595
        %1665 = vmatmul.f32.gmra.mxu0 %v1209
        %v1666 = vpop.f32.mrf.mxu0
        %v1667 = vadd.f32 %v1232, %v1666
        %1668 = vmatmul.f32.gmra.mxu0 %v1211
        %v1669 = vpop.f32.mrf.mxu0
        %v1670 = vadd.f32 %v1232, %v1669
        %1671 = vmatmul.f32.gmra.mxu0 %v1213
        %v1672 = vpop.f32.mrf.mxu0
        %v1673 = vadd.f32 %v1232, %v1672
        %1674 = vmatmul.f32.gmra.mxu0 %v1215
        %v1675 = vpop.f32.mrf.mxu0
        %v1676 = vadd.f32 %v1232, %v1675
        %1677 = vmatmul.f32.gmra.mxu0 %v1217
        %v1678 = vpop.f32.mrf.mxu0
        %v1679 = vadd.f32 %v1232, %v1678
        %1680 = vmatmul.f32.gmra.mxu0 %v1219
        %v1681 = vpop.f32.mrf.mxu0
        %v1682 = vadd.f32 %v1232, %v1681
        %1683 = vmatmul.f32.gmra.mxu0 %v1221
        %v1684 = vpop.f32.mrf.mxu0
        %v1685 = vadd.f32 %v1232, %v1684
        %1686 = vmatmul.f32.gmra.mxu0 %v1223
        %v1687 = vpop.f32.mrf.mxu0
        %v1688 = vadd.f32 %v1232, %v1687
        %1689 = vdwg.mxu0
        %1690 = vmatpush.msra.mxu0 %v781
        %1691 = vmatpush.msra.mxu0 %v775
        %1692 = vmatpush.msra.mxu0 %v769
        %1693 = vmatpush.msra.mxu0 %v763
        %1694 = vmatpush.msra.mxu0 %v757
        %1695 = vmatpush.msra.mxu0 %v751
        %1696 = vmatpush.msra.mxu0 %v745
        %1697 = vmatpush.msra.mxu0 %v739
        %1698 = vmatpush.msra.mxu0 %v733
        %1699 = vmatpush.msra.mxu0 %v727
        %1700 = vmatpush.msra.mxu0 %v721
        %1701 = vmatpush.msra.mxu0 %v715
        %1702 = vmatpush.msra.mxu0 %v709
        %1703 = vmatpush.msra.mxu0 %v703
        %1704 = vmatpush.msra.mxu0 %v697
        %1705 = vmatpush.msra.mxu0 %v691
        %1706 = vmatmul.f32.gmra.mxu0 %v1210
        %v1707 = vpop.f32.mrf.mxu0
        %v1708 = vadd.f32 %v1667, %v1707
        %1709 = vmatmul.f32.gmra.mxu0 %v1212
        %v1710 = vpop.f32.mrf.mxu0
        %v1711 = vadd.f32 %v1670, %v1710
        %1712 = vmatmul.f32.gmra.mxu0 %v1214
        %v1713 = vpop.f32.mrf.mxu0
        %v1714 = vadd.f32 %v1673, %v1713
        %1715 = vmatmul.f32.gmra.mxu0 %v1216
        %v1716 = vpop.f32.mrf.mxu0
        %v1717 = vadd.f32 %v1676, %v1716
        %1718 = vmatmul.f32.gmra.mxu0 %v1218
        %v1719 = vpop.f32.mrf.mxu0
        %v1720 = vadd.f32 %v1679, %v1719
        %1721 = vmatmul.f32.gmra.mxu0 %v1220
        %v1722 = vpop.f32.mrf.mxu0
        %v1723 = vadd.f32 %v1682, %v1722
        %1724 = vmatmul.f32.gmra.mxu0 %v1222
        %v1725 = vpop.f32.mrf.mxu0
        %v1726 = vadd.f32 %v1685, %v1725
        %1727 = vmatmul.f32.gmra.mxu0 %v1224
        %v1728 = vpop.f32.mrf.mxu0
        %v1729 = vadd.f32 %v1688, %v1728
        %1730 = vdwg.mxu0
        %vm1731 = vcmask 523264
        %v1733 = vsel %vm1731, %v1298, 0
        %v1736 = vsel %vm1731, %v1301, 0
        %v1739 = vsel %vm1731, %v1304, 0
        %v1742 = vsel %vm1731, %v1307, 0
        %v1745 = vsel %vm1731, %v1310, 0
        %v1748 = vsel %vm1731, %v1313, 0
        %v1751 = vsel %vm1731, %v1316, 0
        %v1754 = vsel %vm1731, %v1319, 0
        %v1757 = vsel %vm1731, %v1462, 0
        %v1760 = vsel %vm1731, %v1465, 0
        %v1763 = vsel %vm1731, %v1468, 0
        %v1766 = vsel %vm1731, %v1471, 0
        %v1769 = vsel %vm1731, %v1474, 0
        %v1772 = vsel %vm1731, %v1477, 0
        %v1775 = vsel %vm1731, %v1480, 0
        %v1778 = vsel %vm1731, %v1483, 0
        %1780 = vmatpush.xpose.msra.mxu0 0.0
        %1781 = vmatpush.xpose.msra.mxu0 0.0
        %1782 = vmatpush.xpose.msra.mxu0 0.0
        %1783 = vmatpush.xpose.msra.mxu0 0.0
        %1784 = vmatpush.xpose.msra.mxu0 0.0
        %1785 = vmatpush.xpose.msra.mxu0 0.0
        %1786 = vmatpush.xpose.msra.mxu0 0.0
        %1787 = vmatpush.xpose.msra.mxu0 0.0
        %1788 = vmatpush.xpose.msra.mxu0 %v1778
        %1789 = vmatpush.xpose.msra.mxu0 %v1775
        %1790 = vmatpush.xpose.msra.mxu0 %v1772
        %1791 = vmatpush.xpose.msra.mxu0 %v1769
        %1792 = vmatpush.xpose.msra.mxu0 %v1766
        %1793 = vmatpush.xpose.msra.mxu0 %v1763
        %1794 = vmatpush.xpose.msra.mxu0 %v1760
        %1795 = vmatpush.xpose.msra.mxu0 %v1757
        %1796 = vmatmul.f32.gmra.mxu0 %v1733
        %v1797 = vpop.f32.mrf.mxu0
        %v1798 = vadd.f32 0.0, %v1797
        %1799 = vmatmul.f32.gmra.mxu0 %v1736
        %v1800 = vpop.f32.mrf.mxu0
        %v1801 = vadd.f32 0.0, %v1800
        %1802 = vmatmul.f32.gmra.mxu0 %v1739
        %v1803 = vpop.f32.mrf.mxu0
        %v1804 = vadd.f32 0.0, %v1803
        %1805 = vmatmul.f32.gmra.mxu0 %v1742
        %v1806 = vpop.f32.mrf.mxu0
        %v1807 = vadd.f32 0.0, %v1806
        %1808 = vmatmul.f32.gmra.mxu0 %v1745
        %v1809 = vpop.f32.mrf.mxu0
        %v1810 = vadd.f32 0.0, %v1809
        %1811 = vmatmul.f32.gmra.mxu0 %v1748
        %v1812 = vpop.f32.mrf.mxu0
        %v1813 = vadd.f32 0.0, %v1812
        %1814 = vmatmul.f32.gmra.mxu0 %v1751
        %v1815 = vpop.f32.mrf.mxu0
        %v1816 = vadd.f32 0.0, %v1815
        %1817 = vmatmul.f32.gmra.mxu0 %v1754
        %v1818 = vpop.f32.mrf.mxu0
        %v1819 = vadd.f32 0.0, %v1818
        %1820 = vdwg.mxu0
        %v1821 = vsel %vm1731, %v1798, -inf
        %1822 = vmax.xlane.f32.xlu0 %v1821
        %v1823 = vpop.xlane.xlu0 %1822
        %v1824 = vsel %vm1731, %v1801, -inf
        %1825 = vmax.xlane.f32.xlu0 %v1824
        %v1826 = vpop.xlane.xlu0 %1825
        %v1827 = vsel %vm1731, %v1804, -inf
        %1828 = vmax.xlane.f32.xlu0 %v1827
        %v1829 = vpop.xlane.xlu0 %1828
        %v1830 = vsel %vm1731, %v1807, -inf
        %1831 = vmax.xlane.f32.xlu0 %v1830
        %v1832 = vpop.xlane.xlu0 %1831
        %v1833 = vsel %vm1731, %v1810, -inf
        %1834 = vmax.xlane.f32.xlu0 %v1833
        %v1835 = vpop.xlane.xlu0 %1834
        %v1836 = vsel %vm1731, %v1813, -inf
        %1837 = vmax.xlane.f32.xlu0 %v1836
        %v1838 = vpop.xlane.xlu0 %1837
        %v1839 = vsel %vm1731, %v1816, -inf
        %1840 = vmax.xlane.f32.xlu0 %v1839
        %v1841 = vpop.xlane.xlu0 %1840
        %v1842 = vsel %vm1731, %v1819, -inf
        %1843 = vmax.xlane.f32.xlu0 %v1842
        %v1844 = vpop.xlane.xlu0 %1843
        %v1845 = vsub.f32 %v1798, %v1823
        %v1846 = vsub.f32 %v1801, %v1826
        %v1847 = vsub.f32 %v1804, %v1829
        %v1848 = vsub.f32 %v1807, %v1832
        %v1849 = vsub.f32 %v1810, %v1835
        %v1850 = vsub.f32 %v1813, %v1838
        %v1851 = vsub.f32 %v1816, %v1841
        %v1852 = vsub.f32 %v1819, %v1844
        %v1853 = vmul.f32 %v1845, 1.442695
        %v1854 = vpow.pop %v1853
        %v1855 = vmul.f32 %v1846, 1.442695
        %v1856 = vpow.pop %v1855
        %v1857 = vmul.f32 %v1847, 1.442695
        %v1858 = vpow.pop %v1857
        %v1859 = vmul.f32 %v1848, 1.442695
        %v1860 = vpow.pop %v1859
        %v1861 = vmul.f32 %v1849, 1.442695
        %v1862 = vpow.pop %v1861
        %v1863 = vmul.f32 %v1850, 1.442695
        %v1864 = vpow.pop %v1863
        %v1865 = vmul.f32 %v1851, 1.442695
        %v1866 = vpow.pop %v1865
        %v1867 = vmul.f32 %v1852, 1.442695
        %v1868 = vpow.pop %v1867
        %v1869 = vsel %vm1731, %v1854, 0.0
        %1870 = vadd.xlane.f32.xlu0 %v1869
        %v1871 = vpop.xlane.xlu0 %1870
        %v1872 = vsel %vm1731, %v1856, 0.0
        %1873 = vadd.xlane.f32.xlu0 %v1872
        %v1874 = vpop.xlane.xlu0 %1873
        %v1875 = vsel %vm1731, %v1858, 0.0
        %1876 = vadd.xlane.f32.xlu0 %v1875
        %v1877 = vpop.xlane.xlu0 %1876
        %v1878 = vsel %vm1731, %v1860, 0.0
        %1879 = vadd.xlane.f32.xlu0 %v1878
        %v1880 = vpop.xlane.xlu0 %1879
        %v1881 = vsel %vm1731, %v1862, 0.0
        %1882 = vadd.xlane.f32.xlu0 %v1881
        %v1883 = vpop.xlane.xlu0 %1882
        %v1884 = vsel %vm1731, %v1864, 0.0
        %1885 = vadd.xlane.f32.xlu0 %v1884
        %v1886 = vpop.xlane.xlu0 %1885
        %v1887 = vsel %vm1731, %v1866, 0.0
        %1888 = vadd.xlane.f32.xlu0 %v1887
        %v1889 = vpop.xlane.xlu0 %1888
        %v1890 = vsel %vm1731, %v1868, 0.0
        %1891 = vadd.xlane.f32.xlu0 %v1890
        %v1892 = vpop.xlane.xlu0 %1891
        %v1893 = vrcp.pop %v1871
        %v1894 = vrcp.pop %v1874
        %v1895 = vrcp.pop %v1877
        %v1896 = vrcp.pop %v1880
        %v1897 = vrcp.pop %v1883
        %v1898 = vrcp.pop %v1886
        %v1899 = vrcp.pop %v1889
        %v1900 = vrcp.pop %v1892
        %v1902 = vsel %vm1731, %v1854, 0
        %v1905 = vsel %vm1731, %v1856, 0
        %v1908 = vsel %vm1731, %v1858, 0
        %v1911 = vsel %vm1731, %v1860, 0
        %v1914 = vsel %vm1731, %v1862, 0
        %v1917 = vsel %vm1731, %v1864, 0
        %v1920 = vsel %vm1731, %v1866, 0
        %v1923 = vsel %vm1731, %v1868, 0
        %1925 = vmatpush.msra.mxu0 0.0
        %1926 = vmatpush.msra.mxu0 0.0
        %1927 = vmatpush.msra.mxu0 0.0
        %1928 = vmatpush.msra.mxu0 0.0
        %1929 = vmatpush.msra.mxu0 0.0
        %1930 = vmatpush.msra.mxu0 0.0
        %1931 = vmatpush.msra.mxu0 0.0
        %1932 = vmatpush.msra.mxu0 0.0
        %1933 = vmatpush.msra.mxu0 %v1647
        %1934 = vmatpush.msra.mxu0 %v1644
        %1935 = vmatpush.msra.mxu0 %v1641
        %1936 = vmatpush.msra.mxu0 %v1638
        %1937 = vmatpush.msra.mxu0 %v1635
        %1938 = vmatpush.msra.mxu0 %v1632
        %1939 = vmatpush.msra.mxu0 %v1629
        %1940 = vmatpush.msra.mxu0 %v1626
        %1941 = vmatmul.f32.gmra.mxu0 %v1902
        %v1942 = vpop.f32.mrf.mxu0
        %v1943 = vadd.f32 0.0, %v1942
        %1944 = vmatmul.f32.gmra.mxu0 %v1905
        %v1945 = vpop.f32.mrf.mxu0
        %v1946 = vadd.f32 0.0, %v1945
        %1947 = vmatmul.f32.gmra.mxu0 %v1908
        %v1948 = vpop.f32.mrf.mxu0
        %v1949 = vadd.f32 0.0, %v1948
        %1950 = vmatmul.f32.gmra.mxu0 %v1911
        %v1951 = vpop.f32.mrf.mxu0
        %v1952 = vadd.f32 0.0, %v1951
        %1953 = vmatmul.f32.gmra.mxu0 %v1914
        %v1954 = vpop.f32.mrf.mxu0
        %v1955 = vadd.f32 0.0, %v1954
        %1956 = vmatmul.f32.gmra.mxu0 %v1917
        %v1957 = vpop.f32.mrf.mxu0
        %v1958 = vadd.f32 0.0, %v1957
        %1959 = vmatmul.f32.gmra.mxu0 %v1920
        %v1960 = vpop.f32.mrf.mxu0
        %v1961 = vadd.f32 0.0, %v1960
        %1962 = vmatmul.f32.gmra.mxu0 %v1923
        %v1963 = vpop.f32.mrf.mxu0
        %v1964 = vadd.f32 0.0, %v1963
        %1965 = vdwg.mxu0
        %v1966 = vmul.f32 %v1943, %v1893
        %v1967 = vmul.f32 %v1946, %v1894
        %v1968 = vmul.f32 %v1949, %v1895
        %v1969 = vmul.f32 %v1952, %v1896
        %v1970 = vmul.f32 %v1955, %v1897
        %v1971 = vmul.f32 %v1958, %v1898
        %v1972 = vmul.f32 %v1961, %v1899
        %v1973 = vmul.f32 %v1964, %v1900
        %1974 = vrot.lane.b32.xlu0 %v1298, 64
        %v1975 = vpop.permute.xlu0 %1974
        %1976 = vrot.lane.b32.xlu0 %v1301, 64
        %v1977 = vpop.permute.xlu0 %1976
        %1978 = vrot.lane.b32.xlu0 %v1304, 64
        %v1979 = vpop.permute.xlu0 %1978
        %1980 = vrot.lane.b32.xlu0 %v1307, 64
        %v1981 = vpop.permute.xlu0 %1980
        %1982 = vrot.lane.b32.xlu0 %v1310, 64
        %v1983 = vpop.permute.xlu0 %1982
        %1984 = vrot.lane.b32.xlu0 %v1313, 64
        %v1985 = vpop.permute.xlu0 %1984
        %1986 = vrot.lane.b32.xlu0 %v1316, 64
        %v1987 = vpop.permute.xlu0 %1986
        %1988 = vrot.lane.b32.xlu0 %v1319, 64
        %v1989 = vpop.permute.xlu0 %1988
        %1990 = vrot.lane.b32.xlu0 %v1462, 64
        %v1991 = vpop.permute.xlu0 %1990
        %1992 = vrot.lane.b32.xlu0 %v1465, 64
        %v1993 = vpop.permute.xlu0 %1992
        %1994 = vrot.lane.b32.xlu0 %v1468, 64
        %v1995 = vpop.permute.xlu0 %1994
        %1996 = vrot.lane.b32.xlu0 %v1471, 64
        %v1997 = vpop.permute.xlu0 %1996
        %1998 = vrot.lane.b32.xlu0 %v1474, 64
        %v1999 = vpop.permute.xlu0 %1998
        %2000 = vrot.lane.b32.xlu0 %v1477, 64
        %v2001 = vpop.permute.xlu0 %2000
        %2002 = vrot.lane.b32.xlu0 %v1480, 64
        %v2003 = vpop.permute.xlu0 %2002
        %2004 = vrot.lane.b32.xlu0 %v1483, 64
        %v2005 = vpop.permute.xlu0 %2004
        %v2006 = vsel %vm1731, %v1975, 0
        %v2008 = vsel %vm1731, %v1977, 0
        %v2010 = vsel %vm1731, %v1979, 0
        %v2012 = vsel %vm1731, %v1981, 0
        %v2014 = vsel %vm1731, %v1983, 0
        %v2016 = vsel %vm1731, %v1985, 0
        %v2018 = vsel %vm1731, %v1987, 0
        %v2020 = vsel %vm1731, %v1989, 0
        %v2022 = vsel %vm1731, %v1991, 0
        %v2024 = vsel %vm1731, %v1993, 0
        %v2026 = vsel %vm1731, %v1995, 0
        %v2028 = vsel %vm1731, %v1997, 0
        %v2030 = vsel %vm1731, %v1999, 0
        %v2032 = vsel %vm1731, %v2001, 0
        %v2034 = vsel %vm1731, %v2003, 0
        %v2036 = vsel %vm1731, %v2005, 0
        %2038 = vmatpush.xpose.msra.mxu0 0.0
        %2039 = vmatpush.xpose.msra.mxu0 0.0
        %2040 = vmatpush.xpose.msra.mxu0 0.0
        %2041 = vmatpush.xpose.msra.mxu0 0.0
        %2042 = vmatpush.xpose.msra.mxu0 0.0
        %2043 = vmatpush.xpose.msra.mxu0 0.0
        %2044 = vmatpush.xpose.msra.mxu0 0.0
        %2045 = vmatpush.xpose.msra.mxu0 0.0
        %2046 = vmatpush.xpose.msra.mxu0 %v2036
        %2047 = vmatpush.xpose.msra.mxu0 %v2034
        %2048 = vmatpush.xpose.msra.mxu0 %v2032
        %2049 = vmatpush.xpose.msra.mxu0 %v2030
        %2050 = vmatpush.xpose.msra.mxu0 %v2028
        %2051 = vmatpush.xpose.msra.mxu0 %v2026
        %2052 = vmatpush.xpose.msra.mxu0 %v2024
        %2053 = vmatpush.xpose.msra.mxu0 %v2022
        %2054 = vmatmul.f32.gmra.mxu0 %v2006
        %v2055 = vpop.f32.mrf.mxu0
        %v2056 = vadd.f32 0.0, %v2055
        %2057 = vmatmul.f32.gmra.mxu0 %v2008
        %v2058 = vpop.f32.mrf.mxu0
        %v2059 = vadd.f32 0.0, %v2058
        %2060 = vmatmul.f32.gmra.mxu0 %v2010
        %v2061 = vpop.f32.mrf.mxu0
        %v2062 = vadd.f32 0.0, %v2061
        %2063 = vmatmul.f32.gmra.mxu0 %v2012
        %v2064 = vpop.f32.mrf.mxu0
        %v2065 = vadd.f32 0.0, %v2064
        %2066 = vmatmul.f32.gmra.mxu0 %v2014
        %v2067 = vpop.f32.mrf.mxu0
        %v2068 = vadd.f32 0.0, %v2067
        %2069 = vmatmul.f32.gmra.mxu0 %v2016
        %v2070 = vpop.f32.mrf.mxu0
        %v2071 = vadd.f32 0.0, %v2070
        %2072 = vmatmul.f32.gmra.mxu0 %v2018
        %v2073 = vpop.f32.mrf.mxu0
        %v2074 = vadd.f32 0.0, %v2073
        %2075 = vmatmul.f32.gmra.mxu0 %v2020
        %v2076 = vpop.f32.mrf.mxu0
        %v2077 = vadd.f32 0.0, %v2076
        %2078 = vdwg.mxu0
        %v2079 = vsel %vm1731, %v2056, -inf
        %2080 = vmax.xlane.f32.xlu0 %v2079
        %v2081 = vpop.xlane.xlu0 %2080
        %v2082 = vsel %vm1731, %v2059, -inf
        %2083 = vmax.xlane.f32.xlu0 %v2082
        %v2084 = vpop.xlane.xlu0 %2083
        %v2085 = vsel %vm1731, %v2062, -inf
        %2086 = vmax.xlane.f32.xlu0 %v2085
        %v2087 = vpop.xlane.xlu0 %2086
        %v2088 = vsel %vm1731, %v2065, -inf
        %2089 = vmax.xlane.f32.xlu0 %v2088
        %v2090 = vpop.xlane.xlu0 %2089
        %v2091 = vsel %vm1731, %v2068, -inf
        %2092 = vmax.xlane.f32.xlu0 %v2091
        %v2093 = vpop.xlane.xlu0 %2092
        %v2094 = vsel %vm1731, %v2071, -inf
        %2095 = vmax.xlane.f32.xlu0 %v2094
        %v2096 = vpop.xlane.xlu0 %2095
        %v2097 = vsel %vm1731, %v2074, -inf
        %2098 = vmax.xlane.f32.xlu0 %v2097
        %v2099 = vpop.xlane.xlu0 %2098
        %v2100 = vsel %vm1731, %v2077, -inf
        %2101 = vmax.xlane.f32.xlu0 %v2100
        %v2102 = vpop.xlane.xlu0 %2101
        %v2103 = vsub.f32 %v2056, %v2081
        %v2104 = vsub.f32 %v2059, %v2084
        %v2105 = vsub.f32 %v2062, %v2087
        %v2106 = vsub.f32 %v2065, %v2090
        %v2107 = vsub.f32 %v2068, %v2093
        %v2108 = vsub.f32 %v2071, %v2096
        %v2109 = vsub.f32 %v2074, %v2099
        %v2110 = vsub.f32 %v2077, %v2102
        %v2111 = vmul.f32 %v2103, 1.442695
        %v2112 = vpow.pop %v2111
        %v2113 = vmul.f32 %v2104, 1.442695
        %v2114 = vpow.pop %v2113
        %v2115 = vmul.f32 %v2105, 1.442695
        %v2116 = vpow.pop %v2115
        %v2117 = vmul.f32 %v2106, 1.442695
        %v2118 = vpow.pop %v2117
        %v2119 = vmul.f32 %v2107, 1.442695
        %v2120 = vpow.pop %v2119
        %v2121 = vmul.f32 %v2108, 1.442695
        %v2122 = vpow.pop %v2121
        %v2123 = vmul.f32 %v2109, 1.442695
        %v2124 = vpow.pop %v2123
        %v2125 = vmul.f32 %v2110, 1.442695
        %v2126 = vpow.pop %v2125
        %v2127 = vsel %vm1731, %v2112, 0.0
        %2128 = vadd.xlane.f32.xlu0 %v2127
        %v2129 = vpop.xlane.xlu0 %2128
        %v2130 = vsel %vm1731, %v2114, 0.0
        %2131 = vadd.xlane.f32.xlu0 %v2130
        %v2132 = vpop.xlane.xlu0 %2131
        %v2133 = vsel %vm1731, %v2116, 0.0
        %2134 = vadd.xlane.f32.xlu0 %v2133
        %v2135 = vpop.xlane.xlu0 %2134
        %v2136 = vsel %vm1731, %v2118, 0.0
        %2137 = vadd.xlane.f32.xlu0 %v2136
        %v2138 = vpop.xlane.xlu0 %2137
        %v2139 = vsel %vm1731, %v2120, 0.0
        %2140 = vadd.xlane.f32.xlu0 %v2139
        %v2141 = vpop.xlane.xlu0 %2140
        %v2142 = vsel %vm1731, %v2122, 0.0
        %2143 = vadd.xlane.f32.xlu0 %v2142
        %v2144 = vpop.xlane.xlu0 %2143
        %v2145 = vsel %vm1731, %v2124, 0.0
        %2146 = vadd.xlane.f32.xlu0 %v2145
        %v2147 = vpop.xlane.xlu0 %2146
        %v2148 = vsel %vm1731, %v2126, 0.0
        %2149 = vadd.xlane.f32.xlu0 %v2148
        %v2150 = vpop.xlane.xlu0 %2149
        %v2151 = vrcp.pop %v2129
        %v2152 = vrcp.pop %v2132
        %v2153 = vrcp.pop %v2135
        %v2154 = vrcp.pop %v2138
        %v2155 = vrcp.pop %v2141
        %v2156 = vrcp.pop %v2144
        %v2157 = vrcp.pop %v2147
        %v2158 = vrcp.pop %v2150
        %2167 = vrot.lane.b32.xlu0 %v1626, 64
        %v2168 = vpop.permute.xlu0 %2167
        %2169 = vrot.lane.b32.xlu0 %v1629, 64
        %v2170 = vpop.permute.xlu0 %2169
        %2171 = vrot.lane.b32.xlu0 %v1632, 64
        %v2172 = vpop.permute.xlu0 %2171
        %2173 = vrot.lane.b32.xlu0 %v1635, 64
        %v2174 = vpop.permute.xlu0 %2173
        %2175 = vrot.lane.b32.xlu0 %v1638, 64
        %v2176 = vpop.permute.xlu0 %2175
        %2177 = vrot.lane.b32.xlu0 %v1641, 64
        %v2178 = vpop.permute.xlu0 %2177
        %2179 = vrot.lane.b32.xlu0 %v1644, 64
        %v2180 = vpop.permute.xlu0 %2179
        %2181 = vrot.lane.b32.xlu0 %v1647, 64
        %v2182 = vpop.permute.xlu0 %2181
        %v2192 = vsel %vm1731, %v2112, 0
        %v2195 = vsel %vm1731, %v2114, 0
        %v2198 = vsel %vm1731, %v2116, 0
        %v2201 = vsel %vm1731, %v2118, 0
        %v2204 = vsel %vm1731, %v2120, 0
        %v2207 = vsel %vm1731, %v2122, 0
        %v2210 = vsel %vm1731, %v2124, 0
        %v2213 = vsel %vm1731, %v2126, 0
        %2215 = vmatpush.msra.mxu0 0.0
        %2216 = vmatpush.msra.mxu0 0.0
        %2217 = vmatpush.msra.mxu0 0.0
        %2218 = vmatpush.msra.mxu0 0.0
        %2219 = vmatpush.msra.mxu0 0.0
        %2220 = vmatpush.msra.mxu0 0.0
        %2221 = vmatpush.msra.mxu0 0.0
        %2222 = vmatpush.msra.mxu0 0.0
        %2223 = vmatpush.msra.mxu0 %v2182
        %2224 = vmatpush.msra.mxu0 %v2180
        %2225 = vmatpush.msra.mxu0 %v2178
        %2226 = vmatpush.msra.mxu0 %v2176
        %2227 = vmatpush.msra.mxu0 %v2174
        %2228 = vmatpush.msra.mxu0 %v2172
        %2229 = vmatpush.msra.mxu0 %v2170
        %2230 = vmatpush.msra.mxu0 %v2168
        %2231 = vmatmul.f32.gmra.mxu0 %v2192
        %v2232 = vpop.f32.mrf.mxu0
        %v2233 = vadd.f32 0.0, %v2232
        %2234 = vmatmul.f32.gmra.mxu0 %v2195
        %v2235 = vpop.f32.mrf.mxu0
        %v2236 = vadd.f32 0.0, %v2235
        %2237 = vmatmul.f32.gmra.mxu0 %v2198
        %v2238 = vpop.f32.mrf.mxu0
        %v2239 = vadd.f32 0.0, %v2238
        %2240 = vmatmul.f32.gmra.mxu0 %v2201
        %v2241 = vpop.f32.mrf.mxu0
        %v2242 = vadd.f32 0.0, %v2241
        %2243 = vmatmul.f32.gmra.mxu0 %v2204
        %v2244 = vpop.f32.mrf.mxu0
        %v2245 = vadd.f32 0.0, %v2244
        %2246 = vmatmul.f32.gmra.mxu0 %v2207
        %v2247 = vpop.f32.mrf.mxu0
        %v2248 = vadd.f32 0.0, %v2247
        %2249 = vmatmul.f32.gmra.mxu0 %v2210
        %v2250 = vpop.f32.mrf.mxu0
        %v2251 = vadd.f32 0.0, %v2250
        %2252 = vmatmul.f32.gmra.mxu0 %v2213
        %v2253 = vpop.f32.mrf.mxu0
        %v2254 = vadd.f32 0.0, %v2253
        %2255 = vdwg.mxu0
        %v2256 = vmul.f32 %v2233, %v2151
        %v2257 = vmul.f32 %v2236, %v2152
        %v2258 = vmul.f32 %v2239, %v2153
        %v2259 = vmul.f32 %v2242, %v2154
        %v2260 = vmul.f32 %v2245, %v2155
        %v2261 = vmul.f32 %v2248, %v2156
        %v2262 = vmul.f32 %v2251, %v2157
        %v2263 = vmul.f32 %v2254, %v2158
        %v2265 = vsel %vm1731, %v1380, 0
        %v2268 = vsel %vm1731, %v1383, 0
        %v2271 = vsel %vm1731, %v1386, 0
        %v2274 = vsel %vm1731, %v1389, 0
        %v2277 = vsel %vm1731, %v1392, 0
        %v2280 = vsel %vm1731, %v1395, 0
        %v2283 = vsel %vm1731, %v1398, 0
        %v2286 = vsel %vm1731, %v1401, 0
        %v2289 = vsel %vm1731, %v1544, 0
        %v2292 = vsel %vm1731, %v1547, 0
        %v2295 = vsel %vm1731, %v1550, 0
        %v2298 = vsel %vm1731, %v1553, 0
        %v2301 = vsel %vm1731, %v1556, 0
        %v2304 = vsel %vm1731, %v1559, 0
        %v2307 = vsel %vm1731, %v1562, 0
        %v2310 = vsel %vm1731, %v1565, 0
        %2312 = vmatpush.xpose.msra.mxu0 0.0
        %2313 = vmatpush.xpose.msra.mxu0 0.0
        %2314 = vmatpush.xpose.msra.mxu0 0.0
        %2315 = vmatpush.xpose.msra.mxu0 0.0
        %2316 = vmatpush.xpose.msra.mxu0 0.0
        %2317 = vmatpush.xpose.msra.mxu0 0.0
        %2318 = vmatpush.xpose.msra.mxu0 0.0
        %2319 = vmatpush.xpose.msra.mxu0 0.0
        %2320 = vmatpush.xpose.msra.mxu0 %v2310
        %2321 = vmatpush.xpose.msra.mxu0 %v2307
        %2322 = vmatpush.xpose.msra.mxu0 %v2304
        %2323 = vmatpush.xpose.msra.mxu0 %v2301
        %2324 = vmatpush.xpose.msra.mxu0 %v2298
        %2325 = vmatpush.xpose.msra.mxu0 %v2295
        %2326 = vmatpush.xpose.msra.mxu0 %v2292
        %2327 = vmatpush.xpose.msra.mxu0 %v2289
        %2328 = vmatmul.f32.gmra.mxu0 %v2265
        %v2329 = vpop.f32.mrf.mxu0
        %v2330 = vadd.f32 0.0, %v2329
        %2331 = vmatmul.f32.gmra.mxu0 %v2268
        %v2332 = vpop.f32.mrf.mxu0
        %v2333 = vadd.f32 0.0, %v2332
        %2334 = vmatmul.f32.gmra.mxu0 %v2271
        %v2335 = vpop.f32.mrf.mxu0
        %v2336 = vadd.f32 0.0, %v2335
        %2337 = vmatmul.f32.gmra.mxu0 %v2274
        %v2338 = vpop.f32.mrf.mxu0
        %v2339 = vadd.f32 0.0, %v2338
        %2340 = vmatmul.f32.gmra.mxu0 %v2277
        %v2341 = vpop.f32.mrf.mxu0
        %v2342 = vadd.f32 0.0, %v2341
        %2343 = vmatmul.f32.gmra.mxu0 %v2280
        %v2344 = vpop.f32.mrf.mxu0
        %v2345 = vadd.f32 0.0, %v2344
        %2346 = vmatmul.f32.gmra.mxu0 %v2283
        %v2347 = vpop.f32.mrf.mxu0
        %v2348 = vadd.f32 0.0, %v2347
        %2349 = vmatmul.f32.gmra.mxu0 %v2286
        %v2350 = vpop.f32.mrf.mxu0
        %v2351 = vadd.f32 0.0, %v2350
        %2352 = vdwg.mxu0
        %v2353 = vsel %vm1731, %v2330, -inf
        %2354 = vmax.xlane.f32.xlu0 %v2353
        %v2355 = vpop.xlane.xlu0 %2354
        %v2356 = vsel %vm1731, %v2333, -inf
        %2357 = vmax.xlane.f32.xlu0 %v2356
        %v2358 = vpop.xlane.xlu0 %2357
        %v2359 = vsel %vm1731, %v2336, -inf
        %2360 = vmax.xlane.f32.xlu0 %v2359
        %v2361 = vpop.xlane.xlu0 %2360
        %v2362 = vsel %vm1731, %v2339, -inf
        %2363 = vmax.xlane.f32.xlu0 %v2362
        %v2364 = vpop.xlane.xlu0 %2363
        %v2365 = vsel %vm1731, %v2342, -inf
        %2366 = vmax.xlane.f32.xlu0 %v2365
        %v2367 = vpop.xlane.xlu0 %2366
        %v2368 = vsel %vm1731, %v2345, -inf
        %2369 = vmax.xlane.f32.xlu0 %v2368
        %v2370 = vpop.xlane.xlu0 %2369
        %v2371 = vsel %vm1731, %v2348, -inf
        %2372 = vmax.xlane.f32.xlu0 %v2371
        %v2373 = vpop.xlane.xlu0 %2372
        %v2374 = vsel %vm1731, %v2351, -inf
        %2375 = vmax.xlane.f32.xlu0 %v2374
        %v2376 = vpop.xlane.xlu0 %2375
        %v2377 = vsub.f32 %v2330, %v2355
        %v2378 = vsub.f32 %v2333, %v2358
        %v2379 = vsub.f32 %v2336, %v2361
        %v2380 = vsub.f32 %v2339, %v2364
        %v2381 = vsub.f32 %v2342, %v2367
        %v2382 = vsub.f32 %v2345, %v2370
        %v2383 = vsub.f32 %v2348, %v2373
        %v2384 = vsub.f32 %v2351, %v2376
        %v2385 = vmul.f32 %v2377, 1.442695
        %v2386 = vpow.pop %v2385
        %v2387 = vmul.f32 %v2378, 1.442695
        %v2388 = vpow.pop %v2387
        %v2389 = vmul.f32 %v2379, 1.442695
        %v2390 = vpow.pop %v2389
        %v2391 = vmul.f32 %v2380, 1.442695
        %v2392 = vpow.pop %v2391
        %v2393 = vmul.f32 %v2381, 1.442695
        %v2394 = vpow.pop %v2393
        %v2395 = vmul.f32 %v2382, 1.442695
        %v2396 = vpow.pop %v2395
        %v2397 = vmul.f32 %v2383, 1.442695
        %v2398 = vpow.pop %v2397
        %v2399 = vmul.f32 %v2384, 1.442695
        %v2400 = vpow.pop %v2399
        %v2401 = vsel %vm1731, %v2386, 0.0
        %2402 = vadd.xlane.f32.xlu0 %v2401
        %v2403 = vpop.xlane.xlu0 %2402
        %v2404 = vsel %vm1731, %v2388, 0.0
        %2405 = vadd.xlane.f32.xlu0 %v2404
        %v2406 = vpop.xlane.xlu0 %2405
        %v2407 = vsel %vm1731, %v2390, 0.0
        %2408 = vadd.xlane.f32.xlu0 %v2407
        %v2409 = vpop.xlane.xlu0 %2408
        %v2410 = vsel %vm1731, %v2392, 0.0
        %2411 = vadd.xlane.f32.xlu0 %v2410
        %v2412 = vpop.xlane.xlu0 %2411
        %v2413 = vsel %vm1731, %v2394, 0.0
        %2414 = vadd.xlane.f32.xlu0 %v2413
        %v2415 = vpop.xlane.xlu0 %2414
        %v2416 = vsel %vm1731, %v2396, 0.0
        %2417 = vadd.xlane.f32.xlu0 %v2416
        %v2418 = vpop.xlane.xlu0 %2417
        %v2419 = vsel %vm1731, %v2398, 0.0
        %2420 = vadd.xlane.f32.xlu0 %v2419
        %v2421 = vpop.xlane.xlu0 %2420
        %v2422 = vsel %vm1731, %v2400, 0.0
        %2423 = vadd.xlane.f32.xlu0 %v2422
        %v2424 = vpop.xlane.xlu0 %2423
        %v2425 = vrcp.pop %v2403
        %v2426 = vrcp.pop %v2406
        %v2427 = vrcp.pop %v2409
        %v2428 = vrcp.pop %v2412
        %v2429 = vrcp.pop %v2415
        %v2430 = vrcp.pop %v2418
        %v2431 = vrcp.pop %v2421
        %v2432 = vrcp.pop %v2424
        %v2434 = vsel %vm1731, %v2386, 0
        %v2437 = vsel %vm1731, %v2388, 0
        %v2440 = vsel %vm1731, %v2390, 0
        %v2443 = vsel %vm1731, %v2392, 0
        %v2446 = vsel %vm1731, %v2394, 0
        %v2449 = vsel %vm1731, %v2396, 0
        %v2452 = vsel %vm1731, %v2398, 0
        %v2455 = vsel %vm1731, %v2400, 0
        %2457 = vmatpush.msra.mxu0 0.0
        %2458 = vmatpush.msra.mxu0 0.0
        %2459 = vmatpush.msra.mxu0 0.0
        %2460 = vmatpush.msra.mxu0 0.0
        %2461 = vmatpush.msra.mxu0 0.0
        %2462 = vmatpush.msra.mxu0 0.0
        %2463 = vmatpush.msra.mxu0 0.0
        %2464 = vmatpush.msra.mxu0 0.0
        %2465 = vmatpush.msra.mxu0 %v1729
        %2466 = vmatpush.msra.mxu0 %v1726
        %2467 = vmatpush.msra.mxu0 %v1723
        %2468 = vmatpush.msra.mxu0 %v1720
        %2469 = vmatpush.msra.mxu0 %v1717
        %2470 = vmatpush.msra.mxu0 %v1714
        %2471 = vmatpush.msra.mxu0 %v1711
        %2472 = vmatpush.msra.mxu0 %v1708
        %2473 = vmatmul.f32.gmra.mxu0 %v2434
        %v2474 = vpop.f32.mrf.mxu0
        %v2475 = vadd.f32 0.0, %v2474
        %2476 = vmatmul.f32.gmra.mxu0 %v2437
        %v2477 = vpop.f32.mrf.mxu0
        %v2478 = vadd.f32 0.0, %v2477
        %2479 = vmatmul.f32.gmra.mxu0 %v2440
        %v2480 = vpop.f32.mrf.mxu0
        %v2481 = vadd.f32 0.0, %v2480
        %2482 = vmatmul.f32.gmra.mxu0 %v2443
        %v2483 = vpop.f32.mrf.mxu0
        %v2484 = vadd.f32 0.0, %v2483
        %2485 = vmatmul.f32.gmra.mxu0 %v2446
        %v2486 = vpop.f32.mrf.mxu0
        %v2487 = vadd.f32 0.0, %v2486
        %2488 = vmatmul.f32.gmra.mxu0 %v2449
        %v2489 = vpop.f32.mrf.mxu0
        %v2490 = vadd.f32 0.0, %v2489
        %2491 = vmatmul.f32.gmra.mxu0 %v2452
        %v2492 = vpop.f32.mrf.mxu0
        %v2493 = vadd.f32 0.0, %v2492
        %2494 = vmatmul.f32.gmra.mxu0 %v2455
        %v2495 = vpop.f32.mrf.mxu0
        %v2496 = vadd.f32 0.0, %v2495
        %2497 = vdwg.mxu0
        %v2498 = vmul.f32 %v2475, %v2425
        %v2499 = vmul.f32 %v2478, %v2426
        %v2500 = vmul.f32 %v2481, %v2427
        %v2501 = vmul.f32 %v2484, %v2428
        %v2502 = vmul.f32 %v2487, %v2429
        %v2503 = vmul.f32 %v2490, %v2430
        %v2504 = vmul.f32 %v2493, %v2431
        %v2505 = vmul.f32 %v2496, %v2432
        %2506 = vrot.lane.b32.xlu0 %v1380, 64
        %v2507 = vpop.permute.xlu0 %2506
        %2508 = vrot.lane.b32.xlu0 %v1383, 64
        %v2509 = vpop.permute.xlu0 %2508
        %2510 = vrot.lane.b32.xlu0 %v1386, 64
        %v2511 = vpop.permute.xlu0 %2510
        %2512 = vrot.lane.b32.xlu0 %v1389, 64
        %v2513 = vpop.permute.xlu0 %2512
        %2514 = vrot.lane.b32.xlu0 %v1392, 64
        %v2515 = vpop.permute.xlu0 %2514
        %2516 = vrot.lane.b32.xlu0 %v1395, 64
        %v2517 = vpop.permute.xlu0 %2516
        %2518 = vrot.lane.b32.xlu0 %v1398, 64
        %v2519 = vpop.permute.xlu0 %2518
        %2520 = vrot.lane.b32.xlu0 %v1401, 64
        %v2521 = vpop.permute.xlu0 %2520
        %2522 = vrot.lane.b32.xlu0 %v1544, 64
        %v2523 = vpop.permute.xlu0 %2522
        %2524 = vrot.lane.b32.xlu0 %v1547, 64
        %v2525 = vpop.permute.xlu0 %2524
        %2526 = vrot.lane.b32.xlu0 %v1550, 64
        %v2527 = vpop.permute.xlu0 %2526
        %2528 = vrot.lane.b32.xlu0 %v1553, 64
        %v2529 = vpop.permute.xlu0 %2528
        %2530 = vrot.lane.b32.xlu0 %v1556, 64
        %v2531 = vpop.permute.xlu0 %2530
        %2532 = vrot.lane.b32.xlu0 %v1559, 64
        %v2533 = vpop.permute.xlu0 %2532
        %2534 = vrot.lane.b32.xlu0 %v1562, 64
        %v2535 = vpop.permute.xlu0 %2534
        %2536 = vrot.lane.b32.xlu0 %v1565, 64
        %v2537 = vpop.permute.xlu0 %2536
        %v2538 = vsel %vm1731, %v2507, 0
        %v2540 = vsel %vm1731, %v2509, 0
        %v2542 = vsel %vm1731, %v2511, 0
        %v2544 = vsel %vm1731, %v2513, 0
        %v2546 = vsel %vm1731, %v2515, 0
        %v2548 = vsel %vm1731, %v2517, 0
        %v2550 = vsel %vm1731, %v2519, 0
        %v2552 = vsel %vm1731, %v2521, 0
        %v2554 = vsel %vm1731, %v2523, 0
        %v2556 = vsel %vm1731, %v2525, 0
        %v2558 = vsel %vm1731, %v2527, 0
        %v2560 = vsel %vm1731, %v2529, 0
        %v2562 = vsel %vm1731, %v2531, 0
        %v2564 = vsel %vm1731, %v2533, 0
        %v2566 = vsel %vm1731, %v2535, 0
        %v2568 = vsel %vm1731, %v2537, 0
        %2570 = vmatpush.xpose.msra.mxu0 0.0
        %2571 = vmatpush.xpose.msra.mxu0 0.0
        %2572 = vmatpush.xpose.msra.mxu0 0.0
        %2573 = vmatpush.xpose.msra.mxu0 0.0
        %2574 = vmatpush.xpose.msra.mxu0 0.0
        %2575 = vmatpush.xpose.msra.mxu0 0.0
        %2576 = vmatpush.xpose.msra.mxu0 0.0
        %2577 = vmatpush.xpose.msra.mxu0 0.0
        %2578 = vmatpush.xpose.msra.mxu0 %v2568
        %2579 = vmatpush.xpose.msra.mxu0 %v2566
        %2580 = vmatpush.xpose.msra.mxu0 %v2564
        %2581 = vmatpush.xpose.msra.mxu0 %v2562
        %2582 = vmatpush.xpose.msra.mxu0 %v2560
        %2583 = vmatpush.xpose.msra.mxu0 %v2558
        %2584 = vmatpush.xpose.msra.mxu0 %v2556
        %2585 = vmatpush.xpose.msra.mxu0 %v2554
        %2586 = vmatmul.f32.gmra.mxu0 %v2538
        %v2587 = vpop.f32.mrf.mxu0
        %v2588 = vadd.f32 0.0, %v2587
        %2589 = vmatmul.f32.gmra.mxu0 %v2540
        %v2590 = vpop.f32.mrf.mxu0
        %v2591 = vadd.f32 0.0, %v2590
        %2592 = vmatmul.f32.gmra.mxu0 %v2542
        %v2593 = vpop.f32.mrf.mxu0
        %v2594 = vadd.f32 0.0, %v2593
        %2595 = vmatmul.f32.gmra.mxu0 %v2544
        %v2596 = vpop.f32.mrf.mxu0
        %v2597 = vadd.f32 0.0, %v2596
        %2598 = vmatmul.f32.gmra.mxu0 %v2546
        %v2599 = vpop.f32.mrf.mxu0
        %v2600 = vadd.f32 0.0, %v2599
        %2601 = vmatmul.f32.gmra.mxu0 %v2548
        %v2602 = vpop.f32.mrf.mxu0
        %v2603 = vadd.f32 0.0, %v2602
        %2604 = vmatmul.f32.gmra.mxu0 %v2550
        %v2605 = vpop.f32.mrf.mxu0
        %v2606 = vadd.f32 0.0, %v2605
        %2607 = vmatmul.f32.gmra.mxu0 %v2552
        %v2608 = vpop.f32.mrf.mxu0
        %v2609 = vadd.f32 0.0, %v2608
        %2610 = vdwg.mxu0
        %v2611 = vsel %vm1731, %v2588, -inf
        %2612 = vmax.xlane.f32.xlu0 %v2611
        %v2613 = vpop.xlane.xlu0 %2612
        %v2614 = vsel %vm1731, %v2591, -inf
        %2615 = vmax.xlane.f32.xlu0 %v2614
        %v2616 = vpop.xlane.xlu0 %2615
        %v2617 = vsel %vm1731, %v2594, -inf
        %2618 = vmax.xlane.f32.xlu0 %v2617
        %v2619 = vpop.xlane.xlu0 %2618
        %v2620 = vsel %vm1731, %v2597, -inf
        %2621 = vmax.xlane.f32.xlu0 %v2620
        %v2622 = vpop.xlane.xlu0 %2621
        %v2623 = vsel %vm1731, %v2600, -inf
        %2624 = vmax.xlane.f32.xlu0 %v2623
        %v2625 = vpop.xlane.xlu0 %2624
        %v2626 = vsel %vm1731, %v2603, -inf
        %2627 = vmax.xlane.f32.xlu0 %v2626
        %v2628 = vpop.xlane.xlu0 %2627
        %v2629 = vsel %vm1731, %v2606, -inf
        %2630 = vmax.xlane.f32.xlu0 %v2629
        %v2631 = vpop.xlane.xlu0 %2630
        %v2632 = vsel %vm1731, %v2609, -inf
        %2633 = vmax.xlane.f32.xlu0 %v2632
        %v2634 = vpop.xlane.xlu0 %2633
        %v2635 = vsub.f32 %v2588, %v2613
        %v2636 = vsub.f32 %v2591, %v2616
        %v2637 = vsub.f32 %v2594, %v2619
        %v2638 = vsub.f32 %v2597, %v2622
        %v2639 = vsub.f32 %v2600, %v2625
        %v2640 = vsub.f32 %v2603, %v2628
        %v2641 = vsub.f32 %v2606, %v2631
        %v2642 = vsub.f32 %v2609, %v2634
        %v2643 = vmul.f32 %v2635, 1.442695
        %v2644 = vpow.pop %v2643
        %v2645 = vmul.f32 %v2636, 1.442695
        %v2646 = vpow.pop %v2645
        %v2647 = vmul.f32 %v2637, 1.442695
        %v2648 = vpow.pop %v2647
        %v2649 = vmul.f32 %v2638, 1.442695
        %v2650 = vpow.pop %v2649
        %v2651 = vmul.f32 %v2639, 1.442695
        %v2652 = vpow.pop %v2651
        %v2653 = vmul.f32 %v2640, 1.442695
        %v2654 = vpow.pop %v2653
        %v2655 = vmul.f32 %v2641, 1.442695
        %v2656 = vpow.pop %v2655
        %v2657 = vmul.f32 %v2642, 1.442695
        %v2658 = vpow.pop %v2657
        %v2659 = vsel %vm1731, %v2644, 0.0
        %2660 = vadd.xlane.f32.xlu0 %v2659
        %v2661 = vpop.xlane.xlu0 %2660
        %v2662 = vsel %vm1731, %v2646, 0.0
        %2663 = vadd.xlane.f32.xlu0 %v2662
        %v2664 = vpop.xlane.xlu0 %2663
        %v2665 = vsel %vm1731, %v2648, 0.0
        %2666 = vadd.xlane.f32.xlu0 %v2665
        %v2667 = vpop.xlane.xlu0 %2666
        %v2668 = vsel %vm1731, %v2650, 0.0
        %2669 = vadd.xlane.f32.xlu0 %v2668
        %v2670 = vpop.xlane.xlu0 %2669
        %v2671 = vsel %vm1731, %v2652, 0.0
        %2672 = vadd.xlane.f32.xlu0 %v2671
        %v2673 = vpop.xlane.xlu0 %2672
        %v2674 = vsel %vm1731, %v2654, 0.0
        %2675 = vadd.xlane.f32.xlu0 %v2674
        %v2676 = vpop.xlane.xlu0 %2675
        %v2677 = vsel %vm1731, %v2656, 0.0
        %2678 = vadd.xlane.f32.xlu0 %v2677
        %v2679 = vpop.xlane.xlu0 %2678
        %v2680 = vsel %vm1731, %v2658, 0.0
        %2681 = vadd.xlane.f32.xlu0 %v2680
        %v2682 = vpop.xlane.xlu0 %2681
        %v2683 = vrcp.pop %v2661
        %v2684 = vrcp.pop %v2664
        %v2685 = vrcp.pop %v2667
        %v2686 = vrcp.pop %v2670
        %v2687 = vrcp.pop %v2673
        %v2688 = vrcp.pop %v2676
        %v2689 = vrcp.pop %v2679
        %v2690 = vrcp.pop %v2682
        %2699 = vrot.lane.b32.xlu0 %v1708, 64
        %v2700 = vpop.permute.xlu0 %2699
        %2701 = vrot.lane.b32.xlu0 %v1711, 64
        %v2702 = vpop.permute.xlu0 %2701
        %2703 = vrot.lane.b32.xlu0 %v1714, 64
        %v2704 = vpop.permute.xlu0 %2703
        %2705 = vrot.lane.b32.xlu0 %v1717, 64
        %v2706 = vpop.permute.xlu0 %2705
        %2707 = vrot.lane.b32.xlu0 %v1720, 64
        %v2708 = vpop.permute.xlu0 %2707
        %2709 = vrot.lane.b32.xlu0 %v1723, 64
        %v2710 = vpop.permute.xlu0 %2709
        %2711 = vrot.lane.b32.xlu0 %v1726, 64
        %v2712 = vpop.permute.xlu0 %2711
        %2713 = vrot.lane.b32.xlu0 %v1729, 64
        %v2714 = vpop.permute.xlu0 %2713
        %v2724 = vsel %vm1731, %v2644, 0
        %v2727 = vsel %vm1731, %v2646, 0
        %v2730 = vsel %vm1731, %v2648, 0
        %v2733 = vsel %vm1731, %v2650, 0
        %v2736 = vsel %vm1731, %v2652, 0
        %v2739 = vsel %vm1731, %v2654, 0
        %v2742 = vsel %vm1731, %v2656, 0
        %v2745 = vsel %vm1731, %v2658, 0
        %2747 = vmatpush.msra.mxu0 0.0
        %2748 = vmatpush.msra.mxu0 0.0
        %2749 = vmatpush.msra.mxu0 0.0
        %2750 = vmatpush.msra.mxu0 0.0
        %2751 = vmatpush.msra.mxu0 0.0
        %2752 = vmatpush.msra.mxu0 0.0
        %2753 = vmatpush.msra.mxu0 0.0
        %2754 = vmatpush.msra.mxu0 0.0
        %2755 = vmatpush.msra.mxu0 %v2714
        %2756 = vmatpush.msra.mxu0 %v2712
        %2757 = vmatpush.msra.mxu0 %v2710
        %2758 = vmatpush.msra.mxu0 %v2708
        %2759 = vmatpush.msra.mxu0 %v2706
        %2760 = vmatpush.msra.mxu0 %v2704
        %2761 = vmatpush.msra.mxu0 %v2702
        %2762 = vmatpush.msra.mxu0 %v2700
        %2763 = vmatmul.f32.gmra.mxu0 %v2724
        %v2764 = vpop.f32.mrf.mxu0
        %v2765 = vadd.f32 0.0, %v2764
        %2766 = vmatmul.f32.gmra.mxu0 %v2727
        %v2767 = vpop.f32.mrf.mxu0
        %v2768 = vadd.f32 0.0, %v2767
        %2769 = vmatmul.f32.gmra.mxu0 %v2730
        %v2770 = vpop.f32.mrf.mxu0
        %v2771 = vadd.f32 0.0, %v2770
        %2772 = vmatmul.f32.gmra.mxu0 %v2733
        %v2773 = vpop.f32.mrf.mxu0
        %v2774 = vadd.f32 0.0, %v2773
        %2775 = vmatmul.f32.gmra.mxu0 %v2736
        %v2776 = vpop.f32.mrf.mxu0
        %v2777 = vadd.f32 0.0, %v2776
        %2778 = vmatmul.f32.gmra.mxu0 %v2739
        %v2779 = vpop.f32.mrf.mxu0
        %v2780 = vadd.f32 0.0, %v2779
        %2781 = vmatmul.f32.gmra.mxu0 %v2742
        %v2782 = vpop.f32.mrf.mxu0
        %v2783 = vadd.f32 0.0, %v2782
        %2784 = vmatmul.f32.gmra.mxu0 %v2745
        %v2785 = vpop.f32.mrf.mxu0
        %v2786 = vadd.f32 0.0, %v2785
        %2787 = vdwg.mxu0
        %v2788 = vmul.f32 %v2765, %v2683
        %v2789 = vmul.f32 %v2768, %v2684
        %v2790 = vmul.f32 %v2771, %v2685
        %v2791 = vmul.f32 %v2774, %v2686
        %v2792 = vmul.f32 %v2777, %v2687
        %v2793 = vmul.f32 %v2780, %v2688
        %v2794 = vmul.f32 %v2783, %v2689
        %v2795 = vmul.f32 %v2786, %v2690
        %2804 = vrot.lane.b32.xlu0 %v2256, 64
        %v2805 = vpop.permute.xlu0 %2804
        %2806 = vrot.lane.b32.xlu0 %v2257, 64
        %v2807 = vpop.permute.xlu0 %2806
        %2808 = vrot.lane.b32.xlu0 %v2258, 64
        %v2809 = vpop.permute.xlu0 %2808
        %2810 = vrot.lane.b32.xlu0 %v2259, 64
        %v2811 = vpop.permute.xlu0 %2810
        %2812 = vrot.lane.b32.xlu0 %v2260, 64
        %v2813 = vpop.permute.xlu0 %2812
        %2814 = vrot.lane.b32.xlu0 %v2261, 64
        %v2815 = vpop.permute.xlu0 %2814
        %2816 = vrot.lane.b32.xlu0 %v2262, 64
        %v2817 = vpop.permute.xlu0 %2816
        %2818 = vrot.lane.b32.xlu0 %v2263, 64
        %v2819 = vpop.permute.xlu0 %2818
        %2836 = vrot.lane.b32.xlu0 %v2788, 64
        %v2837 = vpop.permute.xlu0 %2836
        %2838 = vrot.lane.b32.xlu0 %v2789, 64
        %v2839 = vpop.permute.xlu0 %2838
        %2840 = vrot.lane.b32.xlu0 %v2790, 64
        %v2841 = vpop.permute.xlu0 %2840
        %2842 = vrot.lane.b32.xlu0 %v2791, 64
        %v2843 = vpop.permute.xlu0 %2842
        %2844 = vrot.lane.b32.xlu0 %v2792, 64
        %v2845 = vpop.permute.xlu0 %2844
        %2846 = vrot.lane.b32.xlu0 %v2793, 64
        %v2847 = vpop.permute.xlu0 %2846
        %2848 = vrot.lane.b32.xlu0 %v2794, 64
        %v2849 = vpop.permute.xlu0 %2848
        %2850 = vrot.lane.b32.xlu0 %v2795, 64
        %v2851 = vpop.permute.xlu0 %2850
        %v2860 = vsel %vm1731, %v1966, %v2805
        %v2861 = vsel %vm1731, %v1967, %v2807
        %v2862 = vsel %vm1731, %v1968, %v2809
        %v2863 = vsel %vm1731, %v1969, %v2811
        %v2864 = vsel %vm1731, %v1970, %v2813
        %v2865 = vsel %vm1731, %v1971, %v2815
        %v2866 = vsel %vm1731, %v1972, %v2817
        %v2867 = vsel %vm1731, %v1973, %v2819
        %v2868 = vsel %vm1731, %v2498, %v2837
        %v2869 = vsel %vm1731, %v2499, %v2839
        %v2870 = vsel %vm1731, %v2500, %v2841
        %v2871 = vsel %vm1731, %v2501, %v2843
        %v2872 = vsel %vm1731, %v2502, %v2845
        %v2873 = vsel %vm1731, %v2503, %v2847
        %v2874 = vsel %vm1731, %v2504, %v2849
        %v2875 = vsel %vm1731, %v2505, %v2851
        %v2876 = vld [vmem:[%s6] sm:$0x3]
        %v2878 = vperm.slane %v2876, 0
        %v2879 = vperm.slane %v2876, 1
        %2882 = vmatpush.msra.mxu0 %v812
        %2883 = vmatpush.msra.mxu0 %v810
        %2884 = vmatpush.msra.mxu0 %v808
        %2885 = vmatpush.msra.mxu0 %v806
        %2886 = vmatpush.msra.mxu0 %v804
        %2887 = vmatpush.msra.mxu0 %v802
        %2888 = vmatpush.msra.mxu0 %v800
        %2889 = vmatpush.msra.mxu0 %v798
        %2890 = vmatpush.msra.mxu0 %v796
        %2891 = vmatpush.msra.mxu0 %v794
        %2892 = vmatpush.msra.mxu0 %v792
        %2893 = vmatpush.msra.mxu0 %v790
        %2894 = vmatpush.msra.mxu0 %v788
        %2895 = vmatpush.msra.mxu0 %v786
        %2896 = vmatpush.msra.mxu0 %v784
        %2897 = vmatpush.msra.mxu0 %v782
        %2898 = vmatmul.f32.gmra.mxu0 %v2860
        %v2899 = vpop.f32.mrf.mxu0
        %v2900 = vadd.f32 %v2878, %v2899
        %2901 = vmatmul.f32.gmra.mxu0 %v2861
        %v2902 = vpop.f32.mrf.mxu0
        %v2903 = vadd.f32 %v2878, %v2902
        %2904 = vmatmul.f32.gmra.mxu0 %v2862
        %v2905 = vpop.f32.mrf.mxu0
        %v2906 = vadd.f32 %v2878, %v2905
        %2907 = vmatmul.f32.gmra.mxu0 %v2863
        %v2908 = vpop.f32.mrf.mxu0
        %v2909 = vadd.f32 %v2878, %v2908
        %2910 = vmatmul.f32.gmra.mxu0 %v2864
        %v2911 = vpop.f32.mrf.mxu0
        %v2912 = vadd.f32 %v2878, %v2911
        %2913 = vmatmul.f32.gmra.mxu0 %v2865
        %v2914 = vpop.f32.mrf.mxu0
        %v2915 = vadd.f32 %v2878, %v2914
        %2916 = vmatmul.f32.gmra.mxu0 %v2866
        %v2917 = vpop.f32.mrf.mxu0
        %v2918 = vadd.f32 %v2878, %v2917
        %2919 = vmatmul.f32.gmra.mxu0 %v2867
        %v2920 = vpop.f32.mrf.mxu0
        %v2921 = vadd.f32 %v2878, %v2920
        %2922 = vdwg.mxu0
        %2923 = vmatpush.msra.mxu0 %v844
        %2924 = vmatpush.msra.mxu0 %v842
        %2925 = vmatpush.msra.mxu0 %v840
        %2926 = vmatpush.msra.mxu0 %v838
        %2927 = vmatpush.msra.mxu0 %v836
        %2928 = vmatpush.msra.mxu0 %v834
        %2929 = vmatpush.msra.mxu0 %v832
        %2930 = vmatpush.msra.mxu0 %v830
        %2931 = vmatpush.msra.mxu0 %v828
        %2932 = vmatpush.msra.mxu0 %v826
        %2933 = vmatpush.msra.mxu0 %v824
        %2934 = vmatpush.msra.mxu0 %v822
        %2935 = vmatpush.msra.mxu0 %v820
        %2936 = vmatpush.msra.mxu0 %v818
        %2937 = vmatpush.msra.mxu0 %v816
        %2938 = vmatpush.msra.mxu0 %v814
        %2939 = vmatmul.f32.gmra.mxu0 %v2868
        %v2940 = vpop.f32.mrf.mxu0
        %v2941 = vadd.f32 %v2900, %v2940
        %2942 = vmatmul.f32.gmra.mxu0 %v2869
        %v2943 = vpop.f32.mrf.mxu0
        %v2944 = vadd.f32 %v2903, %v2943
        %2945 = vmatmul.f32.gmra.mxu0 %v2870
        %v2946 = vpop.f32.mrf.mxu0
        %v2947 = vadd.f32 %v2906, %v2946
        %2948 = vmatmul.f32.gmra.mxu0 %v2871
        %v2949 = vpop.f32.mrf.mxu0
        %v2950 = vadd.f32 %v2909, %v2949
        %2951 = vmatmul.f32.gmra.mxu0 %v2872
        %v2952 = vpop.f32.mrf.mxu0
        %v2953 = vadd.f32 %v2912, %v2952
        %2954 = vmatmul.f32.gmra.mxu0 %v2873
        %v2955 = vpop.f32.mrf.mxu0
        %v2956 = vadd.f32 %v2915, %v2955
        %2957 = vmatmul.f32.gmra.mxu0 %v2874
        %v2958 = vpop.f32.mrf.mxu0
        %v2959 = vadd.f32 %v2918, %v2958
        %2960 = vmatmul.f32.gmra.mxu0 %v2875
        %v2961 = vpop.f32.mrf.mxu0
        %v2962 = vadd.f32 %v2921, %v2961
        %2963 = vdwg.mxu0
        %2964 = vmatpush.msra.mxu0 %v813
        %2965 = vmatpush.msra.mxu0 %v811
        %2966 = vmatpush.msra.mxu0 %v809
        %2967 = vmatpush.msra.mxu0 %v807
        %2968 = vmatpush.msra.mxu0 %v805
        %2969 = vmatpush.msra.mxu0 %v803
        %2970 = vmatpush.msra.mxu0 %v801
        %2971 = vmatpush.msra.mxu0 %v799
        %2972 = vmatpush.msra.mxu0 %v797
        %2973 = vmatpush.msra.mxu0 %v795
        %2974 = vmatpush.msra.mxu0 %v793
        %2975 = vmatpush.msra.mxu0 %v791
        %2976 = vmatpush.msra.mxu0 %v789
        %2977 = vmatpush.msra.mxu0 %v787
        %2978 = vmatpush.msra.mxu0 %v785
        %2979 = vmatpush.msra.mxu0 %v783
        %2980 = vmatmul.f32.gmra.mxu0 %v2860
        %v2981 = vpop.f32.mrf.mxu0
        %v2982 = vadd.f32 %v2879, %v2981
        %2983 = vmatmul.f32.gmra.mxu0 %v2861
        %v2984 = vpop.f32.mrf.mxu0
        %v2985 = vadd.f32 %v2879, %v2984
        %2986 = vmatmul.f32.gmra.mxu0 %v2862
        %v2987 = vpop.f32.mrf.mxu0
        %v2988 = vadd.f32 %v2879, %v2987
        %2989 = vmatmul.f32.gmra.mxu0 %v2863
        %v2990 = vpop.f32.mrf.mxu0
        %v2991 = vadd.f32 %v2879, %v2990
        %2992 = vmatmul.f32.gmra.mxu0 %v2864
        %v2993 = vpop.f32.mrf.mxu0
        %v2994 = vadd.f32 %v2879, %v2993
        %2995 = vmatmul.f32.gmra.mxu0 %v2865
        %v2996 = vpop.f32.mrf.mxu0
        %v2997 = vadd.f32 %v2879, %v2996
        %2998 = vmatmul.f32.gmra.mxu0 %v2866
        %v2999 = vpop.f32.mrf.mxu0
        %v3000 = vadd.f32 %v2879, %v2999
        %3001 = vmatmul.f32.gmra.mxu0 %v2867
        %v3002 = vpop.f32.mrf.mxu0
        %v3003 = vadd.f32 %v2879, %v3002
        %3004 = vdwg.mxu0
        %3005 = vmatpush.msra.mxu0 %v845
        %3006 = vmatpush.msra.mxu0 %v843
        %3007 = vmatpush.msra.mxu0 %v841
        %3008 = vmatpush.msra.mxu0 %v839
        %3009 = vmatpush.msra.mxu0 %v837
        %3010 = vmatpush.msra.mxu0 %v835
        %3011 = vmatpush.msra.mxu0 %v833
        %3012 = vmatpush.msra.mxu0 %v831
        %3013 = vmatpush.msra.mxu0 %v829
        %3014 = vmatpush.msra.mxu0 %v827
        %3015 = vmatpush.msra.mxu0 %v825
        %3016 = vmatpush.msra.mxu0 %v823
        %3017 = vmatpush.msra.mxu0 %v821
        %3018 = vmatpush.msra.mxu0 %v819
        %3019 = vmatpush.msra.mxu0 %v817
        %3020 = vmatpush.msra.mxu0 %v815
        %3021 = vmatmul.f32.gmra.mxu0 %v2868
        %v3022 = vpop.f32.mrf.mxu0
        %v3023 = vadd.f32 %v2982, %v3022
        %3024 = vmatmul.f32.gmra.mxu0 %v2869
        %v3025 = vpop.f32.mrf.mxu0
        %v3026 = vadd.f32 %v2985, %v3025
        %3027 = vmatmul.f32.gmra.mxu0 %v2870
        %v3028 = vpop.f32.mrf.mxu0
        %v3029 = vadd.f32 %v2988, %v3028
        %3030 = vmatmul.f32.gmra.mxu0 %v2871
        %v3031 = vpop.f32.mrf.mxu0
        %v3032 = vadd.f32 %v2991, %v3031
        %3033 = vmatmul.f32.gmra.mxu0 %v2872
        %v3034 = vpop.f32.mrf.mxu0
        %v3035 = vadd.f32 %v2994, %v3034
        %3036 = vmatmul.f32.gmra.mxu0 %v2873
        %v3037 = vpop.f32.mrf.mxu0
        %v3038 = vadd.f32 %v2997, %v3037
        %3039 = vmatmul.f32.gmra.mxu0 %v2874
        %v3040 = vpop.f32.mrf.mxu0
        %v3041 = vadd.f32 %v3000, %v3040
        %3042 = vmatmul.f32.gmra.mxu0 %v2875
        %v3043 = vpop.f32.mrf.mxu0
        %v3044 = vadd.f32 %v3003, %v3043
        %3045 = vdwg.mxu0
        %v3046 = vadd.f32 %v2941, %v574
        %v3047 = vadd.f32 %v3023, %v575
        %v3048 = vadd.f32 %v2944, %v576
        %v3049 = vadd.f32 %v3026, %v577
        %v3050 = vadd.f32 %v2947, %v578
        %v3051 = vadd.f32 %v3029, %v579
        %v3052 = vadd.f32 %v2950, %v580
        %v3053 = vadd.f32 %v3032, %v581
        %v3054 = vadd.f32 %v2953, %v582
        %v3055 = vadd.f32 %v3035, %v583
        %v3056 = vadd.f32 %v2956, %v584
        %v3057 = vadd.f32 %v3038, %v585
        %v3058 = vadd.f32 %v2959, %v586
        %v3059 = vadd.f32 %v3041, %v587
        %v3060 = vadd.f32 %v2962, %v588
        %v3061 = vadd.f32 %v3044, %v589
        %v3062 = vld [vmem:[%s7] sm:$0x3]
        %v3063 = vld [vmem:[%s8] sm:$0x3]
        %v3064 = vadd.f32 %v3046, %v3047
        %3065 = vadd.xlane.f32.xlu0 %v3064
        %v3066 = vpop.xlane.xlu0 %3065
        %v3067 = vadd.f32 %v3048, %v3049
        %3068 = vadd.xlane.f32.xlu0 %v3067
        %v3069 = vpop.xlane.xlu0 %3068
        %v3070 = vadd.f32 %v3050, %v3051
        %3071 = vadd.xlane.f32.xlu0 %v3070
        %v3072 = vpop.xlane.xlu0 %3071
        %v3073 = vadd.f32 %v3052, %v3053
        %3074 = vadd.xlane.f32.xlu0 %v3073
        %v3075 = vpop.xlane.xlu0 %3074
        %v3076 = vadd.f32 %v3054, %v3055
        %3077 = vadd.xlane.f32.xlu0 %v3076
        %v3078 = vpop.xlane.xlu0 %3077
        %v3079 = vadd.f32 %v3056, %v3057
        %3080 = vadd.xlane.f32.xlu0 %v3079
        %v3081 = vpop.xlane.xlu0 %3080
        %v3082 = vadd.f32 %v3058, %v3059
        %3083 = vadd.xlane.f32.xlu0 %v3082
        %v3084 = vpop.xlane.xlu0 %3083
        %v3085 = vadd.f32 %v3060, %v3061
        %3086 = vadd.xlane.f32.xlu0 %v3085
        %v3087 = vpop.xlane.xlu0 %3086
        %v3088 = vmul.f32 %v3066, %v1006
        %v3089 = vmul.f32 %v3069, %v1006
        %v3090 = vmul.f32 %v3072, %v1006
        %v3091 = vmul.f32 %v3075, %v1006
        %v3092 = vmul.f32 %v3078, %v1006
        %v3093 = vmul.f32 %v3081, %v1006
        %v3094 = vmul.f32 %v3084, %v1006
        %v3095 = vmul.f32 %v3087, %v1006
        %v3096 = vsub.f32 %v3046, %v3088
        %v3097 = vsub.f32 %v3047, %v3088
        %v3098 = vsub.f32 %v3048, %v3089
        %v3099 = vsub.f32 %v3049, %v3089
        %v3100 = vsub.f32 %v3050, %v3090
        %v3101 = vsub.f32 %v3051, %v3090
        %v3102 = vsub.f32 %v3052, %v3091
        %v3103 = vsub.f32 %v3053, %v3091
        %v3104 = vsub.f32 %v3054, %v3092
        %v3105 = vsub.f32 %v3055, %v3092
        %v3106 = vsub.f32 %v3056, %v3093
        %v3107 = vsub.f32 %v3057, %v3093
        %v3108 = vsub.f32 %v3058, %v3094
        %v3109 = vsub.f32 %v3059, %v3094
        %v3110 = vsub.f32 %v3060, %v3095
        %v3111 = vsub.f32 %v3061, %v3095
        %v3112 = vmul.f32 %v3096, %v3096
        %v3113 = vmul.f32 %v3097, %v3097
        %v3114 = vmul.f32 %v3098, %v3098
        %v3115 = vmul.f32 %v3099, %v3099
        %v3116 = vmul.f32 %v3100, %v3100
        %v3117 = vmul.f32 %v3101, %v3101
        %v3118 = vmul.f32 %v3102, %v3102
        %v3119 = vmul.f32 %v3103, %v3103
        %v3120 = vmul.f32 %v3104, %v3104
        %v3121 = vmul.f32 %v3105, %v3105
        %v3122 = vmul.f32 %v3106, %v3106
        %v3123 = vmul.f32 %v3107, %v3107
        %v3124 = vmul.f32 %v3108, %v3108
        %v3125 = vmul.f32 %v3109, %v3109
        %v3126 = vmul.f32 %v3110, %v3110
        %v3127 = vmul.f32 %v3111, %v3111
        %v3128 = vadd.f32 %v3112, %v3113
        %3129 = vadd.xlane.f32.xlu0 %v3128
        %v3130 = vpop.xlane.xlu0 %3129
        %v3131 = vadd.f32 %v3114, %v3115
        %3132 = vadd.xlane.f32.xlu0 %v3131
        %v3133 = vpop.xlane.xlu0 %3132
        %v3134 = vadd.f32 %v3116, %v3117
        %3135 = vadd.xlane.f32.xlu0 %v3134
        %v3136 = vpop.xlane.xlu0 %3135
        %v3137 = vadd.f32 %v3118, %v3119
        %3138 = vadd.xlane.f32.xlu0 %v3137
        %v3139 = vpop.xlane.xlu0 %3138
        %v3140 = vadd.f32 %v3120, %v3121
        %3141 = vadd.xlane.f32.xlu0 %v3140
        %v3142 = vpop.xlane.xlu0 %3141
        %v3143 = vadd.f32 %v3122, %v3123
        %3144 = vadd.xlane.f32.xlu0 %v3143
        %v3145 = vpop.xlane.xlu0 %3144
        %v3146 = vadd.f32 %v3124, %v3125
        %3147 = vadd.xlane.f32.xlu0 %v3146
        %v3148 = vpop.xlane.xlu0 %3147
        %v3149 = vadd.f32 %v3126, %v3127
        %3150 = vadd.xlane.f32.xlu0 %v3149
        %v3151 = vpop.xlane.xlu0 %3150
        %v3152 = vmul.f32 %v3130, %v1006
        %v3153 = vmul.f32 %v3133, %v1006
        %v3154 = vmul.f32 %v3136, %v1006
        %v3155 = vmul.f32 %v3139, %v1006
        %v3156 = vmul.f32 %v3142, %v1006
        %v3157 = vmul.f32 %v3145, %v1006
        %v3158 = vmul.f32 %v3148, %v1006
        %v3159 = vmul.f32 %v3151, %v1006
        %v3160 = vadd.f32 %v3152, 1e-05
        %v3161 = vadd.f32 %v3153, 1e-05
        %v3162 = vadd.f32 %v3154, 1e-05
        %v3163 = vadd.f32 %v3155, 1e-05
        %v3164 = vadd.f32 %v3156, 1e-05
        %v3165 = vadd.f32 %v3157, 1e-05
        %v3166 = vadd.f32 %v3158, 1e-05
        %v3167 = vadd.f32 %v3159, 1e-05
        %v3168 = vrsqrt.pop %v3160
        %v3169 = vmul.f32 %v3168, %v3160
        %v3170 = vmul.f32 %v3169, %v3168
        %v3171 = vmul.f32 0.5, %v3170
        %v3172 = vsub.f32 1.5, %v3171
        %v3173 = vmul.f32 %v3168, %v3172
        %vm3174 = vweird.f32 %v3160
        %vm3175 = vweird.f32 %v3168
        %vm3176 = vmor %vm3174, %vm3175
        %v3177 = vsel %vm3176, %v3168, %v3173
        %v3178 = vrsqrt.pop %v3161
        %v3179 = vmul.f32 %v3178, %v3161
        %v3180 = vmul.f32 %v3179, %v3178
        %v3181 = vmul.f32 0.5, %v3180
        %v3182 = vsub.f32 1.5, %v3181
        %v3183 = vmul.f32 %v3178, %v3182
        %vm3184 = vweird.f32 %v3161
        %vm3185 = vweird.f32 %v3178
        %vm3186 = vmor %vm3184, %vm3185
        %v3187 = vsel %vm3186, %v3178, %v3183
        %v3188 = vrsqrt.pop %v3162
        %v3189 = vmul.f32 %v3188, %v3162
        %v3190 = vmul.f32 %v3189, %v3188
        %v3191 = vmul.f32 0.5, %v3190
        %v3192 = vsub.f32 1.5, %v3191
        %v3193 = vmul.f32 %v3188, %v3192
        %vm3194 = vweird.f32 %v3162
        %vm3195 = vweird.f32 %v3188
        %vm3196 = vmor %vm3194, %vm3195
        %v3197 = vsel %vm3196, %v3188, %v3193
        %v3198 = vrsqrt.pop %v3163
        %v3199 = vmul.f32 %v3198, %v3163
        %v3200 = vmul.f32 %v3199, %v3198
        %v3201 = vmul.f32 0.5, %v3200
        %v3202 = vsub.f32 1.5, %v3201
        %v3203 = vmul.f32 %v3198, %v3202
        %vm3204 = vweird.f32 %v3163
        %vm3205 = vweird.f32 %v3198
        %vm3206 = vmor %vm3204, %vm3205
        %v3207 = vsel %vm3206, %v3198, %v3203
        %v3208 = vrsqrt.pop %v3164
        %v3209 = vmul.f32 %v3208, %v3164
        %v3210 = vmul.f32 %v3209, %v3208
        %v3211 = vmul.f32 0.5, %v3210
        %v3212 = vsub.f32 1.5, %v3211
        %v3213 = vmul.f32 %v3208, %v3212
        %vm3214 = vweird.f32 %v3164
        %vm3215 = vweird.f32 %v3208
        %vm3216 = vmor %vm3214, %vm3215
        %v3217 = vsel %vm3216, %v3208, %v3213
        %v3218 = vrsqrt.pop %v3165
        %v3219 = vmul.f32 %v3218, %v3165
        %v3220 = vmul.f32 %v3219, %v3218
        %v3221 = vmul.f32 0.5, %v3220
        %v3222 = vsub.f32 1.5, %v3221
        %v3223 = vmul.f32 %v3218, %v3222
        %vm3224 = vweird.f32 %v3165
        %vm3225 = vweird.f32 %v3218
        %vm3226 = vmor %vm3224, %vm3225
        %v3227 = vsel %vm3226, %v3218, %v3223
        %v3228 = vrsqrt.pop %v3166
        %v3229 = vmul.f32 %v3228, %v3166
        %v3230 = vmul.f32 %v3229, %v3228
        %v3231 = vmul.f32 0.5, %v3230
        %v3232 = vsub.f32 1.5, %v3231
        %v3233 = vmul.f32 %v3228, %v3232
        %vm3234 = vweird.f32 %v3166
        %vm3235 = vweird.f32 %v3228
        %vm3236 = vmor %vm3234, %vm3235
        %v3237 = vsel %vm3236, %v3228, %v3233
        %v3238 = vrsqrt.pop %v3167
        %v3239 = vmul.f32 %v3238, %v3167
        %v3240 = vmul.f32 %v3239, %v3238
        %v3241 = vmul.f32 0.5, %v3240
        %v3242 = vsub.f32 1.5, %v3241
        %v3243 = vmul.f32 %v3238, %v3242
        %vm3244 = vweird.f32 %v3167
        %vm3245 = vweird.f32 %v3238
        %vm3246 = vmor %vm3244, %vm3245
        %v3247 = vsel %vm3246, %v3238, %v3243
        %v3248 = vmul.f32 %v3096, %v3177
        %v3249 = vmul.f32 %v3097, %v3177
        %v3250 = vmul.f32 %v3098, %v3187
        %v3251 = vmul.f32 %v3099, %v3187
        %v3252 = vmul.f32 %v3100, %v3197
        %v3253 = vmul.f32 %v3101, %v3197
        %v3254 = vmul.f32 %v3102, %v3207
        %v3255 = vmul.f32 %v3103, %v3207
        %v3256 = vmul.f32 %v3104, %v3217
        %v3257 = vmul.f32 %v3105, %v3217
        %v3258 = vmul.f32 %v3106, %v3227
        %v3259 = vmul.f32 %v3107, %v3227
        %v3260 = vmul.f32 %v3108, %v3237
        %v3261 = vmul.f32 %v3109, %v3237
        %v3262 = vmul.f32 %v3110, %v3247
        %v3263 = vmul.f32 %v3111, %v3247
        %v3265 = vperm.slane %v3062, 0
        %v3266 = vperm.slane %v3062, 1
        %v3269 = vmul.f32 %v3248, %v3265
        %v3270 = vmul.f32 %v3249, %v3266
        %v3271 = vmul.f32 %v3250, %v3265
        %v3272 = vmul.f32 %v3251, %v3266
        %v3273 = vmul.f32 %v3252, %v3265
        %v3274 = vmul.f32 %v3253, %v3266
        %v3275 = vmul.f32 %v3254, %v3265
        %v3276 = vmul.f32 %v3255, %v3266
        %v3277 = vmul.f32 %v3256, %v3265
        %v3278 = vmul.f32 %v3257, %v3266
        %v3279 = vmul.f32 %v3258, %v3265
        %v3280 = vmul.f32 %v3259, %v3266
        %v3281 = vmul.f32 %v3260, %v3265
        %v3282 = vmul.f32 %v3261, %v3266
        %v3283 = vmul.f32 %v3262, %v3265
        %v3284 = vmul.f32 %v3263, %v3266
        %v3286 = vperm.slane %v3063, 0
        %v3287 = vperm.slane %v3063, 1
        %v3290 = vadd.f32 %v3269, %v3286
        %v3291 = vadd.f32 %v3270, %v3287
        %v3292 = vadd.f32 %v3271, %v3286
        %v3293 = vadd.f32 %v3272, %v3287
        %v3294 = vadd.f32 %v3273, %v3286
        %v3295 = vadd.f32 %v3274, %v3287
        %v3296 = vadd.f32 %v3275, %v3286
        %v3297 = vadd.f32 %v3276, %v3287
        %v3298 = vadd.f32 %v3277, %v3286
        %v3299 = vadd.f32 %v3278, %v3287
        %v3300 = vadd.f32 %v3279, %v3286
        %v3301 = vadd.f32 %v3280, %v3287
        %v3302 = vadd.f32 %v3281, %v3286
        %v3303 = vadd.f32 %v3282, %v3287
        %v3304 = vadd.f32 %v3283, %v3286
        %v3305 = vadd.f32 %v3284, %v3287
        %v3306 = vld [vmem:[%s10] sm:$0x3]
        %v3308 = vperm.slane %v3306, 0
        %v3309 = vperm.slane %v3306, 1
        %3312 = vmatpush.msra.mxu0 %v876
        %3313 = vmatpush.msra.mxu0 %v874
        %3314 = vmatpush.msra.mxu0 %v872
        %3315 = vmatpush.msra.mxu0 %v870
        %3316 = vmatpush.msra.mxu0 %v868
        %3317 = vmatpush.msra.mxu0 %v866
        %3318 = vmatpush.msra.mxu0 %v864
        %3319 = vmatpush.msra.mxu0 %v862
        %3320 = vmatpush.msra.mxu0 %v860
        %3321 = vmatpush.msra.mxu0 %v858
        %3322 = vmatpush.msra.mxu0 %v856
        %3323 = vmatpush.msra.mxu0 %v854
        %3324 = vmatpush.msra.mxu0 %v852
        %3325 = vmatpush.msra.mxu0 %v850
        %3326 = vmatpush.msra.mxu0 %v848
        %3327 = vmatpush.msra.mxu0 %v846
        %3328 = vmatmul.f32.gmra.mxu0 %v3290
        %v3329 = vpop.f32.mrf.mxu0
        %v3330 = vadd.f32 %v3308, %v3329
        %3331 = vmatmul.f32.gmra.mxu0 %v3292
        %v3332 = vpop.f32.mrf.mxu0
        %v3333 = vadd.f32 %v3308, %v3332
        %3334 = vmatmul.f32.gmra.mxu0 %v3294
        %v3335 = vpop.f32.mrf.mxu0
        %v3336 = vadd.f32 %v3308, %v3335
        %3337 = vmatmul.f32.gmra.mxu0 %v3296
        %v3338 = vpop.f32.mrf.mxu0
        %v3339 = vadd.f32 %v3308, %v3338
        %3340 = vmatmul.f32.gmra.mxu0 %v3298
        %v3341 = vpop.f32.mrf.mxu0
        %v3342 = vadd.f32 %v3308, %v3341
        %3343 = vmatmul.f32.gmra.mxu0 %v3300
        %v3344 = vpop.f32.mrf.mxu0
        %v3345 = vadd.f32 %v3308, %v3344
        %3346 = vmatmul.f32.gmra.mxu0 %v3302
        %v3347 = vpop.f32.mrf.mxu0
        %v3348 = vadd.f32 %v3308, %v3347
        %3349 = vmatmul.f32.gmra.mxu0 %v3304
        %v3350 = vpop.f32.mrf.mxu0
        %v3351 = vadd.f32 %v3308, %v3350
        %3352 = vdwg.mxu0
        %3353 = vmatpush.msra.mxu0 %v908
        %3354 = vmatpush.msra.mxu0 %v906
        %3355 = vmatpush.msra.mxu0 %v904
        %3356 = vmatpush.msra.mxu0 %v902
        %3357 = vmatpush.msra.mxu0 %v900
        %3358 = vmatpush.msra.mxu0 %v898
        %3359 = vmatpush.msra.mxu0 %v896
        %3360 = vmatpush.msra.mxu0 %v894
        %3361 = vmatpush.msra.mxu0 %v892
        %3362 = vmatpush.msra.mxu0 %v890
        %3363 = vmatpush.msra.mxu0 %v888
        %3364 = vmatpush.msra.mxu0 %v886
        %3365 = vmatpush.msra.mxu0 %v884
        %3366 = vmatpush.msra.mxu0 %v882
        %3367 = vmatpush.msra.mxu0 %v880
        %3368 = vmatpush.msra.mxu0 %v878
        %3369 = vmatmul.f32.gmra.mxu0 %v3291
        %v3370 = vpop.f32.mrf.mxu0
        %v3371 = vadd.f32 %v3330, %v3370
        %3372 = vmatmul.f32.gmra.mxu0 %v3293
        %v3373 = vpop.f32.mrf.mxu0
        %v3374 = vadd.f32 %v3333, %v3373
        %3375 = vmatmul.f32.gmra.mxu0 %v3295
        %v3376 = vpop.f32.mrf.mxu0
        %v3377 = vadd.f32 %v3336, %v3376
        %3378 = vmatmul.f32.gmra.mxu0 %v3297
        %v3379 = vpop.f32.mrf.mxu0
        %v3380 = vadd.f32 %v3339, %v3379
        %3381 = vmatmul.f32.gmra.mxu0 %v3299
        %v3382 = vpop.f32.mrf.mxu0
        %v3383 = vadd.f32 %v3342, %v3382
        %3384 = vmatmul.f32.gmra.mxu0 %v3301
        %v3385 = vpop.f32.mrf.mxu0
        %v3386 = vadd.f32 %v3345, %v3385
        %3387 = vmatmul.f32.gmra.mxu0 %v3303
        %v3388 = vpop.f32.mrf.mxu0
        %v3389 = vadd.f32 %v3348, %v3388
        %3390 = vmatmul.f32.gmra.mxu0 %v3305
        %v3391 = vpop.f32.mrf.mxu0
        %v3392 = vadd.f32 %v3351, %v3391
        %3393 = vdwg.mxu0
        %3394 = vmatpush.msra.mxu0 %v877
        %3395 = vmatpush.msra.mxu0 %v875
        %3396 = vmatpush.msra.mxu0 %v873
        %3397 = vmatpush.msra.mxu0 %v871
        %3398 = vmatpush.msra.mxu0 %v869
        %3399 = vmatpush.msra.mxu0 %v867
        %3400 = vmatpush.msra.mxu0 %v865
        %3401 = vmatpush.msra.mxu0 %v863
        %3402 = vmatpush.msra.mxu0 %v861
        %3403 = vmatpush.msra.mxu0 %v859
        %3404 = vmatpush.msra.mxu0 %v857
        %3405 = vmatpush.msra.mxu0 %v855
        %3406 = vmatpush.msra.mxu0 %v853
        %3407 = vmatpush.msra.mxu0 %v851
        %3408 = vmatpush.msra.mxu0 %v849
        %3409 = vmatpush.msra.mxu0 %v847
        %3410 = vmatmul.f32.gmra.mxu0 %v3290
        %v3411 = vpop.f32.mrf.mxu0
        %v3412 = vadd.f32 %v3309, %v3411
        %3413 = vmatmul.f32.gmra.mxu0 %v3292
        %v3414 = vpop.f32.mrf.mxu0
        %v3415 = vadd.f32 %v3309, %v3414
        %3416 = vmatmul.f32.gmra.mxu0 %v3294
        %v3417 = vpop.f32.mrf.mxu0
        %v3418 = vadd.f32 %v3309, %v3417
        %3419 = vmatmul.f32.gmra.mxu0 %v3296
        %v3420 = vpop.f32.mrf.mxu0
        %v3421 = vadd.f32 %v3309, %v3420
        %3422 = vmatmul.f32.gmra.mxu0 %v3298
        %v3423 = vpop.f32.mrf.mxu0
        %v3424 = vadd.f32 %v3309, %v3423
        %3425 = vmatmul.f32.gmra.mxu0 %v3300
        %v3426 = vpop.f32.mrf.mxu0
        %v3427 = vadd.f32 %v3309, %v3426
        %3428 = vmatmul.f32.gmra.mxu0 %v3302
        %v3429 = vpop.f32.mrf.mxu0
        %v3430 = vadd.f32 %v3309, %v3429
        %3431 = vmatmul.f32.gmra.mxu0 %v3304
        %v3432 = vpop.f32.mrf.mxu0
        %v3433 = vadd.f32 %v3309, %v3432
        %3434 = vdwg.mxu0
        %3435 = vmatpush.msra.mxu0 %v909
        %3436 = vmatpush.msra.mxu0 %v907
        %3437 = vmatpush.msra.mxu0 %v905
        %3438 = vmatpush.msra.mxu0 %v903
        %3439 = vmatpush.msra.mxu0 %v901
        %3440 = vmatpush.msra.mxu0 %v899
        %3441 = vmatpush.msra.mxu0 %v897
        %3442 = vmatpush.msra.mxu0 %v895
        %3443 = vmatpush.msra.mxu0 %v893
        %3444 = vmatpush.msra.mxu0 %v891
        %3445 = vmatpush.msra.mxu0 %v889
        %3446 = vmatpush.msra.mxu0 %v887
        %3447 = vmatpush.msra.mxu0 %v885
        %3448 = vmatpush.msra.mxu0 %v883
        %3449 = vmatpush.msra.mxu0 %v881
        %3450 = vmatpush.msra.mxu0 %v879
        %3451 = vmatmul.f32.gmra.mxu0 %v3291
        %v3452 = vpop.f32.mrf.mxu0
        %v3453 = vadd.f32 %v3412, %v3452
        %3454 = vmatmul.f32.gmra.mxu0 %v3293
        %v3455 = vpop.f32.mrf.mxu0
        %v3456 = vadd.f32 %v3415, %v3455
        %3457 = vmatmul.f32.gmra.mxu0 %v3295
        %v3458 = vpop.f32.mrf.mxu0
        %v3459 = vadd.f32 %v3418, %v3458
        %3460 = vmatmul.f32.gmra.mxu0 %v3297
        %v3461 = vpop.f32.mrf.mxu0
        %v3462 = vadd.f32 %v3421, %v3461
        %3463 = vmatmul.f32.gmra.mxu0 %v3299
        %v3464 = vpop.f32.mrf.mxu0
        %v3465 = vadd.f32 %v3424, %v3464
        %3466 = vmatmul.f32.gmra.mxu0 %v3301
        %v3467 = vpop.f32.mrf.mxu0
        %v3468 = vadd.f32 %v3427, %v3467
        %3469 = vmatmul.f32.gmra.mxu0 %v3303
        %v3470 = vpop.f32.mrf.mxu0
        %v3471 = vadd.f32 %v3430, %v3470
        %3472 = vmatmul.f32.gmra.mxu0 %v3305
        %v3473 = vpop.f32.mrf.mxu0
        %v3474 = vadd.f32 %v3433, %v3473
        %3475 = vdwg.mxu0
        %v3476 = vmul.f32 %v3371, 0.5
        %v3477 = vmul.f32 %v3453, 0.5
        %v3478 = vmul.f32 %v3374, 0.5
        %v3479 = vmul.f32 %v3456, 0.5
        %v3480 = vmul.f32 %v3377, 0.5
        %v3481 = vmul.f32 %v3459, 0.5
        %v3482 = vmul.f32 %v3380, 0.5
        %v3483 = vmul.f32 %v3462, 0.5
        %v3484 = vmul.f32 %v3383, 0.5
        %v3485 = vmul.f32 %v3465, 0.5
        %v3486 = vmul.f32 %v3386, 0.5
        %v3487 = vmul.f32 %v3468, 0.5
        %v3488 = vmul.f32 %v3389, 0.5
        %v3489 = vmul.f32 %v3471, 0.5
        %v3490 = vmul.f32 %v3392, 0.5
        %v3491 = vmul.f32 %v3474, 0.5
        %v3492 = vmul.f32 %v3371, 0.70710677
        %v3493 = vmul.f32 %v3453, 0.70710677
        %v3494 = vmul.f32 %v3374, 0.70710677
        %v3495 = vmul.f32 %v3456, 0.70710677
        %v3496 = vmul.f32 %v3377, 0.70710677
        %v3497 = vmul.f32 %v3459, 0.70710677
        %v3498 = vmul.f32 %v3380, 0.70710677
        %v3499 = vmul.f32 %v3462, 0.70710677
        %v3500 = vmul.f32 %v3383, 0.70710677
        %v3501 = vmul.f32 %v3465, 0.70710677
        %v3502 = vmul.f32 %v3386, 0.70710677
        %v3503 = vmul.f32 %v3468, 0.70710677
        %v3504 = vmul.f32 %v3389, 0.70710677
        %v3505 = vmul.f32 %v3471, 0.70710677
        %v3506 = vmul.f32 %v3392, 0.70710677
        %v3507 = vmul.f32 %v3474, 0.70710677
        %v3508 = vmul.f32 %v3492, %v3492
        %v3509 = vmin.f32 16.0, %v3508
        %v3510 = vmul.f32 %v3509, 2.1237322e-06
        %v3511 = vadd.f32 %v3510, 0.00028619796
        %v3512 = vmul.f32 %v3509, %v3511
        %v3513 = vadd.f32 %v3512, 0.0036580483
        %v3514 = vmul.f32 %v3509, %v3513
        %v3515 = vadd.f32 %v3514, 0.05243302
        %v3516 = vmul.f32 %v3509, %v3515
        %v3517 = vadd.f32 %v3516, 0.18741608
        %v3518 = vmul.f32 %v3509, %v3517
        %v3519 = vadd.f32 %v3518, 1.1283791
        %v3520 = vmul.f32 %v3492, %v3519
        %v3521 = vmul.f32 %v3509, 3.8918573e-05
        %v3522 = vadd.f32 %v3521, 0.001143296
        %v3523 = vmul.f32 %v3509, %v3522
        %v3524 = vadd.f32 %v3523, 0.014752088
        %v3525 = vmul.f32 %v3509, %v3524
        %v3526 = vadd.f32 %v3525, 0.112945676
        %v3527 = vmul.f32 %v3509, %v3526
        %v3528 = vadd.f32 %v3527, 0.4994258
        %v3529 = vmul.f32 %v3509, %v3528
        %v3530 = vadd.f32 %v3529, 1.0
        %v3531 = vrcp.pop %v3530
        %v3532 = vmul.f32 %v3530, %v3531
        %v3533 = vsub.f32 1.0, %v3532
        %v3534 = vmul.f32 %v3531, %v3533
        %v3535 = vadd.f32 %v3531, %v3534
        %vm3536 = vweird.f32 %v3530
        %vm3537 = vweird.f32 %v3531
        %vm3538 = vmor %vm3536, %vm3537
        %v3539 = vsel %vm3538, %v3531, %v3535
        %v3540 = vand.u32 2147483647, %v3530
        %vm3541 = vcmp.eq.f32.partialorder %v3540, 8.507059e+37
        %v3542 = vand.u32 %v3530, 2147483648
        %v3543 = vor.u32 1.1754944e-38, %v3542
        %v3544 = vsel %vm3541, %v3543, %v3539
        %v3545 = vmul.f32 %v3520, %v3544
        %v3546 = vmin.f32 %v3545, 1.0
        %v3547 = vmax.f32 %v3546, -1.0
        %v3548 = vmul.f32 %v3493, %v3493
        %v3549 = vmin.f32 16.0, %v3548
        %v3550 = vmul.f32 %v3549, 2.1237322e-06
        %v3551 = vadd.f32 %v3550, 0.00028619796
        %v3552 = vmul.f32 %v3549, %v3551
        %v3553 = vadd.f32 %v3552, 0.0036580483
        %v3554 = vmul.f32 %v3549, %v3553
        %v3555 = vadd.f32 %v3554, 0.05243302
        %v3556 = vmul.f32 %v3549, %v3555
        %v3557 = vadd.f32 %v3556, 0.18741608
        %v3558 = vmul.f32 %v3549, %v3557
        %v3559 = vadd.f32 %v3558, 1.1283791
        %v3560 = vmul.f32 %v3493, %v3559
        %v3561 = vmul.f32 %v3549, 3.8918573e-05
        %v3562 = vadd.f32 %v3561, 0.001143296
        %v3563 = vmul.f32 %v3549, %v3562
        %v3564 = vadd.f32 %v3563, 0.014752088
        %v3565 = vmul.f32 %v3549, %v3564
        %v3566 = vadd.f32 %v3565, 0.112945676
        %v3567 = vmul.f32 %v3549, %v3566
        %v3568 = vadd.f32 %v3567, 0.4994258
        %v3569 = vmul.f32 %v3549, %v3568
        %v3570 = vadd.f32 %v3569, 1.0
        %v3571 = vrcp.pop %v3570
        %v3572 = vmul.f32 %v3570, %v3571
        %v3573 = vsub.f32 1.0, %v3572
        %v3574 = vmul.f32 %v3571, %v3573
        %v3575 = vadd.f32 %v3571, %v3574
        %vm3576 = vweird.f32 %v3570
        %vm3577 = vweird.f32 %v3571
        %vm3578 = vmor %vm3576, %vm3577
        %v3579 = vsel %vm3578, %v3571, %v3575
        %v3580 = vand.u32 2147483647, %v3570
        %vm3581 = vcmp.eq.f32.partialorder %v3580, 8.507059e+37
        %v3582 = vand.u32 %v3570, 2147483648
        %v3583 = vor.u32 1.1754944e-38, %v3582
        %v3584 = vsel %vm3581, %v3583, %v3579
        %v3585 = vmul.f32 %v3560, %v3584
        %v3586 = vmin.f32 %v3585, 1.0
        %v3587 = vmax.f32 %v3586, -1.0
        %v3588 = vmul.f32 %v3494, %v3494
        %v3589 = vmin.f32 16.0, %v3588
        %v3590 = vmul.f32 %v3589, 2.1237322e-06
        %v3591 = vadd.f32 %v3590, 0.00028619796
        %v3592 = vmul.f32 %v3589, %v3591
        %v3593 = vadd.f32 %v3592, 0.0036580483
        %v3594 = vmul.f32 %v3589, %v3593
        %v3595 = vadd.f32 %v3594, 0.05243302
        %v3596 = vmul.f32 %v3589, %v3595
        %v3597 = vadd.f32 %v3596, 0.18741608
        %v3598 = vmul.f32 %v3589, %v3597
        %v3599 = vadd.f32 %v3598, 1.1283791
        %v3600 = vmul.f32 %v3494, %v3599
        %v3601 = vmul.f32 %v3589, 3.8918573e-05
        %v3602 = vadd.f32 %v3601, 0.001143296
        %v3603 = vmul.f32 %v3589, %v3602
        %v3604 = vadd.f32 %v3603, 0.014752088
        %v3605 = vmul.f32 %v3589, %v3604
        %v3606 = vadd.f32 %v3605, 0.112945676
        %v3607 = vmul.f32 %v3589, %v3606
        %v3608 = vadd.f32 %v3607, 0.4994258
        %v3609 = vmul.f32 %v3589, %v3608
        %v3610 = vadd.f32 %v3609, 1.0
        %v3611 = vrcp.pop %v3610
        %v3612 = vmul.f32 %v3610, %v3611
        %v3613 = vsub.f32 1.0, %v3612
        %v3614 = vmul.f32 %v3611, %v3613
        %v3615 = vadd.f32 %v3611, %v3614
        %vm3616 = vweird.f32 %v3610
        %vm3617 = vweird.f32 %v3611
        %vm3618 = vmor %vm3616, %vm3617
        %v3619 = vsel %vm3618, %v3611, %v3615
        %v3620 = vand.u32 2147483647, %v3610
        %vm3621 = vcmp.eq.f32.partialorder %v3620, 8.507059e+37
        %v3622 = vand.u32 %v3610, 2147483648
        %v3623 = vor.u32 1.1754944e-38, %v3622
        %v3624 = vsel %vm3621, %v3623, %v3619
        %v3625 = vmul.f32 %v3600, %v3624
        %v3626 = vmin.f32 %v3625, 1.0
        %v3627 = vmax.f32 %v3626, -1.0
        %v3628 = vmul.f32 %v3495, %v3495
        %v3629 = vmin.f32 16.0, %v3628
        %v3630 = vmul.f32 %v3629, 2.1237322e-06
        %v3631 = vadd.f32 %v3630, 0.00028619796
        %v3632 = vmul.f32 %v3629, %v3631
        %v3633 = vadd.f32 %v3632, 0.0036580483
        %v3634 = vmul.f32 %v3629, %v3633
        %v3635 = vadd.f32 %v3634, 0.05243302
        %v3636 = vmul.f32 %v3629, %v3635
        %v3637 = vadd.f32 %v3636, 0.18741608
        %v3638 = vmul.f32 %v3629, %v3637
        %v3639 = vadd.f32 %v3638, 1.1283791
        %v3640 = vmul.f32 %v3495, %v3639
        %v3641 = vmul.f32 %v3629, 3.8918573e-05
        %v3642 = vadd.f32 %v3641, 0.001143296
        %v3643 = vmul.f32 %v3629, %v3642
        %v3644 = vadd.f32 %v3643, 0.014752088
        %v3645 = vmul.f32 %v3629, %v3644
        %v3646 = vadd.f32 %v3645, 0.112945676
        %v3647 = vmul.f32 %v3629, %v3646
        %v3648 = vadd.f32 %v3647, 0.4994258
        %v3649 = vmul.f32 %v3629, %v3648
        %v3650 = vadd.f32 %v3649, 1.0
        %v3651 = vrcp.pop %v3650
        %v3652 = vmul.f32 %v3650, %v3651
        %v3653 = vsub.f32 1.0, %v3652
        %v3654 = vmul.f32 %v3651, %v3653
        %v3655 = vadd.f32 %v3651, %v3654
        %vm3656 = vweird.f32 %v3650
        %vm3657 = vweird.f32 %v3651
        %vm3658 = vmor %vm3656, %vm3657
        %v3659 = vsel %vm3658, %v3651, %v3655
        %v3660 = vand.u32 2147483647, %v3650
        %vm3661 = vcmp.eq.f32.partialorder %v3660, 8.507059e+37
        %v3662 = vand.u32 %v3650, 2147483648
        %v3663 = vor.u32 1.1754944e-38, %v3662
        %v3664 = vsel %vm3661, %v3663, %v3659
        %v3665 = vmul.f32 %v3640, %v3664
        %v3666 = vmin.f32 %v3665, 1.0
        %v3667 = vmax.f32 %v3666, -1.0
        %v3668 = vmul.f32 %v3496, %v3496
        %v3669 = vmin.f32 16.0, %v3668
        %v3670 = vmul.f32 %v3669, 2.1237322e-06
        %v3671 = vadd.f32 %v3670, 0.00028619796
        %v3672 = vmul.f32 %v3669, %v3671
        %v3673 = vadd.f32 %v3672, 0.0036580483
        %v3674 = vmul.f32 %v3669, %v3673
        %v3675 = vadd.f32 %v3674, 0.05243302
        %v3676 = vmul.f32 %v3669, %v3675
        %v3677 = vadd.f32 %v3676, 0.18741608
        %v3678 = vmul.f32 %v3669, %v3677
        %v3679 = vadd.f32 %v3678, 1.1283791
        %v3680 = vmul.f32 %v3496, %v3679
        %v3681 = vmul.f32 %v3669, 3.8918573e-05
        %v3682 = vadd.f32 %v3681, 0.001143296
        %v3683 = vmul.f32 %v3669, %v3682
        %v3684 = vadd.f32 %v3683, 0.014752088
        %v3685 = vmul.f32 %v3669, %v3684
        %v3686 = vadd.f32 %v3685, 0.112945676
        %v3687 = vmul.f32 %v3669, %v3686
        %v3688 = vadd.f32 %v3687, 0.4994258
        %v3689 = vmul.f32 %v3669, %v3688
        %v3690 = vadd.f32 %v3689, 1.0
        %v3691 = vrcp.pop %v3690
        %v3692 = vmul.f32 %v3690, %v3691
        %v3693 = vsub.f32 1.0, %v3692
        %v3694 = vmul.f32 %v3691, %v3693
        %v3695 = vadd.f32 %v3691, %v3694
        %vm3696 = vweird.f32 %v3690
        %vm3697 = vweird.f32 %v3691
        %vm3698 = vmor %vm3696, %vm3697
        %v3699 = vsel %vm3698, %v3691, %v3695
        %v3700 = vand.u32 2147483647, %v3690
        %vm3701 = vcmp.eq.f32.partialorder %v3700, 8.507059e+37
        %v3702 = vand.u32 %v3690, 2147483648
        %v3703 = vor.u32 1.1754944e-38, %v3702
        %v3704 = vsel %vm3701, %v3703, %v3699
        %v3705 = vmul.f32 %v3680, %v3704
        %v3706 = vmin.f32 %v3705, 1.0
        %v3707 = vmax.f32 %v3706, -1.0
        %v3708 = vmul.f32 %v3497, %v3497
        %v3709 = vmin.f32 16.0, %v3708
        %v3710 = vmul.f32 %v3709, 2.1237322e-06
        %v3711 = vadd.f32 %v3710, 0.00028619796
        %v3712 = vmul.f32 %v3709, %v3711
        %v3713 = vadd.f32 %v3712, 0.0036580483
        %v3714 = vmul.f32 %v3709, %v3713
        %v3715 = vadd.f32 %v3714, 0.05243302
        %v3716 = vmul.f32 %v3709, %v3715
        %v3717 = vadd.f32 %v3716, 0.18741608
        %v3718 = vmul.f32 %v3709, %v3717
        %v3719 = vadd.f32 %v3718, 1.1283791
        %v3720 = vmul.f32 %v3497, %v3719
        %v3721 = vmul.f32 %v3709, 3.8918573e-05
        %v3722 = vadd.f32 %v3721, 0.001143296
        %v3723 = vmul.f32 %v3709, %v3722
        %v3724 = vadd.f32 %v3723, 0.014752088
        %v3725 = vmul.f32 %v3709, %v3724
        %v3726 = vadd.f32 %v3725, 0.112945676
        %v3727 = vmul.f32 %v3709, %v3726
        %v3728 = vadd.f32 %v3727, 0.4994258
        %v3729 = vmul.f32 %v3709, %v3728
        %v3730 = vadd.f32 %v3729, 1.0
        %v3731 = vrcp.pop %v3730
        %v3732 = vmul.f32 %v3730, %v3731
        %v3733 = vsub.f32 1.0, %v3732
        %v3734 = vmul.f32 %v3731, %v3733
        %v3735 = vadd.f32 %v3731, %v3734
        %vm3736 = vweird.f32 %v3730
        %vm3737 = vweird.f32 %v3731
        %vm3738 = vmor %vm3736, %vm3737
        %v3739 = vsel %vm3738, %v3731, %v3735
        %v3740 = vand.u32 2147483647, %v3730
        %vm3741 = vcmp.eq.f32.partialorder %v3740, 8.507059e+37
        %v3742 = vand.u32 %v3730, 2147483648
        %v3743 = vor.u32 1.1754944e-38, %v3742
        %v3744 = vsel %vm3741, %v3743, %v3739
        %v3745 = vmul.f32 %v3720, %v3744
        %v3746 = vmin.f32 %v3745, 1.0
        %v3747 = vmax.f32 %v3746, -1.0
        %v3748 = vmul.f32 %v3498, %v3498
        %v3749 = vmin.f32 16.0, %v3748
        %v3750 = vmul.f32 %v3749, 2.1237322e-06
        %v3751 = vadd.f32 %v3750, 0.00028619796
        %v3752 = vmul.f32 %v3749, %v3751
        %v3753 = vadd.f32 %v3752, 0.0036580483
        %v3754 = vmul.f32 %v3749, %v3753
        %v3755 = vadd.f32 %v3754, 0.05243302
        %v3756 = vmul.f32 %v3749, %v3755
        %v3757 = vadd.f32 %v3756, 0.18741608
        %v3758 = vmul.f32 %v3749, %v3757
        %v3759 = vadd.f32 %v3758, 1.1283791
        %v3760 = vmul.f32 %v3498, %v3759
        %v3761 = vmul.f32 %v3749, 3.8918573e-05
        %v3762 = vadd.f32 %v3761, 0.001143296
        %v3763 = vmul.f32 %v3749, %v3762
        %v3764 = vadd.f32 %v3763, 0.014752088
        %v3765 = vmul.f32 %v3749, %v3764
        %v3766 = vadd.f32 %v3765, 0.112945676
        %v3767 = vmul.f32 %v3749, %v3766
        %v3768 = vadd.f32 %v3767, 0.4994258
        %v3769 = vmul.f32 %v3749, %v3768
        %v3770 = vadd.f32 %v3769, 1.0
        %v3771 = vrcp.pop %v3770
        %v3772 = vmul.f32 %v3770, %v3771
        %v3773 = vsub.f32 1.0, %v3772
        %v3774 = vmul.f32 %v3771, %v3773
        %v3775 = vadd.f32 %v3771, %v3774
        %vm3776 = vweird.f32 %v3770
        %vm3777 = vweird.f32 %v3771
        %vm3778 = vmor %vm3776, %vm3777
        %v3779 = vsel %vm3778, %v3771, %v3775
        %v3780 = vand.u32 2147483647, %v3770
        %vm3781 = vcmp.eq.f32.partialorder %v3780, 8.507059e+37
        %v3782 = vand.u32 %v3770, 2147483648
        %v3783 = vor.u32 1.1754944e-38, %v3782
        %v3784 = vsel %vm3781, %v3783, %v3779
        %v3785 = vmul.f32 %v3760, %v3784
        %v3786 = vmin.f32 %v3785, 1.0
        %v3787 = vmax.f32 %v3786, -1.0
        %v3788 = vmul.f32 %v3499, %v3499
        %v3789 = vmin.f32 16.0, %v3788
        %v3790 = vmul.f32 %v3789, 2.1237322e-06
        %v3791 = vadd.f32 %v3790, 0.00028619796
        %v3792 = vmul.f32 %v3789, %v3791
        %v3793 = vadd.f32 %v3792, 0.0036580483
        %v3794 = vmul.f32 %v3789, %v3793
        %v3795 = vadd.f32 %v3794, 0.05243302
        %v3796 = vmul.f32 %v3789, %v3795
        %v3797 = vadd.f32 %v3796, 0.18741608
        %v3798 = vmul.f32 %v3789, %v3797
        %v3799 = vadd.f32 %v3798, 1.1283791
        %v3800 = vmul.f32 %v3499, %v3799
        %v3801 = vmul.f32 %v3789, 3.8918573e-05
        %v3802 = vadd.f32 %v3801, 0.001143296
        %v3803 = vmul.f32 %v3789, %v3802
        %v3804 = vadd.f32 %v3803, 0.014752088
        %v3805 = vmul.f32 %v3789, %v3804
        %v3806 = vadd.f32 %v3805, 0.112945676
        %v3807 = vmul.f32 %v3789, %v3806
        %v3808 = vadd.f32 %v3807, 0.4994258
        %v3809 = vmul.f32 %v3789, %v3808
        %v3810 = vadd.f32 %v3809, 1.0
        %v3811 = vrcp.pop %v3810
        %v3812 = vmul.f32 %v3810, %v3811
        %v3813 = vsub.f32 1.0, %v3812
        %v3814 = vmul.f32 %v3811, %v3813
        %v3815 = vadd.f32 %v3811, %v3814
        %vm3816 = vweird.f32 %v3810
        %vm3817 = vweird.f32 %v3811
        %vm3818 = vmor %vm3816, %vm3817
        %v3819 = vsel %vm3818, %v3811, %v3815
        %v3820 = vand.u32 2147483647, %v3810
        %vm3821 = vcmp.eq.f32.partialorder %v3820, 8.507059e+37
        %v3822 = vand.u32 %v3810, 2147483648
        %v3823 = vor.u32 1.1754944e-38, %v3822
        %v3824 = vsel %vm3821, %v3823, %v3819
        %v3825 = vmul.f32 %v3800, %v3824
        %v3826 = vmin.f32 %v3825, 1.0
        %v3827 = vmax.f32 %v3826, -1.0
        %v3828 = vmul.f32 %v3500, %v3500
        %v3829 = vmin.f32 16.0, %v3828
        %v3830 = vmul.f32 %v3829, 2.1237322e-06
        %v3831 = vadd.f32 %v3830, 0.00028619796
        %v3832 = vmul.f32 %v3829, %v3831
        %v3833 = vadd.f32 %v3832, 0.0036580483
        %v3834 = vmul.f32 %v3829, %v3833
        %v3835 = vadd.f32 %v3834, 0.05243302
        %v3836 = vmul.f32 %v3829, %v3835
        %v3837 = vadd.f32 %v3836, 0.18741608
        %v3838 = vmul.f32 %v3829, %v3837
        %v3839 = vadd.f32 %v3838, 1.1283791
        %v3840 = vmul.f32 %v3500, %v3839
        %v3841 = vmul.f32 %v3829, 3.8918573e-05
        %v3842 = vadd.f32 %v3841, 0.001143296
        %v3843 = vmul.f32 %v3829, %v3842
        %v3844 = vadd.f32 %v3843, 0.014752088
        %v3845 = vmul.f32 %v3829, %v3844
        %v3846 = vadd.f32 %v3845, 0.112945676
        %v3847 = vmul.f32 %v3829, %v3846
        %v3848 = vadd.f32 %v3847, 0.4994258
        %v3849 = vmul.f32 %v3829, %v3848
        %v3850 = vadd.f32 %v3849, 1.0
        %v3851 = vrcp.pop %v3850
        %v3852 = vmul.f32 %v3850, %v3851
        %v3853 = vsub.f32 1.0, %v3852
        %v3854 = vmul.f32 %v3851, %v3853
        %v3855 = vadd.f32 %v3851, %v3854
        %vm3856 = vweird.f32 %v3850
        %vm3857 = vweird.f32 %v3851
        %vm3858 = vmor %vm3856, %vm3857
        %v3859 = vsel %vm3858, %v3851, %v3855
        %v3860 = vand.u32 2147483647, %v3850
        %vm3861 = vcmp.eq.f32.partialorder %v3860, 8.507059e+37
        %v3862 = vand.u32 %v3850, 2147483648
        %v3863 = vor.u32 1.1754944e-38, %v3862
        %v3864 = vsel %vm3861, %v3863, %v3859
        %v3865 = vmul.f32 %v3840, %v3864
        %v3866 = vmin.f32 %v3865, 1.0
        %v3867 = vmax.f32 %v3866, -1.0
        %v3868 = vmul.f32 %v3501, %v3501
        %v3869 = vmin.f32 16.0, %v3868
        %v3870 = vmul.f32 %v3869, 2.1237322e-06
        %v3871 = vadd.f32 %v3870, 0.00028619796
        %v3872 = vmul.f32 %v3869, %v3871
        %v3873 = vadd.f32 %v3872, 0.0036580483
        %v3874 = vmul.f32 %v3869, %v3873
        %v3875 = vadd.f32 %v3874, 0.05243302
        %v3876 = vmul.f32 %v3869, %v3875
        %v3877 = vadd.f32 %v3876, 0.18741608
        %v3878 = vmul.f32 %v3869, %v3877
        %v3879 = vadd.f32 %v3878, 1.1283791
        %v3880 = vmul.f32 %v3501, %v3879
        %v3881 = vmul.f32 %v3869, 3.8918573e-05
        %v3882 = vadd.f32 %v3881, 0.001143296
        %v3883 = vmul.f32 %v3869, %v3882
        %v3884 = vadd.f32 %v3883, 0.014752088
        %v3885 = vmul.f32 %v3869, %v3884
        %v3886 = vadd.f32 %v3885, 0.112945676
        %v3887 = vmul.f32 %v3869, %v3886
        %v3888 = vadd.f32 %v3887, 0.4994258
        %v3889 = vmul.f32 %v3869, %v3888
        %v3890 = vadd.f32 %v3889, 1.0
        %v3891 = vrcp.pop %v3890
        %v3892 = vmul.f32 %v3890, %v3891
        %v3893 = vsub.f32 1.0, %v3892
        %v3894 = vmul.f32 %v3891, %v3893
        %v3895 = vadd.f32 %v3891, %v3894
        %vm3896 = vweird.f32 %v3890
        %vm3897 = vweird.f32 %v3891
        %vm3898 = vmor %vm3896, %vm3897
        %v3899 = vsel %vm3898, %v3891, %v3895
        %v3900 = vand.u32 2147483647, %v3890
        %vm3901 = vcmp.eq.f32.partialorder %v3900, 8.507059e+37
        %v3902 = vand.u32 %v3890, 2147483648
        %v3903 = vor.u32 1.1754944e-38, %v3902
        %v3904 = vsel %vm3901, %v3903, %v3899
        %v3905 = vmul.f32 %v3880, %v3904
        %v3906 = vmin.f32 %v3905, 1.0
        %v3907 = vmax.f32 %v3906, -1.0
        %v3908 = vmul.f32 %v3502, %v3502
        %v3909 = vmin.f32 16.0, %v3908
        %v3910 = vmul.f32 %v3909, 2.1237322e-06
        %v3911 = vadd.f32 %v3910, 0.00028619796
        %v3912 = vmul.f32 %v3909, %v3911
        %v3913 = vadd.f32 %v3912, 0.0036580483
        %v3914 = vmul.f32 %v3909, %v3913
        %v3915 = vadd.f32 %v3914, 0.05243302
        %v3916 = vmul.f32 %v3909, %v3915
        %v3917 = vadd.f32 %v3916, 0.18741608
        %v3918 = vmul.f32 %v3909, %v3917
        %v3919 = vadd.f32 %v3918, 1.1283791
        %v3920 = vmul.f32 %v3502, %v3919
        %v3921 = vmul.f32 %v3909, 3.8918573e-05
        %v3922 = vadd.f32 %v3921, 0.001143296
        %v3923 = vmul.f32 %v3909, %v3922
        %v3924 = vadd.f32 %v3923, 0.014752088
        %v3925 = vmul.f32 %v3909, %v3924
        %v3926 = vadd.f32 %v3925, 0.112945676
        %v3927 = vmul.f32 %v3909, %v3926
        %v3928 = vadd.f32 %v3927, 0.4994258
        %v3929 = vmul.f32 %v3909, %v3928
        %v3930 = vadd.f32 %v3929, 1.0
        %v3931 = vrcp.pop %v3930
        %v3932 = vmul.f32 %v3930, %v3931
        %v3933 = vsub.f32 1.0, %v3932
        %v3934 = vmul.f32 %v3931, %v3933
        %v3935 = vadd.f32 %v3931, %v3934
        %vm3936 = vweird.f32 %v3930
        %vm3937 = vweird.f32 %v3931
        %vm3938 = vmor %vm3936, %vm3937
        %v3939 = vsel %vm3938, %v3931, %v3935
        %v3940 = vand.u32 2147483647, %v3930
        %vm3941 = vcmp.eq.f32.partialorder %v3940, 8.507059e+37
        %v3942 = vand.u32 %v3930, 2147483648
        %v3943 = vor.u32 1.1754944e-38, %v3942
        %v3944 = vsel %vm3941, %v3943, %v3939
        %v3945 = vmul.f32 %v3920, %v3944
        %v3946 = vmin.f32 %v3945, 1.0
        %v3947 = vmax.f32 %v3946, -1.0
        %v3948 = vmul.f32 %v3503, %v3503
        %v3949 = vmin.f32 16.0, %v3948
        %v3950 = vmul.f32 %v3949, 2.1237322e-06
        %v3951 = vadd.f32 %v3950, 0.00028619796
        %v3952 = vmul.f32 %v3949, %v3951
        %v3953 = vadd.f32 %v3952, 0.0036580483
        %v3954 = vmul.f32 %v3949, %v3953
        %v3955 = vadd.f32 %v3954, 0.05243302
        %v3956 = vmul.f32 %v3949, %v3955
        %v3957 = vadd.f32 %v3956, 0.18741608
        %v3958 = vmul.f32 %v3949, %v3957
        %v3959 = vadd.f32 %v3958, 1.1283791
        %v3960 = vmul.f32 %v3503, %v3959
        %v3961 = vmul.f32 %v3949, 3.8918573e-05
        %v3962 = vadd.f32 %v3961, 0.001143296
        %v3963 = vmul.f32 %v3949, %v3962
        %v3964 = vadd.f32 %v3963, 0.014752088
        %v3965 = vmul.f32 %v3949, %v3964
        %v3966 = vadd.f32 %v3965, 0.112945676
        %v3967 = vmul.f32 %v3949, %v3966
        %v3968 = vadd.f32 %v3967, 0.4994258
        %v3969 = vmul.f32 %v3949, %v3968
        %v3970 = vadd.f32 %v3969, 1.0
        %v3971 = vrcp.pop %v3970
        %v3972 = vmul.f32 %v3970, %v3971
        %v3973 = vsub.f32 1.0, %v3972
        %v3974 = vmul.f32 %v3971, %v3973
        %v3975 = vadd.f32 %v3971, %v3974
        %vm3976 = vweird.f32 %v3970
        %vm3977 = vweird.f32 %v3971
        %vm3978 = vmor %vm3976, %vm3977
        %v3979 = vsel %vm3978, %v3971, %v3975
        %v3980 = vand.u32 2147483647, %v3970
        %vm3981 = vcmp.eq.f32.partialorder %v3980, 8.507059e+37
        %v3982 = vand.u32 %v3970, 2147483648
        %v3983 = vor.u32 1.1754944e-38, %v3982
        %v3984 = vsel %vm3981, %v3983, %v3979
        %v3985 = vmul.f32 %v3960, %v3984
        %v3986 = vmin.f32 %v3985, 1.0
        %v3987 = vmax.f32 %v3986, -1.0
        %v3988 = vmul.f32 %v3504, %v3504
        %v3989 = vmin.f32 16.0, %v3988
        %v3990 = vmul.f32 %v3989, 2.1237322e-06
        %v3991 = vadd.f32 %v3990, 0.00028619796
        %v3992 = vmul.f32 %v3989, %v3991
        %v3993 = vadd.f32 %v3992, 0.0036580483
        %v3994 = vmul.f32 %v3989, %v3993
        %v3995 = vadd.f32 %v3994, 0.05243302
        %v3996 = vmul.f32 %v3989, %v3995
        %v3997 = vadd.f32 %v3996, 0.18741608
        %v3998 = vmul.f32 %v3989, %v3997
        %v3999 = vadd.f32 %v3998, 1.1283791
        %v4000 = vmul.f32 %v3504, %v3999
        %v4001 = vmul.f32 %v3989, 3.8918573e-05
        %v4002 = vadd.f32 %v4001, 0.001143296
        %v4003 = vmul.f32 %v3989, %v4002
        %v4004 = vadd.f32 %v4003, 0.014752088
        %v4005 = vmul.f32 %v3989, %v4004
        %v4006 = vadd.f32 %v4005, 0.112945676
        %v4007 = vmul.f32 %v3989, %v4006
        %v4008 = vadd.f32 %v4007, 0.4994258
        %v4009 = vmul.f32 %v3989, %v4008
        %v4010 = vadd.f32 %v4009, 1.0
        %v4011 = vrcp.pop %v4010
        %v4012 = vmul.f32 %v4010, %v4011
        %v4013 = vsub.f32 1.0, %v4012
        %v4014 = vmul.f32 %v4011, %v4013
        %v4015 = vadd.f32 %v4011, %v4014
        %vm4016 = vweird.f32 %v4010
        %vm4017 = vweird.f32 %v4011
        %vm4018 = vmor %vm4016, %vm4017
        %v4019 = vsel %vm4018, %v4011, %v4015
        %v4020 = vand.u32 2147483647, %v4010
        %vm4021 = vcmp.eq.f32.partialorder %v4020, 8.507059e+37
        %v4022 = vand.u32 %v4010, 2147483648
        %v4023 = vor.u32 1.1754944e-38, %v4022
        %v4024 = vsel %vm4021, %v4023, %v4019
        %v4025 = vmul.f32 %v4000, %v4024
        %v4026 = vmin.f32 %v4025, 1.0
        %v4027 = vmax.f32 %v4026, -1.0
        %v4028 = vmul.f32 %v3505, %v3505
        %v4029 = vmin.f32 16.0, %v4028
        %v4030 = vmul.f32 %v4029, 2.1237322e-06
        %v4031 = vadd.f32 %v4030, 0.00028619796
        %v4032 = vmul.f32 %v4029, %v4031
        %v4033 = vadd.f32 %v4032, 0.0036580483
        %v4034 = vmul.f32 %v4029, %v4033
        %v4035 = vadd.f32 %v4034, 0.05243302
        %v4036 = vmul.f32 %v4029, %v4035
        %v4037 = vadd.f32 %v4036, 0.18741608
        %v4038 = vmul.f32 %v4029, %v4037
        %v4039 = vadd.f32 %v4038, 1.1283791
        %v4040 = vmul.f32 %v3505, %v4039
        %v4041 = vmul.f32 %v4029, 3.8918573e-05
        %v4042 = vadd.f32 %v4041, 0.001143296
        %v4043 = vmul.f32 %v4029, %v4042
        %v4044 = vadd.f32 %v4043, 0.014752088
        %v4045 = vmul.f32 %v4029, %v4044
        %v4046 = vadd.f32 %v4045, 0.112945676
        %v4047 = vmul.f32 %v4029, %v4046
        %v4048 = vadd.f32 %v4047, 0.4994258
        %v4049 = vmul.f32 %v4029, %v4048
        %v4050 = vadd.f32 %v4049, 1.0
        %v4051 = vrcp.pop %v4050
        %v4052 = vmul.f32 %v4050, %v4051
        %v4053 = vsub.f32 1.0, %v4052
        %v4054 = vmul.f32 %v4051, %v4053
        %v4055 = vadd.f32 %v4051, %v4054
        %vm4056 = vweird.f32 %v4050
        %vm4057 = vweird.f32 %v4051
        %vm4058 = vmor %vm4056, %vm4057
        %v4059 = vsel %vm4058, %v4051, %v4055
        %v4060 = vand.u32 2147483647, %v4050
        %vm4061 = vcmp.eq.f32.partialorder %v4060, 8.507059e+37
        %v4062 = vand.u32 %v4050, 2147483648
        %v4063 = vor.u32 1.1754944e-38, %v4062
        %v4064 = vsel %vm4061, %v4063, %v4059
        %v4065 = vmul.f32 %v4040, %v4064
        %v4066 = vmin.f32 %v4065, 1.0
        %v4067 = vmax.f32 %v4066, -1.0
        %v4068 = vmul.f32 %v3506, %v3506
        %v4069 = vmin.f32 16.0, %v4068
        %v4070 = vmul.f32 %v4069, 2.1237322e-06
        %v4071 = vadd.f32 %v4070, 0.00028619796
        %v4072 = vmul.f32 %v4069, %v4071
        %v4073 = vadd.f32 %v4072, 0.0036580483
        %v4074 = vmul.f32 %v4069, %v4073
        %v4075 = vadd.f32 %v4074, 0.05243302
        %v4076 = vmul.f32 %v4069, %v4075
        %v4077 = vadd.f32 %v4076, 0.18741608
        %v4078 = vmul.f32 %v4069, %v4077
        %v4079 = vadd.f32 %v4078, 1.1283791
        %v4080 = vmul.f32 %v3506, %v4079
        %v4081 = vmul.f32 %v4069, 3.8918573e-05
        %v4082 = vadd.f32 %v4081, 0.001143296
        %v4083 = vmul.f32 %v4069, %v4082
        %v4084 = vadd.f32 %v4083, 0.014752088
        %v4085 = vmul.f32 %v4069, %v4084
        %v4086 = vadd.f32 %v4085, 0.112945676
        %v4087 = vmul.f32 %v4069, %v4086
        %v4088 = vadd.f32 %v4087, 0.4994258
        %v4089 = vmul.f32 %v4069, %v4088
        %v4090 = vadd.f32 %v4089, 1.0
        %v4091 = vrcp.pop %v4090
        %v4092 = vmul.f32 %v4090, %v4091
        %v4093 = vsub.f32 1.0, %v4092
        %v4094 = vmul.f32 %v4091, %v4093
        %v4095 = vadd.f32 %v4091, %v4094
        %vm4096 = vweird.f32 %v4090
        %vm4097 = vweird.f32 %v4091
        %vm4098 = vmor %vm4096, %vm4097
        %v4099 = vsel %vm4098, %v4091, %v4095
        %v4100 = vand.u32 2147483647, %v4090
        %vm4101 = vcmp.eq.f32.partialorder %v4100, 8.507059e+37
        %v4102 = vand.u32 %v4090, 2147483648
        %v4103 = vor.u32 1.1754944e-38, %v4102
        %v4104 = vsel %vm4101, %v4103, %v4099
        %v4105 = vmul.f32 %v4080, %v4104
        %v4106 = vmin.f32 %v4105, 1.0
        %v4107 = vmax.f32 %v4106, -1.0
        %v4108 = vmul.f32 %v3507, %v3507
        %v4109 = vmin.f32 16.0, %v4108
        %v4110 = vmul.f32 %v4109, 2.1237322e-06
        %v4111 = vadd.f32 %v4110, 0.00028619796
        %v4112 = vmul.f32 %v4109, %v4111
        %v4113 = vadd.f32 %v4112, 0.0036580483
        %v4114 = vmul.f32 %v4109, %v4113
        %v4115 = vadd.f32 %v4114, 0.05243302
        %v4116 = vmul.f32 %v4109, %v4115
        %v4117 = vadd.f32 %v4116, 0.18741608
        %v4118 = vmul.f32 %v4109, %v4117
        %v4119 = vadd.f32 %v4118, 1.1283791
        %v4120 = vmul.f32 %v3507, %v4119
        %v4121 = vmul.f32 %v4109, 3.8918573e-05
        %v4122 = vadd.f32 %v4121, 0.001143296
        %v4123 = vmul.f32 %v4109, %v4122
        %v4124 = vadd.f32 %v4123, 0.014752088
        %v4125 = vmul.f32 %v4109, %v4124
        %v4126 = vadd.f32 %v4125, 0.112945676
        %v4127 = vmul.f32 %v4109, %v4126
        %v4128 = vadd.f32 %v4127, 0.4994258
        %v4129 = vmul.f32 %v4109, %v4128
        %v4130 = vadd.f32 %v4129, 1.0
        %v4131 = vrcp.pop %v4130
        %v4132 = vmul.f32 %v4130, %v4131
        %v4133 = vsub.f32 1.0, %v4132
        %v4134 = vmul.f32 %v4131, %v4133
        %v4135 = vadd.f32 %v4131, %v4134
        %vm4136 = vweird.f32 %v4130
        %vm4137 = vweird.f32 %v4131
        %vm4138 = vmor %vm4136, %vm4137
        %v4139 = vsel %vm4138, %v4131, %v4135
        %v4140 = vand.u32 2147483647, %v4130
        %vm4141 = vcmp.eq.f32.partialorder %v4140, 8.507059e+37
        %v4142 = vand.u32 %v4130, 2147483648
        %v4143 = vor.u32 1.1754944e-38, %v4142
        %v4144 = vsel %vm4141, %v4143, %v4139
        %v4145 = vmul.f32 %v4120, %v4144
        %v4146 = vmin.f32 %v4145, 1.0
        %v4147 = vmax.f32 %v4146, -1.0
        %v4148 = vadd.f32 %v3547, 1.0
        %v4149 = vadd.f32 %v3587, 1.0
        %v4150 = vadd.f32 %v3627, 1.0
        %v4151 = vadd.f32 %v3667, 1.0
        %v4152 = vadd.f32 %v3707, 1.0
        %v4153 = vadd.f32 %v3747, 1.0
        %v4154 = vadd.f32 %v3787, 1.0
        %v4155 = vadd.f32 %v3827, 1.0
        %v4156 = vadd.f32 %v3867, 1.0
        %v4157 = vadd.f32 %v3907, 1.0
        %v4158 = vadd.f32 %v3947, 1.0
        %v4159 = vadd.f32 %v3987, 1.0
        %v4160 = vadd.f32 %v4027, 1.0
        %v4161 = vadd.f32 %v4067, 1.0
        %v4162 = vadd.f32 %v4107, 1.0
        %v4163 = vadd.f32 %v4147, 1.0
        %v4164 = vmul.f32 %v3476, %v4148
        %v4165 = vmul.f32 %v3477, %v4149
        %v4166 = vmul.f32 %v3478, %v4150
        %v4167 = vmul.f32 %v3479, %v4151
        %v4168 = vmul.f32 %v3480, %v4152
        %v4169 = vmul.f32 %v3481, %v4153
        %v4170 = vmul.f32 %v3482, %v4154
        %v4171 = vmul.f32 %v3483, %v4155
        %v4172 = vmul.f32 %v3484, %v4156
        %v4173 = vmul.f32 %v3485, %v4157
        %v4174 = vmul.f32 %v3486, %v4158
        %v4175 = vmul.f32 %v3487, %v4159
        %v4176 = vmul.f32 %v3488, %v4160
        %v4177 = vmul.f32 %v3489, %v4161
        %v4178 = vmul.f32 %v3490, %v4162
        %v4179 = vmul.f32 %v3491, %v4163
        %v4180 = vld [vmem:[%s12] sm:$0x3]
        %v4182 = vperm.slane %v4180, 0
        %v4183 = vperm.slane %v4180, 1
        %4186 = vmatpush.msra.mxu0 %v940
        %4187 = vmatpush.msra.mxu0 %v938
        %4188 = vmatpush.msra.mxu0 %v936
        %4189 = vmatpush.msra.mxu0 %v934
        %4190 = vmatpush.msra.mxu0 %v932
        %4191 = vmatpush.msra.mxu0 %v930
        %4192 = vmatpush.msra.mxu0 %v928
        %4193 = vmatpush.msra.mxu0 %v926
        %4194 = vmatpush.msra.mxu0 %v924
        %4195 = vmatpush.msra.mxu0 %v922
        %4196 = vmatpush.msra.mxu0 %v920
        %4197 = vmatpush.msra.mxu0 %v918
        %4198 = vmatpush.msra.mxu0 %v916
        %4199 = vmatpush.msra.mxu0 %v914
        %4200 = vmatpush.msra.mxu0 %v912
        %4201 = vmatpush.msra.mxu0 %v910
        %4202 = vmatmul.f32.gmra.mxu0 %v4164
        %v4203 = vpop.f32.mrf.mxu0
        %v4204 = vadd.f32 %v4182, %v4203
        %4205 = vmatmul.f32.gmra.mxu0 %v4166
        %v4206 = vpop.f32.mrf.mxu0
        %v4207 = vadd.f32 %v4182, %v4206
        %4208 = vmatmul.f32.gmra.mxu0 %v4168
        %v4209 = vpop.f32.mrf.mxu0
        %v4210 = vadd.f32 %v4182, %v4209
        %4211 = vmatmul.f32.gmra.mxu0 %v4170
        %v4212 = vpop.f32.mrf.mxu0
        %v4213 = vadd.f32 %v4182, %v4212
        %4214 = vmatmul.f32.gmra.mxu0 %v4172
        %v4215 = vpop.f32.mrf.mxu0
        %v4216 = vadd.f32 %v4182, %v4215
        %4217 = vmatmul.f32.gmra.mxu0 %v4174
        %v4218 = vpop.f32.mrf.mxu0
        %v4219 = vadd.f32 %v4182, %v4218
        %4220 = vmatmul.f32.gmra.mxu0 %v4176
        %v4221 = vpop.f32.mrf.mxu0
        %v4222 = vadd.f32 %v4182, %v4221
        %4223 = vmatmul.f32.gmra.mxu0 %v4178
        %v4224 = vpop.f32.mrf.mxu0
        %v4225 = vadd.f32 %v4182, %v4224
        %4226 = vdwg.mxu0
        %4227 = vmatpush.msra.mxu0 %v972
        %4228 = vmatpush.msra.mxu0 %v970
        %4229 = vmatpush.msra.mxu0 %v968
        %4230 = vmatpush.msra.mxu0 %v966
        %4231 = vmatpush.msra.mxu0 %v964
        %4232 = vmatpush.msra.mxu0 %v962
        %4233 = vmatpush.msra.mxu0 %v960
        %4234 = vmatpush.msra.mxu0 %v958
        %4235 = vmatpush.msra.mxu0 %v956
        %4236 = vmatpush.msra.mxu0 %v954
        %4237 = vmatpush.msra.mxu0 %v952
        %4238 = vmatpush.msra.mxu0 %v950
        %4239 = vmatpush.msra.mxu0 %v948
        %4240 = vmatpush.msra.mxu0 %v946
        %4241 = vmatpush.msra.mxu0 %v944
        %4242 = vmatpush.msra.mxu0 %v942
        %4243 = vmatmul.f32.gmra.mxu0 %v4165
        %v4244 = vpop.f32.mrf.mxu0
        %v4245 = vadd.f32 %v4204, %v4244
        %4246 = vmatmul.f32.gmra.mxu0 %v4167
        %v4247 = vpop.f32.mrf.mxu0
        %v4248 = vadd.f32 %v4207, %v4247
        %4249 = vmatmul.f32.gmra.mxu0 %v4169
        %v4250 = vpop.f32.mrf.mxu0
        %v4251 = vadd.f32 %v4210, %v4250
        %4252 = vmatmul.f32.gmra.mxu0 %v4171
        %v4253 = vpop.f32.mrf.mxu0
        %v4254 = vadd.f32 %v4213, %v4253
        %4255 = vmatmul.f32.gmra.mxu0 %v4173
        %v4256 = vpop.f32.mrf.mxu0
        %v4257 = vadd.f32 %v4216, %v4256
        %4258 = vmatmul.f32.gmra.mxu0 %v4175
        %v4259 = vpop.f32.mrf.mxu0
        %v4260 = vadd.f32 %v4219, %v4259
        %4261 = vmatmul.f32.gmra.mxu0 %v4177
        %v4262 = vpop.f32.mrf.mxu0
        %v4263 = vadd.f32 %v4222, %v4262
        %4264 = vmatmul.f32.gmra.mxu0 %v4179
        %v4265 = vpop.f32.mrf.mxu0
        %v4266 = vadd.f32 %v4225, %v4265
        %4267 = vdwg.mxu0
        %4268 = vmatpush.msra.mxu0 %v941
        %4269 = vmatpush.msra.mxu0 %v939
        %4270 = vmatpush.msra.mxu0 %v937
        %4271 = vmatpush.msra.mxu0 %v935
        %4272 = vmatpush.msra.mxu0 %v933
        %4273 = vmatpush.msra.mxu0 %v931
        %4274 = vmatpush.msra.mxu0 %v929
        %4275 = vmatpush.msra.mxu0 %v927
        %4276 = vmatpush.msra.mxu0 %v925
        %4277 = vmatpush.msra.mxu0 %v923
        %4278 = vmatpush.msra.mxu0 %v921
        %4279 = vmatpush.msra.mxu0 %v919
        %4280 = vmatpush.msra.mxu0 %v917
        %4281 = vmatpush.msra.mxu0 %v915
        %4282 = vmatpush.msra.mxu0 %v913
        %4283 = vmatpush.msra.mxu0 %v911
        %4284 = vmatmul.f32.gmra.mxu0 %v4164
        %v4285 = vpop.f32.mrf.mxu0
        %v4286 = vadd.f32 %v4183, %v4285
        %4287 = vmatmul.f32.gmra.mxu0 %v4166
        %v4288 = vpop.f32.mrf.mxu0
        %v4289 = vadd.f32 %v4183, %v4288
        %4290 = vmatmul.f32.gmra.mxu0 %v4168
        %v4291 = vpop.f32.mrf.mxu0
        %v4292 = vadd.f32 %v4183, %v4291
        %4293 = vmatmul.f32.gmra.mxu0 %v4170
        %v4294 = vpop.f32.mrf.mxu0
        %v4295 = vadd.f32 %v4183, %v4294
        %4296 = vmatmul.f32.gmra.mxu0 %v4172
        %v4297 = vpop.f32.mrf.mxu0
        %v4298 = vadd.f32 %v4183, %v4297
        %4299 = vmatmul.f32.gmra.mxu0 %v4174
        %v4300 = vpop.f32.mrf.mxu0
        %v4301 = vadd.f32 %v4183, %v4300
        %4302 = vmatmul.f32.gmra.mxu0 %v4176
        %v4303 = vpop.f32.mrf.mxu0
        %v4304 = vadd.f32 %v4183, %v4303
        %4305 = vmatmul.f32.gmra.mxu0 %v4178
        %v4306 = vpop.f32.mrf.mxu0
        %v4307 = vadd.f32 %v4183, %v4306
        %4308 = vdwg.mxu0
        %4309 = vmatpush.msra.mxu0 %v973
        %4310 = vmatpush.msra.mxu0 %v971
        %4311 = vmatpush.msra.mxu0 %v969
        %4312 = vmatpush.msra.mxu0 %v967
        %4313 = vmatpush.msra.mxu0 %v965
        %4314 = vmatpush.msra.mxu0 %v963
        %4315 = vmatpush.msra.mxu0 %v961
        %4316 = vmatpush.msra.mxu0 %v959
        %4317 = vmatpush.msra.mxu0 %v957
        %4318 = vmatpush.msra.mxu0 %v955
        %4319 = vmatpush.msra.mxu0 %v953
        %4320 = vmatpush.msra.mxu0 %v951
        %4321 = vmatpush.msra.mxu0 %v949
        %4322 = vmatpush.msra.mxu0 %v947
        %4323 = vmatpush.msra.mxu0 %v945
        %4324 = vmatpush.msra.mxu0 %v943
        %4325 = vmatmul.f32.gmra.mxu0 %v4165
        %v4326 = vpop.f32.mrf.mxu0
        %v4327 = vadd.f32 %v4286, %v4326
        %4328 = vmatmul.f32.gmra.mxu0 %v4167
        %v4329 = vpop.f32.mrf.mxu0
        %v4330 = vadd.f32 %v4289, %v4329
        %4331 = vmatmul.f32.gmra.mxu0 %v4169
        %v4332 = vpop.f32.mrf.mxu0
        %v4333 = vadd.f32 %v4292, %v4332
        %4334 = vmatmul.f32.gmra.mxu0 %v4171
        %v4335 = vpop.f32.mrf.mxu0
        %v4336 = vadd.f32 %v4295, %v4335
        %4337 = vmatmul.f32.gmra.mxu0 %v4173
        %v4338 = vpop.f32.mrf.mxu0
        %v4339 = vadd.f32 %v4298, %v4338
        %4340 = vmatmul.f32.gmra.mxu0 %v4175
        %v4341 = vpop.f32.mrf.mxu0
        %v4342 = vadd.f32 %v4301, %v4341
        %4343 = vmatmul.f32.gmra.mxu0 %v4177
        %v4344 = vpop.f32.mrf.mxu0
        %v4345 = vadd.f32 %v4304, %v4344
        %4346 = vmatmul.f32.gmra.mxu0 %v4179
        %v4347 = vpop.f32.mrf.mxu0
        %v4348 = vadd.f32 %v4307, %v4347
        %4349 = vdwg.mxu0
        %v4350 = vadd.f32 %v4245, %v3046
        %v4351 = vadd.f32 %v4327, %v3047
        %v4352 = vadd.f32 %v4248, %v3048
        %v4353 = vadd.f32 %v4330, %v3049
        %v4354 = vadd.f32 %v4251, %v3050
        %v4355 = vadd.f32 %v4333, %v3051
        %v4356 = vadd.f32 %v4254, %v3052
        %v4357 = vadd.f32 %v4336, %v3053
        %v4358 = vadd.f32 %v4257, %v3054
        %v4359 = vadd.f32 %v4339, %v3055
        %v4360 = vadd.f32 %v4260, %v3056
        %v4361 = vadd.f32 %v4342, %v3057
        %v4362 = vadd.f32 %v4263, %v3058
        %v4363 = vadd.f32 %v4345, %v3059
        %v4364 = vadd.f32 %v4266, %v3060
        %v4365 = vadd.f32 %v4348, %v3061
        %4366 = vst [vmem:[%s571] sm:$0xff] %v4350
        %4367 = vst [vmem:[%s571 + $0x8] sm:$0xff] %v4351
        %4368 = vst [vmem:[%s571 + $0x10] sm:$0xff] %v4352
        %4369 = vst [vmem:[%s571 + $0x18] sm:$0xff] %v4353
        %4370 = vst [vmem:[%s571 + $0x20] sm:$0xff] %v4354
        %4371 = vst [vmem:[%s571 + $0x28] sm:$0xff] %v4355
        %4372 = vst [vmem:[%s571 + $0x30] sm:$0xff] %v4356
        %4373 = vst [vmem:[%s571 + $0x38] sm:$0xff] %v4357
        %4374 = vst [vmem:[%s571 + $0x40] sm:$0xff] %v4358
        %4375 = vst [vmem:[%s571 + $0x48] sm:$0xff] %v4359
        %4376 = vst [vmem:[%s571 + $0x50] sm:$0xff] %v4360
        %4377 = vst [vmem:[%s571 + $0x58] sm:$0xff] %v4361
        %4378 = vst [vmem:[%s571 + $0x60] sm:$0xff] %v4362
        %4379 = vst [vmem:[%s571 + $0x68] sm:$0xff] %v4363
        %4380 = vst [vmem:[%s571 + $0x70] sm:$0xff] %v4364
        %4381 = vst [vmem:[%s571 + $0x78] sm:$0xff] %v4365
        %s4382 = sand.u32 %s320, 1
        %s4383 = scalar_lea.sflag [#allocation4], %s4382
        %s4384 = sand.u32 %s320, 1
        %s4385 = smul.addr %s4384, 128
        %s4386 = scalar_lea.vmem [#allocation16], %s4385
        // Predicated region
        $region105: #{tpu_custom_call.1} parent=71 // pred_check
          %p4387 = pneg %p330
        $region106: #{tpu_custom_call.1} parent=71 // pred_check_branch
          %4389 = sbr.rel (%p4387) target = $region108
        $region107: #{tpu_custom_call.1} parent=71 // pred_region
          %s4390 = smul.u32 8, %s34
          %4392 = vsyncadd %s4383, 0
          %s4393 = smul.addr %s4390, 2
          %s4394 = smul.addr %s4393, 8
          %s4395 = scalar_lea.hbm %s13, %s4394
          %s4396 = sshll.u32 %s4386, 4
          %s4397 = int_to_ptr.vmem [resolvable:$true] %s4396
          %s4398 = sshll.u32 %s4395, 4
          %s4399 = int_to_ptr.hbm [resolvable:$true] %s4398
          %4404 = dma.vmem_to_hbm [thread:$0]  %s4397, 2048, %s4399, %s4383, 256, 256, 16
        $region108: #{tpu_custom_call.1} parent=71 // pred_fallthru
          _
      $region72: #{tpu_custom_call.1} parent=5 // pred_fallthru
        _
      %p4405 = scmp.le.s32.totalorder 2, %s29
      // Predicated region
      $region109: #{tpu_custom_call.1} parent=5 // pred_check
        %p4406 = pneg %p4405
      $region110: #{tpu_custom_call.1} parent=5 // pred_check_branch
        %4408 = sbr.rel (%p4406) target = $region112
      $region111: #{tpu_custom_call.1} parent=5 // pred_region
        %s4409 = ssub.s32 %s29, 2
        // Predicated region
        $region113: #{tpu_custom_call.1} parent=111 // pred_check
          %p4410 = pneg %p336
        $region114: #{tpu_custom_call.1} parent=111 // pred_check_branch
          %4412 = sbr.rel (%p4410) target = $region116
        $region115: #{tpu_custom_call.1} parent=111 // pred_region
          %s4413 = sand.u32 %s321, 1
          %s4414 = scalar_lea.sflag [#allocation4], %s4413
          %s4415 = sand.u32 %s321, 1
          %s4416 = smul.addr %s4415, 128
          %s4417 = scalar_lea.vmem [#allocation16], %s4416
          %4419 = dma.done %s4414, 2048
        $region116: #{tpu_custom_call.1} parent=111 // pred_fallthru
          _
      $region112: #{tpu_custom_call.1} parent=5 // pred_fallthru
        _
    $region6: #{tpu_custom_call.1} parent=1 // loop_footer
      %s33 = sadd.s32 1, %s29
    $region7: #{tpu_custom_call.1} parent=1 // loop_footer_branch
      %28 = sbr.rel target = $region3
    $region8: #{tpu_custom_call.1} parent=1 // loop_exit
      _
    %4420 = vsyncpa [#allocation3], 1
    %s4421 = scalar_lea.sflag [#allocation3], 1
    %4422 = vsyncpa %s4421, 1
    %4423 = vsyncpa [#allocation6], 1
    %4424 = vsyncpa [#allocation9], 1
    %4425 = vsyncpa [#allocation12], 1
    %4426 = vsyncpa [#allocation15], 1
    %4427 = vsyncpa [#allocation4], 1
    %s4428 = scalar_lea.sflag [#allocation4], 1
    %4429 = vsyncpa %s4428, 1

</llo_original>
